<compile_context>
chip_gen: v7x
topology: tpu7x:2x2x1
jax: 0.10.0
libtpu: 0.0.40
codegen_flags: <defaults>
</compile_context>

<pallas_src>
import math
import functools

import jax
import jax.numpy as jnp
from jax.experimental import pallas as pl
from jax.experimental.pallas import tpu as pltpu

# ---------------- problem sizes (small, consistent with the module) ----------
B = 2       # batch
T = 8       # time1 == time2
H = 4       # n_head
DK = 8      # d_k
F = H * DK  # n_feat = 32
EPS = 1e-5
NEG = -1e30  # large-but-finite mask fill (same post-softmax result as finfo.min)


def _mha_kernel(x_ref, posk_ref, mask_ref, w_ref, vec_ref, o_ref,
                *, n_batch, n_head, d_k):
    n_feat = n_head * d_k
    n_time = posk_ref.shape[0]

    x = x_ref[...]                                  # (B*T, F)

    # ---- packed parameter slabs ---------------------------------------------
    w = w_ref[...]                                  # (F, 4F): [Wq^T|Wk^T|Wv^T|Wo^T]
    wqkv = w[:, :3 * n_feat]                        # (F, 3F)
    wo = w[:, 3 * n_feat:]                          # (F, F)
    vecs = vec_ref[...]                             # (4, 3F)
    gamma = vecs[0:1, :n_feat]
    beta = vecs[1:2, :n_feat]
    bo = vecs[2:3, :n_feat]
    bqkv = vecs[3:4, :]                             # (1, 3F)

    # ---- LayerNorm over features (nn.LayerNorm(n_feat), eps=1e-5) -----------
    mean = jnp.mean(x, axis=-1, keepdims=True)
    xc = x - mean
    var = jnp.mean(xc * xc, axis=-1, keepdims=True)
    xn = xc * jax.lax.rsqrt(var + EPS) * gamma + beta

    # ---- fused Q/K/V projection: one MXU push with 3F output lanes ----------
    qkv = jnp.dot(xn, wqkv, preferred_element_type=jnp.float32) + bqkv
    q = qkv[:, :n_feat]
    k = qkv[:, n_feat:2 * n_feat]
    v = qkv[:, 2 * n_feat:]

    # head-major tensors (H, B*T, d_k), built once via static lane slices
    def split_heads(a):
        return jnp.stack(
            [a[:, h * d_k:(h + 1) * d_k] for h in range(n_head)], axis=0)

    q_h, k_h, v_h = split_heads(q), split_heads(k), split_heads(v)

    posk_t = posk_ref[...]                          # (T, d_k, T) pre-transposed
    masked = mask_ref[...] == 0.0                   # (B, T, T) predicate, once
    inv_sqrt_dk = 1.0 / math.sqrt(d_k)

    ctx_rows = []
    for b in range(n_batch):                        # tiny static batch loop
        rows = slice(b * n_time, (b + 1) * n_time)
        qb = q_h[:, rows, :]                        # (H, T, dk)
        kb = k_h[:, rows, :]
        vb = v_h[:, rows, :]

        # content-content scores, batched over heads (no explicit k.T)
        a_sc = jnp.einsum('htd,hsd->hts', qb, kb,
                          preferred_element_type=jnp.float32)       # (H, T, T)

        # content-position scores: batched over time1, contract d_k on the MXU
        qb_t = jnp.transpose(qb, (1, 0, 2))                          # (T, H, dk)
        b_sc = jax.lax.dot_general(
            qb_t, posk_t, (((2,), (1,)), ((0,), (0,))),
            preferred_element_type=jnp.float32)                      # (T, H, T)
        b_sc = jnp.transpose(b_sc, (1, 0, 2))                        # (H, T, T)

        scores = (a_sc + b_sc) * inv_sqrt_dk
        mb = masked[b][None, :, :]                                   # (1, T, T)
        scores = jnp.where(mb, NEG, scores)

        m = jnp.max(scores, axis=-1, keepdims=True)
        e = jnp.exp(scores - m)
        denom = jnp.sum(e, axis=-1, keepdims=True)
        attn = e * pl.reciprocal(denom, approx=True)
        attn = jnp.where(mb, 0.0, attn)

        ctx = jnp.einsum('hts,hsd->htd', attn, vb,
                         preferred_element_type=jnp.float32)         # (H, T, dk)
        # concatenate heads along lanes -> (T, F)
        ctx_rows.append(
            jnp.concatenate([ctx[h] for h in range(n_head)], axis=-1))

    ctx_all = jnp.concatenate(ctx_rows, axis=0)                      # (B*T, F)

    # ---- single output projection with K = F --------------------------------
    out = jnp.dot(ctx_all, wo, preferred_element_type=jnp.float32) + bo
    o_ref[...] = out


def multi_headed_attention(x, pos_k, mask, params, *, n_head=H, d_k=DK):
    """x: (B, T, F) f32, pos_k: (T, T, d_k) f32, mask: (B, T, T) f32 (1=keep)."""
    n_batch, n_time, n_feat = x.shape
    n_rows = n_batch * n_time

    x_flat = x.reshape(n_rows, n_feat)              # free wrapper-side reshape
    posk_t = jnp.transpose(pos_k, (0, 2, 1))        # (T, d_k, T): time2 on lanes

    kernel = functools.partial(_mha_kernel, n_batch=n_batch,
                               n_head=n_head, d_k=d_k)

    out_flat = pl.pallas_call(
        kernel,
        out_shape=jax.ShapeDtypeStruct((n_rows, n_feat), jnp.float32),
        grid_spec=pltpu.PrefetchScalarGridSpec(
            num_scalar_prefetch=0,
            grid=(1,),                              # batch folded into one step
            in_specs=[
                pl.BlockSpec((n_rows, n_feat), lambda i: (0, 0)),            # x
                pl.BlockSpec((n_time, d_k, n_time), lambda i: (0, 0, 0)),    # pos_k^T
                pl.BlockSpec((n_batch, n_time, n_time), lambda i: (0, 0, 0)),# mask
                pl.BlockSpec((n_feat, 4 * n_feat), lambda i: (0, 0)),        # W slab
                pl.BlockSpec((4, 3 * n_feat), lambda i: (0, 0)),             # vec slab
            ],
            out_specs=pl.BlockSpec((n_rows, n_feat), lambda i: (0, 0)),
        ),
        compiler_params=pltpu.CompilerParams(
            dimension_semantics=("arbitrary",)),
    )(x_flat, posk_t, mask, params["wslab"], params["vslab"])

    return out_flat.reshape(n_batch, n_time, n_feat)


def _init_params(key):
    """Deterministic synthetic parameters matching MultiHeadedAttention.__init__."""
    ks = jax.random.split(key, 8)
    scale = 1.0 / math.sqrt(F)

    def lin(kw, kb):
        # PyTorch nn.Linear weight is (out, in); store transposed (in, out).
        w = jax.random.uniform(kw, (F, F), jnp.float32, -scale, scale)
        b = jax.random.uniform(kb, (F,), jnp.float32, -scale, scale)
        return w.T, b

    wq_t, bq = lin(ks[0], ks[1])
    wk_t, bk = lin(ks[2], ks[3])
    wv_t, bv = lin(ks[4], ks[5])
    wo_t, bo = lin(ks[6], ks[7])
    gamma = jnp.ones((F,), jnp.float32)
    beta = jnp.zeros((F,), jnp.float32)

    # weight slab (F, 4F) = (32, 128): lane-dense, one DMA
    wslab = jnp.concatenate([wq_t, wk_t, wv_t, wo_t], axis=1)
    # vector slab (4, 3F): rows = gamma | beta | bo (zero-padded) | fused bqkv
    vslab = jnp.zeros((4, 3 * F), jnp.float32)
    vslab = vslab.at[0, :F].set(gamma)
    vslab = vslab.at[1, :F].set(beta)
    vslab = vslab.at[2, :F].set(bo)
    vslab = vslab.at[3, :].set(jnp.concatenate([bq, bk, bv]))
    return {"wslab": wslab, "vslab": vslab}


def _reference(x, pos_k, mask, params, *, n_head=H, d_k=DK):
    """Pure-JAX mirror of the PyTorch module (eval mode)."""
    n_feat = n_head * d_k
    w = params["wslab"]
    wq_t, wk_t, wv_t, wo_t = [w[:, i * n_feat:(i + 1) * n_feat] for i in range(4)]
    vecs = params["vslab"]
    gamma, beta, bo = vecs[0, :n_feat], vecs[1, :n_feat], vecs[2, :n_feat]
    bq, bk, bv = [vecs[3, i * n_feat:(i + 1) * n_feat] for i in range(3)]

    n_batch, n_time, _ = x.shape
    mean = x.mean(-1, keepdims=True)
    var = ((x - mean) ** 2).mean(-1, keepdims=True)
    xn = (x - mean) / jnp.sqrt(var + EPS) * gamma + beta

    def heads(y):
        return y.reshape(n_batch, n_time, n_head, d_k).transpose(0, 2, 1, 3)

    q = heads(xn @ wq_t + bq)
    k = heads(xn @ wk_t + bk)
    v = heads(xn @ wv_t + bv)
    a_sc = jnp.einsum('bhtd,bhsd->bhts', q, k)
    b_sc = jnp.einsum('bhtd,tsd->bhts', q, pos_k)
    scores = (a_sc + b_sc) / math.sqrt(d_k)
    masked = (mask == 0.0)[:, None, :, :]
    scores = jnp.where(masked, NEG, scores)
    attn = jax.nn.softmax(scores, axis=-1)
    attn = jnp.where(masked, 0.0, attn)
    ctx = jnp.einsum('bhts,bhsd->bhtd', attn, v)
    ctx = ctx.transpose(0, 2, 1, 3).reshape(n_batch, n_time, n_feat)
    return ctx @ wo_t + bo


if __name__ == "__main__":
    key = jax.random.PRNGKey(0)
    k_x, k_p, k_params = jax.random.split(key, 3)

    x = jax.random.normal(k_x, (B, T, F), jnp.float32)
    pos_k = jax.random.normal(k_p, (T, T, DK), jnp.float32) * 0.1
    # mask: second batch element has its last two key frames masked out
    mask = jnp.ones((B, T, T), jnp.float32)
    mask = mask.at[1, :, 6:].set(0.0)

    params = _init_params(k_params)

    out = multi_headed_attention(x, pos_k, mask, params)
    jax.block_until_ready(out)
    assert out.shape == (B, T, F)

    ref = _reference(x, pos_k, mask, params)
    max_err = float(jnp.max(jnp.abs(out - ref)))
    assert max_err < 5e-2, f"mismatch vs reference: {max_err}"
    print("KERNEL_OK")
</pallas_src>

<mosaic_0001>
module attributes {stable_mosaic.version = 11 : i64} {
  func.func @_mha_kernel(%arg0: i32, %arg1: memref<16x32xf32, #tpu.memory_space<vmem>>, %arg2: memref<8x8x8xf32, #tpu.memory_space<vmem>>, %arg3: memref<2x8x8xf32, #tpu.memory_space<vmem>>, %arg4: memref<32x128xf32, #tpu.memory_space<vmem>>, %arg5: memref<4x96xf32, #tpu.memory_space<vmem>>, %arg6: memref<16x32xf32, #tpu.memory_space<vmem>>) attributes {dimension_semantics = [#tpu.dimension_semantics<arbitrary>], iteration_bounds = array<i64: 1>, scalar_prefetch = 0 : i64, scratch_operands = 0 : i64, tpu.core_type = #tpu.core_type<tc>, window_params = [{pipeline_mode = #tpu.pipeline_mode<synchronous>, transform_indices = @transform_0, window_bounds = array<i64: 16, 32>}, {pipeline_mode = #tpu.pipeline_mode<synchronous>, transform_indices = @transform_1, window_bounds = array<i64: 8, 8, 8>}, {pipeline_mode = #tpu.pipeline_mode<synchronous>, transform_indices = @transform_2, window_bounds = array<i64: 2, 8, 8>}, {pipeline_mode = #tpu.pipeline_mode<synchronous>, transform_indices = @transform_3, window_bounds = array<i64: 32, 128>}, {pipeline_mode = #tpu.pipeline_mode<synchronous>, transform_indices = @transform_4, window_bounds = array<i64: 4, 96>}, {pipeline_mode = #tpu.pipeline_mode<synchronous>, transform_indices = @transform_5, window_bounds = array<i64: 16, 32>}]} {
    %c0 = arith.constant 0 : index
    %c0_0 = arith.constant 0 : index
    %0 = vector.load %arg1[%c0, %c0_0] : memref<16x32xf32, #tpu.memory_space<vmem>>, vector<16x32xf32>
    %c0_1 = arith.constant 0 : index
    %c0_2 = arith.constant 0 : index
    %1 = vector.load %arg4[%c0_1, %c0_2] : memref<32x128xf32, #tpu.memory_space<vmem>>, vector<32x128xf32>
    %2 = vector.extract_strided_slice %1 {offsets = [0, 0], sizes = [32, 96], strides = [1, 1]} : vector<32x128xf32> to vector<32x96xf32>
    %3 = vector.extract_strided_slice %1 {offsets = [0, 96], sizes = [32, 32], strides = [1, 1]} : vector<32x128xf32> to vector<32x32xf32>
    %c0_3 = arith.constant 0 : index
    %c0_4 = arith.constant 0 : index
    %4 = vector.load %arg5[%c0_3, %c0_4] : memref<4x96xf32, #tpu.memory_space<vmem>>, vector<4x96xf32>
    %5 = vector.extract_strided_slice %4 {offsets = [0, 0], sizes = [1, 32], strides = [1, 1]} : vector<4x96xf32> to vector<1x32xf32>
    %6 = vector.extract_strided_slice %4 {offsets = [1, 0], sizes = [1, 32], strides = [1, 1]} : vector<4x96xf32> to vector<1x32xf32>
    %7 = vector.extract_strided_slice %4 {offsets = [2, 0], sizes = [1, 32], strides = [1, 1]} : vector<4x96xf32> to vector<1x32xf32>
    %8 = vector.extract_strided_slice %4 {offsets = [3, 0], sizes = [1, 96], strides = [1, 1]} : vector<4x96xf32> to vector<1x96xf32>
    %cst = arith.constant dense<0.000000e+00> : vector<16xf32>
    %9 = vector.multi_reduction <add>, %0, %cst [1] : vector<16x32xf32> to vector<16xf32>
    %10 = vector.shape_cast %9 : vector<16xf32> to vector<16x1xf32>
    %cst_5 = arith.constant 3.200000e+01 : f32
    %11 = vector.broadcast %cst_5 : f32 to vector<16x1xf32>
    %12 = arith.divf %10, %11 : vector<16x1xf32>
    %13 = vector.broadcast %12 : vector<16x1xf32> to vector<16x32xf32>
    %14 = arith.subf %0, %13 : vector<16x32xf32>
    %15 = arith.mulf %14, %14 : vector<16x32xf32>
    %cst_6 = arith.constant dense<0.000000e+00> : vector<16xf32>
    %16 = vector.multi_reduction <add>, %15, %cst_6 [1] : vector<16x32xf32> to vector<16xf32>
    %17 = vector.shape_cast %16 : vector<16xf32> to vector<16x1xf32>
    %cst_7 = arith.constant 3.200000e+01 : f32
    %18 = vector.broadcast %cst_7 : f32 to vector<16x1xf32>
    %19 = arith.divf %17, %18 : vector<16x1xf32>
    %cst_8 = arith.constant 9.99999974E-6 : f32
    %20 = vector.broadcast %cst_8 : f32 to vector<16x1xf32>
    %21 = arith.addf %19, %20 : vector<16x1xf32>
    %22 = math.rsqrt %21 : vector<16x1xf32>
    %23 = vector.broadcast %22 : vector<16x1xf32> to vector<16x32xf32>
    %24 = arith.mulf %14, %23 : vector<16x32xf32>
    %25 = vector.broadcast %5 : vector<1x32xf32> to vector<16x32xf32>
    %26 = arith.mulf %24, %25 : vector<16x32xf32>
    %27 = vector.broadcast %6 : vector<1x32xf32> to vector<16x32xf32>
    %28 = arith.addf %26, %27 : vector<16x32xf32>
    %cst_9 = arith.constant dense<0.000000e+00> : vector<16x96xf32>
    %29 = tpu.matmul %28, %2, %cst_9 {dimension_numbers = #tpu.dot_dimension_numbers<[1], [0], [0], [1], [0, 0, 1, 1], [], []>} : vector<16x32xf32>, vector<32x96xf32>, vector<16x96xf32> -> vector<16x96xf32>
    %30 = vector.broadcast %8 : vector<1x96xf32> to vector<16x96xf32>
    %31 = arith.addf %29, %30 : vector<16x96xf32>
    %32 = vector.extract_strided_slice %31 {offsets = [0, 0], sizes = [16, 32], strides = [1, 1]} : vector<16x96xf32> to vector<16x32xf32>
    %33 = vector.extract_strided_slice %31 {offsets = [0, 32], sizes = [16, 32], strides = [1, 1]} : vector<16x96xf32> to vector<16x32xf32>
    %34 = vector.extract_strided_slice %31 {offsets = [0, 64], sizes = [16, 32], strides = [1, 1]} : vector<16x96xf32> to vector<16x32xf32>
    %35 = vector.extract_strided_slice %32 {offsets = [0, 0], sizes = [16, 8], strides = [1, 1]} : vector<16x32xf32> to vector<16x8xf32>
    %36 = vector.extract_strided_slice %32 {offsets = [0, 8], sizes = [16, 8], strides = [1, 1]} : vector<16x32xf32> to vector<16x8xf32>
    %37 = vector.extract_strided_slice %32 {offsets = [0, 16], sizes = [16, 8], strides = [1, 1]} : vector<16x32xf32> to vector<16x8xf32>
    %38 = vector.extract_strided_slice %32 {offsets = [0, 24], sizes = [16, 8], strides = [1, 1]} : vector<16x32xf32> to vector<16x8xf32>
    %39 = vector.shape_cast %35 : vector<16x8xf32> to vector<1x16x8xf32>
    %40 = vector.shape_cast %36 : vector<16x8xf32> to vector<1x16x8xf32>
    %41 = vector.shape_cast %37 : vector<16x8xf32> to vector<1x16x8xf32>
    %42 = vector.shape_cast %38 : vector<16x8xf32> to vector<1x16x8xf32>
    %43 = tpu.concatenate %39, %40, %41, %42 in 0 : vector<1x16x8xf32>, vector<1x16x8xf32>, vector<1x16x8xf32>, vector<1x16x8xf32> -> vector<4x16x8xf32>
    %44 = vector.extract_strided_slice %33 {offsets = [0, 0], sizes = [16, 8], strides = [1, 1]} : vector<16x32xf32> to vector<16x8xf32>
    %45 = vector.extract_strided_slice %33 {offsets = [0, 8], sizes = [16, 8], strides = [1, 1]} : vector<16x32xf32> to vector<16x8xf32>
    %46 = vector.extract_strided_slice %33 {offsets = [0, 16], sizes = [16, 8], strides = [1, 1]} : vector<16x32xf32> to vector<16x8xf32>
    %47 = vector.extract_strided_slice %33 {offsets = [0, 24], sizes = [16, 8], strides = [1, 1]} : vector<16x32xf32> to vector<16x8xf32>
    %48 = vector.shape_cast %44 : vector<16x8xf32> to vector<1x16x8xf32>
    %49 = vector.shape_cast %45 : vector<16x8xf32> to vector<1x16x8xf32>
    %50 = vector.shape_cast %46 : vector<16x8xf32> to vector<1x16x8xf32>
    %51 = vector.shape_cast %47 : vector<16x8xf32> to vector<1x16x8xf32>
    %52 = tpu.concatenate %48, %49, %50, %51 in 0 : vector<1x16x8xf32>, vector<1x16x8xf32>, vector<1x16x8xf32>, vector<1x16x8xf32> -> vector<4x16x8xf32>
    %53 = vector.extract_strided_slice %34 {offsets = [0, 0], sizes = [16, 8], strides = [1, 1]} : vector<16x32xf32> to vector<16x8xf32>
    %54 = vector.extract_strided_slice %34 {offsets = [0, 8], sizes = [16, 8], strides = [1, 1]} : vector<16x32xf32> to vector<16x8xf32>
    %55 = vector.extract_strided_slice %34 {offsets = [0, 16], sizes = [16, 8], strides = [1, 1]} : vector<16x32xf32> to vector<16x8xf32>
    %56 = vector.extract_strided_slice %34 {offsets = [0, 24], sizes = [16, 8], strides = [1, 1]} : vector<16x32xf32> to vector<16x8xf32>
    %57 = vector.shape_cast %53 : vector<16x8xf32> to vector<1x16x8xf32>
    %58 = vector.shape_cast %54 : vector<16x8xf32> to vector<1x16x8xf32>
    %59 = vector.shape_cast %55 : vector<16x8xf32> to vector<1x16x8xf32>
    %60 = vector.shape_cast %56 : vector<16x8xf32> to vector<1x16x8xf32>
    %61 = tpu.concatenate %57, %58, %59, %60 in 0 : vector<1x16x8xf32>, vector<1x16x8xf32>, vector<1x16x8xf32>, vector<1x16x8xf32> -> vector<4x16x8xf32>
    %c0_10 = arith.constant 0 : index
    %c0_11 = arith.constant 0 : index
    %c0_12 = arith.constant 0 : index
    %62 = vector.load %arg2[%c0_10, %c0_11, %c0_12] : memref<8x8x8xf32, #tpu.memory_space<vmem>>, vector<8x8x8xf32>
    %c0_13 = arith.constant 0 : index
    %c0_14 = arith.constant 0 : index
    %c0_15 = arith.constant 0 : index
    %63 = vector.load %arg3[%c0_13, %c0_14, %c0_15] : memref<2x8x8xf32, #tpu.memory_space<vmem>>, vector<2x8x8xf32>
    %cst_16 = arith.constant 0.000000e+00 : f32
    %64 = vector.broadcast %cst_16 : f32 to vector<2x8x8xf32>
    %65 = arith.cmpf oeq, %63, %64 : vector<2x8x8xf32>
    %66 = vector.extract_strided_slice %43 {offsets = [0, 0, 0], sizes = [4, 8, 8], strides = [1, 1, 1]} : vector<4x16x8xf32> to vector<4x8x8xf32>
    %67 = vector.extract_strided_slice %52 {offsets = [0, 0, 0], sizes = [4, 8, 8], strides = [1, 1, 1]} : vector<4x16x8xf32> to vector<4x8x8xf32>
    %68 = vector.extract_strided_slice %61 {offsets = [0, 0, 0], sizes = [4, 8, 8], strides = [1, 1, 1]} : vector<4x16x8xf32> to vector<4x8x8xf32>
    "tpu.trace_start"() <{level = 10 : i32, message = "htd,hsd->hts"}> : () -> ()
    %cst_17 = arith.constant dense<0.000000e+00> : vector<4x8x8xf32>
    %69 = tpu.matmul %66, %67, %cst_17 {dimension_numbers = #tpu.dot_dimension_numbers<[2], [2], [1], [1], [0, 0, 0, 1, 1, 1], [0], [0]>} : vector<4x8x8xf32>, vector<4x8x8xf32>, vector<4x8x8xf32> -> vector<4x8x8xf32>
    "tpu.trace_stop"() : () -> ()
    %70 = tpu.transpose %66, [1, 0, 2] : vector<4x8x8xf32> -> vector<8x4x8xf32>
    %cst_18 = arith.constant dense<0.000000e+00> : vector<8x4x8xf32>
    %71 = tpu.matmul %70, %62, %cst_18 {dimension_numbers = #tpu.dot_dimension_numbers<[2], [1], [1], [2], [0, 0, 0, 1, 1, 2], [0], [0]>} : vector<8x4x8xf32>, vector<8x8x8xf32>, vector<8x4x8xf32> -> vector<8x4x8xf32>
    %72 = tpu.transpose %71, [1, 0, 2] : vector<8x4x8xf32> -> vector<4x8x8xf32>
    %73 = arith.addf %69, %72 : vector<4x8x8xf32>
    %cst_19 = arith.constant 0.353553385 : f32
    %74 = vector.broadcast %cst_19 : f32 to vector<4x8x8xf32>
    %75 = arith.mulf %73, %74 : vector<4x8x8xf32>
    %76 = vector.extract_strided_slice %65 {offsets = [0, 0, 0], sizes = [1, 8, 8], strides = [1, 1, 1]} : vector<2x8x8xi1> to vector<1x8x8xi1>
    %77 = vector.shape_cast %76 : vector<1x8x8xi1> to vector<8x8xi1>
    %78 = vector.shape_cast %77 : vector<8x8xi1> to vector<1x8x8xi1>
    %cst_20 = arith.constant -1.000000e+30 : f32
    %79 = vector.shape_cast %78 : vector<1x8x8xi1> to vector<1x8x8xi1>
    %80 = vector.broadcast %79 : vector<1x8x8xi1> to vector<4x8x8xi1>
    %81 = vector.broadcast %cst_20 : f32 to vector<4x8x8xf32>
    %82 = arith.select %80, %81, %75 : vector<4x8x8xi1>, vector<4x8x8xf32>
    %cst_21 = arith.constant dense<0xFF800000> : vector<4x8xf32>
    %83 = vector.multi_reduction <maximumf>, %82, %cst_21 [2] : vector<4x8x8xf32> to vector<4x8xf32>
    %84 = vector.shape_cast %83 : vector<4x8xf32> to vector<4x8x1xf32>
    %85 = vector.broadcast %84 : vector<4x8x1xf32> to vector<4x8x8xf32>
    %86 = arith.subf %82, %85 : vector<4x8x8xf32>
    %87 = math.exp %86 : vector<4x8x8xf32>
    %cst_22 = arith.constant dense<0.000000e+00> : vector<4x8xf32>
    %88 = vector.multi_reduction <add>, %87, %cst_22 [2] : vector<4x8x8xf32> to vector<4x8xf32>
    %89 = vector.shape_cast %88 : vector<4x8xf32> to vector<4x8x1xf32>
    %90 = tpu.reciprocal %89 {approx = true} : vector<4x8x1xf32> -> vector<4x8x1xf32>
    %91 = vector.broadcast %90 : vector<4x8x1xf32> to vector<4x8x8xf32>
    %92 = arith.mulf %87, %91 : vector<4x8x8xf32>
    %cst_23 = arith.constant 0.000000e+00 : f32
    %93 = vector.shape_cast %78 : vector<1x8x8xi1> to vector<1x8x8xi1>
    %94 = vector.broadcast %93 : vector<1x8x8xi1> to vector<4x8x8xi1>
    %95 = vector.broadcast %cst_23 : f32 to vector<4x8x8xf32>
    %96 = arith.select %94, %95, %92 : vector<4x8x8xi1>, vector<4x8x8xf32>
    "tpu.trace_start"() <{level = 10 : i32, message = "hts,hsd->htd"}> : () -> ()
    %cst_24 = arith.constant dense<0.000000e+00> : vector<4x8x8xf32>
    %97 = tpu.matmul %96, %68, %cst_24 {dimension_numbers = #tpu.dot_dimension_numbers<[2], [1], [1], [2], [0, 0, 0, 1, 1, 2], [0], [0]>} : vector<4x8x8xf32>, vector<4x8x8xf32>, vector<4x8x8xf32> -> vector<4x8x8xf32>
    "tpu.trace_stop"() : () -> ()
    %98 = vector.extract_strided_slice %97 {offsets = [0, 0, 0], sizes = [1, 8, 8], strides = [1, 1, 1]} : vector<4x8x8xf32> to vector<1x8x8xf32>
    %99 = vector.shape_cast %98 : vector<1x8x8xf32> to vector<8x8xf32>
    %100 = vector.extract_strided_slice %97 {offsets = [1, 0, 0], sizes = [1, 8, 8], strides = [1, 1, 1]} : vector<4x8x8xf32> to vector<1x8x8xf32>
    %101 = vector.shape_cast %100 : vector<1x8x8xf32> to vector<8x8xf32>
    %102 = vector.extract_strided_slice %97 {offsets = [2, 0, 0], sizes = [1, 8, 8], strides = [1, 1, 1]} : vector<4x8x8xf32> to vector<1x8x8xf32>
    %103 = vector.shape_cast %102 : vector<1x8x8xf32> to vector<8x8xf32>
    %104 = vector.extract_strided_slice %97 {offsets = [3, 0, 0], sizes = [1, 8, 8], strides = [1, 1, 1]} : vector<4x8x8xf32> to vector<1x8x8xf32>
    %105 = vector.shape_cast %104 : vector<1x8x8xf32> to vector<8x8xf32>
    %106 = tpu.concatenate %99, %101, %103, %105 in 1 : vector<8x8xf32>, vector<8x8xf32>, vector<8x8xf32>, vector<8x8xf32> -> vector<8x32xf32>
    %107 = vector.extract_strided_slice %43 {offsets = [0, 8, 0], sizes = [4, 8, 8], strides = [1, 1, 1]} : vector<4x16x8xf32> to vector<4x8x8xf32>
    %108 = vector.extract_strided_slice %52 {offsets = [0, 8, 0], sizes = [4, 8, 8], strides = [1, 1, 1]} : vector<4x16x8xf32> to vector<4x8x8xf32>
    %109 = vector.extract_strided_slice %61 {offsets = [0, 8, 0], sizes = [4, 8, 8], strides = [1, 1, 1]} : vector<4x16x8xf32> to vector<4x8x8xf32>
    "tpu.trace_start"() <{level = 10 : i32, message = "htd,hsd->hts"}> : () -> ()
    %cst_25 = arith.constant dense<0.000000e+00> : vector<4x8x8xf32>
    %110 = tpu.matmul %107, %108, %cst_25 {dimension_numbers = #tpu.dot_dimension_numbers<[2], [2], [1], [1], [0, 0, 0, 1, 1, 1], [0], [0]>} : vector<4x8x8xf32>, vector<4x8x8xf32>, vector<4x8x8xf32> -> vector<4x8x8xf32>
    "tpu.trace_stop"() : () -> ()
    %111 = tpu.transpose %107, [1, 0, 2] : vector<4x8x8xf32> -> vector<8x4x8xf32>
    %cst_26 = arith.constant dense<0.000000e+00> : vector<8x4x8xf32>
    %112 = tpu.matmul %111, %62, %cst_26 {dimension_numbers = #tpu.dot_dimension_numbers<[2], [1], [1], [2], [0, 0, 0, 1, 1, 2], [0], [0]>} : vector<8x4x8xf32>, vector<8x8x8xf32>, vector<8x4x8xf32> -> vector<8x4x8xf32>
    %113 = tpu.transpose %112, [1, 0, 2] : vector<8x4x8xf32> -> vector<4x8x8xf32>
    %114 = arith.addf %110, %113 : vector<4x8x8xf32>
    %cst_27 = arith.constant 0.353553385 : f32
    %115 = vector.broadcast %cst_27 : f32 to vector<4x8x8xf32>
    %116 = arith.mulf %114, %115 : vector<4x8x8xf32>
    %117 = vector.extract_strided_slice %65 {offsets = [1, 0, 0], sizes = [1, 8, 8], strides = [1, 1, 1]} : vector<2x8x8xi1> to vector<1x8x8xi1>
    %118 = vector.shape_cast %117 : vector<1x8x8xi1> to vector<8x8xi1>
    %119 = vector.shape_cast %118 : vector<8x8xi1> to vector<1x8x8xi1>
    %cst_28 = arith.constant -1.000000e+30 : f32
    %120 = vector.shape_cast %119 : vector<1x8x8xi1> to vector<1x8x8xi1>
    %121 = vector.broadcast %120 : vector<1x8x8xi1> to vector<4x8x8xi1>
    %122 = vector.broadcast %cst_28 : f32 to vector<4x8x8xf32>
    %123 = arith.select %121, %122, %116 : vector<4x8x8xi1>, vector<4x8x8xf32>
    %cst_29 = arith.constant dense<0xFF800000> : vector<4x8xf32>
    %124 = vector.multi_reduction <maximumf>, %123, %cst_29 [2] : vector<4x8x8xf32> to vector<4x8xf32>
    %125 = vector.shape_cast %124 : vector<4x8xf32> to vector<4x8x1xf32>
    %126 = vector.broadcast %125 : vector<4x8x1xf32> to vector<4x8x8xf32>
    %127 = arith.subf %123, %126 : vector<4x8x8xf32>
    %128 = math.exp %127 : vector<4x8x8xf32>
    %cst_30 = arith.constant dense<0.000000e+00> : vector<4x8xf32>
    %129 = vector.multi_reduction <add>, %128, %cst_30 [2] : vector<4x8x8xf32> to vector<4x8xf32>
    %130 = vector.shape_cast %129 : vector<4x8xf32> to vector<4x8x1xf32>
    %131 = tpu.reciprocal %130 {approx = true} : vector<4x8x1xf32> -> vector<4x8x1xf32>
    %132 = vector.broadcast %131 : vector<4x8x1xf32> to vector<4x8x8xf32>
    %133 = arith.mulf %128, %132 : vector<4x8x8xf32>
    %cst_31 = arith.constant 0.000000e+00 : f32
    %134 = vector.shape_cast %119 : vector<1x8x8xi1> to vector<1x8x8xi1>
    %135 = vector.broadcast %134 : vector<1x8x8xi1> to vector<4x8x8xi1>
    %136 = vector.broadcast %cst_31 : f32 to vector<4x8x8xf32>
    %137 = arith.select %135, %136, %133 : vector<4x8x8xi1>, vector<4x8x8xf32>
    "tpu.trace_start"() <{level = 10 : i32, message = "hts,hsd->htd"}> : () -> ()
    %cst_32 = arith.constant dense<0.000000e+00> : vector<4x8x8xf32>
    %138 = tpu.matmul %137, %109, %cst_32 {dimension_numbers = #tpu.dot_dimension_numbers<[2], [1], [1], [2], [0, 0, 0, 1, 1, 2], [0], [0]>} : vector<4x8x8xf32>, vector<4x8x8xf32>, vector<4x8x8xf32> -> vector<4x8x8xf32>
    "tpu.trace_stop"() : () -> ()
    %139 = vector.extract_strided_slice %138 {offsets = [0, 0, 0], sizes = [1, 8, 8], strides = [1, 1, 1]} : vector<4x8x8xf32> to vector<1x8x8xf32>
    %140 = vector.shape_cast %139 : vector<1x8x8xf32> to vector<8x8xf32>
    %141 = vector.extract_strided_slice %138 {offsets = [1, 0, 0], sizes = [1, 8, 8], strides = [1, 1, 1]} : vector<4x8x8xf32> to vector<1x8x8xf32>
    %142 = vector.shape_cast %141 : vector<1x8x8xf32> to vector<8x8xf32>
    %143 = vector.extract_strided_slice %138 {offsets = [2, 0, 0], sizes = [1, 8, 8], strides = [1, 1, 1]} : vector<4x8x8xf32> to vector<1x8x8xf32>
    %144 = vector.shape_cast %143 : vector<1x8x8xf32> to vector<8x8xf32>
    %145 = vector.extract_strided_slice %138 {offsets = [3, 0, 0], sizes = [1, 8, 8], strides = [1, 1, 1]} : vector<4x8x8xf32> to vector<1x8x8xf32>
    %146 = vector.shape_cast %145 : vector<1x8x8xf32> to vector<8x8xf32>
    %147 = tpu.concatenate %140, %142, %144, %146 in 1 : vector<8x8xf32>, vector<8x8xf32>, vector<8x8xf32>, vector<8x8xf32> -> vector<8x32xf32>
    %148 = tpu.concatenate %106, %147 in 0 : vector<8x32xf32>, vector<8x32xf32> -> vector<16x32xf32>
    %cst_33 = arith.constant dense<0.000000e+00> : vector<16x32xf32>
    %149 = tpu.matmul %148, %3, %cst_33 {dimension_numbers = #tpu.dot_dimension_numbers<[1], [0], [0], [1], [0, 0, 1, 1], [], []>} : vector<16x32xf32>, vector<32x32xf32>, vector<16x32xf32> -> vector<16x32xf32>
    %150 = vector.broadcast %7 : vector<1x32xf32> to vector<16x32xf32>
    %151 = arith.addf %149, %150 : vector<16x32xf32>
    %c0_34 = arith.constant 0 : index
    %c0_35 = arith.constant 0 : index
    %152 = vector.load %arg6[%c0_34, %c0_35] : memref<16x32xf32, #tpu.memory_space<vmem>>, vector<16x32xf32>
    tpu.vector_store %arg6[%c0_34, %c0_35], %151 {strides = array<i32>} : memref<16x32xf32, #tpu.memory_space<vmem>>, vector<16x32xf32>,
    return
  }
  func.func @transform_0(%arg0: i32) -> (i32, i32) {
    %c0_i32 = arith.constant 0 : i32
    %c0_i32_0 = arith.constant 0 : i32
    %c0_i32_1 = arith.constant 0 : i32
    return %c0_i32, %c0_i32_0 : i32, i32
  }
  func.func @transform_1(%arg0: i32) -> (i32, i32, i32) {
    %c0_i32 = arith.constant 0 : i32
    %c0_i32_0 = arith.constant 0 : i32
    %c0_i32_1 = arith.constant 0 : i32
    %c0_i32_2 = arith.constant 0 : i32
    return %c0_i32, %c0_i32_0, %c0_i32_1 : i32, i32, i32
  }
  func.func @transform_2(%arg0: i32) -> (i32, i32, i32) {
    %c0_i32 = arith.constant 0 : i32
    %c0_i32_0 = arith.constant 0 : i32
    %c0_i32_1 = arith.constant 0 : i32
    %c0_i32_2 = arith.constant 0 : i32
    return %c0_i32, %c0_i32_0, %c0_i32_1 : i32, i32, i32
  }
  func.func @transform_3(%arg0: i32) -> (i32, i32) {
    %c0_i32 = arith.constant 0 : i32
    %c0_i32_0 = arith.constant 0 : i32
    %c0_i32_1 = arith.constant 0 : i32
    return %c0_i32, %c0_i32_0 : i32, i32
  }
  func.func @transform_4(%arg0: i32) -> (i32, i32) {
    %c0_i32 = arith.constant 0 : i32
    %c0_i32_0 = arith.constant 0 : i32
    %c0_i32_1 = arith.constant 0 : i32
    return %c0_i32, %c0_i32_0 : i32, i32
  }
  func.func @transform_5(%arg0: i32) -> (i32, i32) {
    %c0_i32 = arith.constant 0 : i32
    %c0_i32_0 = arith.constant 0 : i32
    %c0_i32_1 = arith.constant 0 : i32
    return %c0_i32, %c0_i32_0 : i32, i32
  }
}

</mosaic_0001>

<llo_original>
// kernel: tpu_custom_call.1
$region0: #{tpu_custom_call.1}
  #allocation0 [shape = 'u32[]', space=smem, size = 0x4, offset = 0x4, fixed_abs, tag = 'smem constant byte address 0x4 - core index']
  #allocation1 [shape = 'u32[144,128]{1,0:T(1,128)}', space=vmem, size = 0x12000, scoped, tag = 'internal scratch']
  %s0 = inlined_call_operand.hbm [shape: f32[16,32], index: 0, kind: input, shape index: {}]
  %s1 = inlined_call_operand.hbm [shape: f32[8,8,8], index: 1, kind: input, shape index: {}]
  %s2 = inlined_call_operand.hbm [shape: f32[2,8,8], index: 2, kind: input, shape index: {}]
  %s3 = inlined_call_operand.hbm [shape: f32[32,128], index: 3, kind: input, shape index: {}]
  %s4 = inlined_call_operand.vmem [shape: f32[4,96], index: 4, kind: input, shape index: {}]
  %s5 = inlined_call_operand.hbm [shape: f32[16,32], index: 5, kind: output, shape index: {}]
  %s6 = sld [smem:[#allocation0]]
  $region46: #{tpu_custom_call.1} parent=0
    _
  %s8 = ssub.s32 1, %s6
  %s9 = scalar_select 0, %s8, %s6
  $region1: #{tpu_custom_call.1} parent=0
    #allocation2 [shape = 'u8[8192]{0}', space=vmem, size = 0x2000, scoped, tag = 'input window, operand 0, single buffered']
    #allocation3 [shape = 's32[1]{0}', space=sflag, size = 0x4, scoped, tag = 'scoped memory for tpu_custom_call.1']
    #allocation4 [shape = 's32[1]{0}', space=sflag, size = 0x4, scoped, tag = 'scoped memory for tpu_custom_call.1']
    #allocation5 [shape = 'u8[32768]{0}', space=vmem, size = 0x8000, scoped, tag = 'input window, operand 1, single buffered']
    #allocation6 [shape = 's32[1]{0}', space=sflag, size = 0x4, scoped, tag = 'scoped memory for tpu_custom_call.1']
    #allocation7 [shape = 'u8[8192]{0}', space=vmem, size = 0x2000, scoped, tag = 'input window, operand 2, single buffered']
    #allocation8 [shape = 'u8[16384]{0}', space=vmem, size = 0x4000, scoped, tag = 'input window, operand 3, single buffered']
    #allocation9 [shape = 's32[1]{0}', space=sflag, size = 0x4, scoped, tag = 'scoped memory for tpu_custom_call.1']
    #allocation10 [shape = 'u8[8192]{0}', space=vmem, size = 0x2000, scoped, tag = 'output window, operand 0, single buffered']
    %10 = vsyncpa [#allocation3], 0
    %11 = vsyncpa [#allocation6], 0
    %12 = vsyncpa [#allocation9], 0
    %13 = vsyncpa [#allocation4], 0
    // Predicated region
    $region2: #{tpu_custom_call.1} parent=1 // pred_check
      _
    $region3: #{tpu_custom_call.1} parent=1 // pred_check_branch
      %15 = sbr.rel (0) target = $region5
    $region4: #{tpu_custom_call.1} parent=1 // pred_region
      %s17 = ssub.s32 256, 256
      %18 = vsyncadd [#allocation3], %s17
      %s19 = sshll.u32 [#allocation2], 4
      %s20 = int_to_ptr.vmem [resolvable:$true] %s19
      %25 = dma.hbm_to_vmem [thread:$0]  %s0, 256, %s20, [#allocation3], 128, 128, 8
    $region5: #{tpu_custom_call.1} parent=1 // pred_fallthru
      _
    // Predicated region
    $region6: #{tpu_custom_call.1} parent=1 // pred_check
      _
    $region7: #{tpu_custom_call.1} parent=1 // pred_check_branch
      %27 = sbr.rel (0) target = $region9
    $region8: #{tpu_custom_call.1} parent=1 // pred_region
      %s29 = ssub.s32 1024, 1024
      %30 = vsyncadd [#allocation6], %s29
      %s31 = sshll.u32 [#allocation5], 4
      %s32 = int_to_ptr.vmem [resolvable:$true] %s31
      %37 = dma.hbm_to_vmem [thread:$0]  %s1, 1024, %s32, [#allocation6], 128, 128, 8
    $region9: #{tpu_custom_call.1} parent=1 // pred_fallthru
      _
    // Predicated region
    $region10: #{tpu_custom_call.1} parent=1 // pred_check
      _
    $region11: #{tpu_custom_call.1} parent=1 // pred_check_branch
      %39 = sbr.rel (0) target = $region13
    $region12: #{tpu_custom_call.1} parent=1 // pred_region
      %s41 = ssub.s32 256, 256
      %42 = vsyncadd [#allocation6], %s41
      %s43 = sshll.u32 [#allocation7], 4
      %s44 = int_to_ptr.vmem [resolvable:$true] %s43
      %49 = dma.hbm_to_vmem [thread:$0]  %s2, 256, %s44, [#allocation6], 128, 128, 8
    $region13: #{tpu_custom_call.1} parent=1 // pred_fallthru
      _
    // Predicated region
    $region14: #{tpu_custom_call.1} parent=1 // pred_check
      _
    $region15: #{tpu_custom_call.1} parent=1 // pred_check_branch
      %51 = sbr.rel (0) target = $region17
    $region16: #{tpu_custom_call.1} parent=1 // pred_region
      %s53 = ssub.s32 512, 512
      %54 = vsyncadd [#allocation9], %s53
      %s55 = sshll.u32 [#allocation8], 4
      %s56 = int_to_ptr.vmem [resolvable:$true] %s55
      %61 = dma.hbm_to_vmem [thread:$0]  %s3, 512, %s56, [#allocation9], 128, 128, 8
    $region17: #{tpu_custom_call.1} parent=1 // pred_fallthru
      _
    // Predicated region
    $region18: #{tpu_custom_call.1} parent=1 // pred_check
      _
    $region19: #{tpu_custom_call.1} parent=1 // pred_check_branch
      %63 = sbr.rel (0) target = $region21
    $region20: #{tpu_custom_call.1} parent=1 // pred_region
      _
    $region21: #{tpu_custom_call.1} parent=1 // pred_fallthru
      _
    // Predicated region
    $region22: #{tpu_custom_call.1} parent=1 // pred_check
      _
    $region23: #{tpu_custom_call.1} parent=1 // pred_check_branch
      %65 = sbr.rel (0) target = $region25
    $region24: #{tpu_custom_call.1} parent=1 // pred_region
      %66 = dma.done [#allocation3], 256
    $region25: #{tpu_custom_call.1} parent=1 // pred_fallthru
      _
    // Predicated region
    $region26: #{tpu_custom_call.1} parent=1 // pred_check
      _
    $region27: #{tpu_custom_call.1} parent=1 // pred_check_branch
      %68 = sbr.rel (0) target = $region29
    $region28: #{tpu_custom_call.1} parent=1 // pred_region
      %69 = dma.done [#allocation6], 1024
    $region29: #{tpu_custom_call.1} parent=1 // pred_fallthru
      _
    // Predicated region
    $region30: #{tpu_custom_call.1} parent=1 // pred_check
      _
    $region31: #{tpu_custom_call.1} parent=1 // pred_check_branch
      %71 = sbr.rel (0) target = $region33
    $region32: #{tpu_custom_call.1} parent=1 // pred_region
      %72 = dma.done [#allocation6], 256
    $region33: #{tpu_custom_call.1} parent=1 // pred_fallthru
      _
    // Predicated region
    $region34: #{tpu_custom_call.1} parent=1 // pred_check
      _
    $region35: #{tpu_custom_call.1} parent=1 // pred_check_branch
      %74 = sbr.rel (0) target = $region37
    $region36: #{tpu_custom_call.1} parent=1 // pred_region
      %75 = dma.done [#allocation9], 512
    $region37: #{tpu_custom_call.1} parent=1 // pred_fallthru
      _
    %v76 = vld [vmem:[#allocation2] sm:$0xff]
    %v77 = vld [vmem:[#allocation2 + $0x8] sm:$0xff]
    %v78 = vld [vmem:[#allocation8] sm:$0xff]
    %v79 = vld [vmem:[#allocation8 + $0x8] sm:$0xff]
    %v80 = vld [vmem:[#allocation8 + $0x10] sm:$0xff]
    %v81 = vld [vmem:[#allocation8 + $0x18] sm:$0xff]
    %v82 = vld [vmem:[%s4] sm:$0xf]
    %vm83 = vcmask 261120
    %v84 = vsel %vm83, %v76, 0.0
    %85 = vadd.xlane.f32.xlu0 %v84
    %v86 = vpop.xlane.xlu0 %85
    %v87 = vsel %vm83, %v77, 0.0
    %88 = vadd.xlane.f32.xlu0 %v87
    %v89 = vpop.xlane.xlu0 %88
    %v90 = vrcp.pop 32.0
    %v91 = vmul.f32 %v86, %v90
    %v92 = vmul.f32 %v89, %v90
    %v93 = vsub.f32 %v76, %v91
    %v94 = vsub.f32 %v77, %v92
    %v95 = vmul.f32 %v93, %v93
    %v96 = vmul.f32 %v94, %v94
    %v97 = vsel %vm83, %v95, 0.0
    %98 = vadd.xlane.f32.xlu0 %v97
    %v99 = vpop.xlane.xlu0 %98
    %v100 = vsel %vm83, %v96, 0.0
    %101 = vadd.xlane.f32.xlu0 %v100
    %v102 = vpop.xlane.xlu0 %101
    %v103 = vmul.f32 %v99, %v90
    %v104 = vmul.f32 %v102, %v90
    %v105 = vadd.f32 %v103, 1e-05
    %v106 = vadd.f32 %v104, 1e-05
    %v107 = vrsqrt.pop %v105
    %v108 = vrsqrt.pop %v106
    %v109 = vmul.f32 %v93, %v107
    %v110 = vmul.f32 %v94, %v108
    %v111 = vlaneseq
    %v112 = vshrl.u32 %v111, 7
    %v113 = vsub.s32 0, %v112
    %v114 = vrot.slane %v82, %v113
    %v115 = vmul.f32 %v109, %v114
    %v116 = vmul.f32 %v110, %v114
    %v117 = vlaneseq
    %v118 = vshrl.u32 %v117, 7
    %v119 = vsub.s32 1, %v118
    %v120 = vrot.slane %v82, %v119
    %v121 = vadd.f32 %v115, %v120
    %v122 = vadd.f32 %v116, %v120
    %v123 = vlaneseq
    %v124 = vshrl.u32 %v123, 7
    %v125 = vsub.s32 3, %v124
    %v126 = vrot.slane %v82, %v125
    %v128 = vsel %vm83, %v121, 0
    %v131 = vsel %vm83, %v122, 0
    %133 = vmatprep.subr.mxu0 0.0
    %134 = vmatpush1.msra.mxu0 %v78
    %135 = vmatprep.subr.mxu0 0.0
    %136 = vmatpush1.msra.mxu0 %v79
    %137 = vmatprep.subr.mxu0 0.0
    %138 = vmatpush1.msra.mxu0 %v80
    %139 = vmatprep.subr.mxu0 0.0
    %140 = vmatpush1.msra.mxu0 %v81
    %141 = vmatprep.subr.mxu0 0.0
    %142 = vmatpush1.msra.mxu0 0.0
    %143 = vmatprep.subr.mxu0 0.0
    %144 = vmatpush1.msra.mxu0 0.0
    %145 = vmatprep.subr.mxu0 0.0
    %146 = vmatpush1.msra.mxu0 0.0
    %147 = vmatprep.subr.mxu0 0.0
    %148 = vmatpush1.msra.mxu0 0.0
    %149 = vmatprep.subr.mxu0 0.0
    %150 = vmatpush1.msra.mxu0 0.0
    %151 = vmatprep.subr.mxu0 0.0
    %152 = vmatpush1.msra.mxu0 0.0
    %153 = vmatprep.subr.mxu0 0.0
    %154 = vmatpush1.msra.mxu0 0.0
    %155 = vmatprep.subr.mxu0 0.0
    %156 = vmatpush1.msra.mxu0 0.0
    %157 = vmatprep.subr.mxu0 0.0
    %158 = vmatpush1.msra.mxu0 0.0
    %159 = vmatprep.subr.mxu0 0.0
    %160 = vmatpush1.msra.mxu0 0.0
    %161 = vmatprep.subr.mxu0 0.0
    %162 = vmatpush1.msra.mxu0 0.0
    %163 = vmatprep.subr.mxu0 0.0
    %164 = vmatpush1.msra.mxu0 0.0
    %165 = vmatprep.subr.mxu0 0.0
    %166 = vmatpush1.msra.mxu0 0.0
    %167 = vmatprep.subr.mxu0 0.0
    %168 = vmatpush1.msra.mxu0 0.0
    %169 = vmatprep.subr.mxu0 0.0
    %170 = vmatpush1.msra.mxu0 0.0
    %171 = vmatprep.subr.mxu0 0.0
    %172 = vmatpush1.msra.mxu0 0.0
    %173 = vmatprep.subr.mxu0 0.0
    %174 = vmatpush1.msra.mxu0 0.0
    %175 = vmatprep.subr.mxu0 0.0
    %176 = vmatpush1.msra.mxu0 0.0
    %177 = vmatprep.subr.mxu0 0.0
    %178 = vmatpush1.msra.mxu0 0.0
    %179 = vmatprep.subr.mxu0 0.0
    %180 = vmatpush1.msra.mxu0 0.0
    %181 = vmatprep.subr.mxu0 0.0
    %182 = vmatpush1.msra.mxu0 0.0
    %183 = vmatprep.subr.mxu0 0.0
    %184 = vmatpush1.msra.mxu0 0.0
    %185 = vmatprep.subr.mxu0 0.0
    %186 = vmatpush1.msra.mxu0 0.0
    %187 = vmatprep.subr.mxu0 0.0
    %188 = vmatpush1.msra.mxu0 0.0
    %189 = vmatprep.subr.mxu0 0.0
    %190 = vmatpush1.msra.mxu0 0.0
    %191 = vmatprep.subr.mxu0 0.0
    %192 = vmatpush1.msra.mxu0 0.0
    %193 = vmatprep.subr.mxu0 0.0
    %194 = vmatpush1.msra.mxu0 0.0
    %195 = vmatprep.subr.mxu0 0.0
    %196 = vmatpush1.msra.mxu0 0.0
    %197 = vmatprep.mubr.f32.mxu0 0.0
    %198 = vmatmul.mubr.f32.gmra.mrb[0].mxu0 %v128
    %v199 = vpop.f32.mrb[0].mxu0
    %v200 = vadd.f32 %v126, %v199
    %v201 = vpop.f32.mrb[0].mxu0
    %202 = vmatprep.mubr.f32.mxu0 0.0
    %203 = vmatmul.mubr.f32.gmra.mrb[0].mxu0 %v131
    %v204 = vpop.f32.mrb[0].mxu0
    %v205 = vadd.f32 %v126, %v204
    %v206 = vpop.f32.mrb[0].mxu0
    %207 = vdwg.mxu0
    %210 = vrot.lane.b32.xlu0 %v200, 120
    %v211 = vpop.permute.xlu0 %210
    %212 = vrot.lane.b32.xlu0 %v205, 120
    %v213 = vpop.permute.xlu0 %212
    %216 = vrot.lane.b32.xlu0 %v200, 112
    %v217 = vpop.permute.xlu0 %216
    %218 = vrot.lane.b32.xlu0 %v205, 112
    %v219 = vpop.permute.xlu0 %218
    %222 = vrot.lane.b32.xlu0 %v200, 104
    %v223 = vpop.permute.xlu0 %222
    %224 = vrot.lane.b32.xlu0 %v205, 104
    %v225 = vpop.permute.xlu0 %224
    %v228 = vld [vmem:[#allocation5] sm:$0xff]
    %v229 = vld [vmem:[#allocation5 + $0x8] sm:$0xff]
    %v230 = vld [vmem:[#allocation5 + $0x10] sm:$0xff]
    %v231 = vld [vmem:[#allocation5 + $0x18] sm:$0xff]
    %v232 = vld [vmem:[#allocation5 + $0x20] sm:$0xff]
    %v233 = vld [vmem:[#allocation5 + $0x28] sm:$0xff]
    %v234 = vld [vmem:[#allocation5 + $0x30] sm:$0xff]
    %v235 = vld [vmem:[#allocation5 + $0x38] sm:$0xff]
    %v236 = vld [vmem:[#allocation7] sm:$0xff]
    %v237 = vld [vmem:[#allocation7 + $0x8] sm:$0xff]
    %vm238 = vcmp.eq.f32.partialorder %v236, 0.0
    %vm239 = vcmp.eq.f32.partialorder %v237, 0.0
    %v240 = vcombine.low %v200, %v217
    %v241 = vcombine.high %v200, %v217
    %v243 = vunpack.c.l.s4 1983009808
    %v244 = vunpack.c.0.s8 %v243
    %v245 = vlaneseq
    %v246 = vshrl.u32 %v245, 7
    %v247 = vsub.s32 %v244, %v246
    %v248 = vrot.slane %v240, %v247
    %v250 = vunpack.c.l.s4 1983009808
    %v251 = vunpack.c.0.s8 %v250
    %v252 = vlaneseq
    %v253 = vshrl.u32 %v252, 7
    %v254 = vsub.s32 %v251, %v253
    %v255 = vrot.slane %v241, %v254
    %v256 = vcombine.low %v211, %v223
    %v257 = vcombine.high %v211, %v223
    %v259 = vunpack.c.l.s4 1983009808
    %v260 = vunpack.c.0.s8 %v259
    %v261 = vlaneseq
    %v262 = vshrl.u32 %v261, 7
    %v263 = vsub.s32 %v260, %v262
    %v264 = vrot.slane %v256, %v263
    %v266 = vunpack.c.l.s4 1983009808
    %v267 = vunpack.c.0.s8 %v266
    %v268 = vlaneseq
    %v269 = vshrl.u32 %v268, 7
    %v270 = vsub.s32 %v267, %v269
    %v271 = vrot.slane %v257, %v270
    %v272 = vcombine.low %v248, %v264
    %v273 = vcombine.high %v248, %v264
    %v275 = vunpack.c.l.s4 1934713408
    %v276 = vunpack.c.0.s8 %v275
    %v277 = vlaneseq
    %v278 = vshrl.u32 %v277, 7
    %v279 = vsub.s32 %v276, %v278
    %v280 = vrot.slane %v272, %v279
    %v282 = vunpack.c.l.s4 1934713408
    %v283 = vunpack.c.0.s8 %v282
    %v284 = vlaneseq
    %v285 = vshrl.u32 %v284, 7
    %v286 = vsub.s32 %v283, %v285
    %v287 = vrot.slane %v273, %v286
    %v288 = vcombine.low %v255, %v271
    %v289 = vcombine.high %v255, %v271
    %v291 = vunpack.c.l.s4 1934713408
    %v292 = vunpack.c.0.s8 %v291
    %v293 = vlaneseq
    %v294 = vshrl.u32 %v293, 7
    %v295 = vsub.s32 %v292, %v294
    %v296 = vrot.slane %v288, %v295
    %v298 = vunpack.c.l.s4 1934713408
    %v299 = vunpack.c.0.s8 %v298
    %v300 = vlaneseq
    %v301 = vshrl.u32 %v300, 7
    %v302 = vsub.s32 %v299, %v301
    %v303 = vrot.slane %v289, %v302
    %v304 = vcombine.high %v280, 0.0
    %v305 = vcombine.high %v287, 0.0
    %v306 = vcombine.high %v296, 0.0
    %v307 = vcombine.high %v303, 0.0
    %vm308 = vcmask 64512
    %v310 = vsel %vm308, %v280, 0
    %312 = vmatprep.subr.mxu0 0.0
    %313 = vmatpush1.msra.mxu0 %v228
    %314 = vmatprep.subr.mxu0 0.0
    %315 = vmatpush1.msra.mxu0 0.0
    %316 = vmatprep.subr.mxu0 0.0
    %317 = vmatpush1.msra.mxu0 0.0
    %318 = vmatprep.subr.mxu0 0.0
    %319 = vmatpush1.msra.mxu0 0.0
    %320 = vmatprep.subr.mxu0 0.0
    %321 = vmatpush1.msra.mxu0 0.0
    %322 = vmatprep.subr.mxu0 0.0
    %323 = vmatpush1.msra.mxu0 0.0
    %324 = vmatprep.subr.mxu0 0.0
    %325 = vmatpush1.msra.mxu0 0.0
    %326 = vmatprep.subr.mxu0 0.0
    %327 = vmatpush1.msra.mxu0 0.0
    %328 = vmatprep.subr.mxu0 0.0
    %329 = vmatpush1.msra.mxu0 0.0
    %330 = vmatprep.subr.mxu0 0.0
    %331 = vmatpush1.msra.mxu0 0.0
    %332 = vmatprep.subr.mxu0 0.0
    %333 = vmatpush1.msra.mxu0 0.0
    %334 = vmatprep.subr.mxu0 0.0
    %335 = vmatpush1.msra.mxu0 0.0
    %336 = vmatprep.subr.mxu0 0.0
    %337 = vmatpush1.msra.mxu0 0.0
    %338 = vmatprep.subr.mxu0 0.0
    %339 = vmatpush1.msra.mxu0 0.0
    %340 = vmatprep.subr.mxu0 0.0
    %341 = vmatpush1.msra.mxu0 0.0
    %342 = vmatprep.subr.mxu0 0.0
    %343 = vmatpush1.msra.mxu0 0.0
    %344 = vmatprep.subr.mxu0 0.0
    %345 = vmatpush1.msra.mxu0 0.0
    %346 = vmatprep.subr.mxu0 0.0
    %347 = vmatpush1.msra.mxu0 0.0
    %348 = vmatprep.subr.mxu0 0.0
    %349 = vmatpush1.msra.mxu0 0.0
    %350 = vmatprep.subr.mxu0 0.0
    %351 = vmatpush1.msra.mxu0 0.0
    %352 = vmatprep.subr.mxu0 0.0
    %353 = vmatpush1.msra.mxu0 0.0
    %354 = vmatprep.subr.mxu0 0.0
    %355 = vmatpush1.msra.mxu0 0.0
    %356 = vmatprep.subr.mxu0 0.0
    %357 = vmatpush1.msra.mxu0 0.0
    %358 = vmatprep.subr.mxu0 0.0
    %359 = vmatpush1.msra.mxu0 0.0
    %360 = vmatprep.subr.mxu0 0.0
    %361 = vmatpush1.msra.mxu0 0.0
    %362 = vmatprep.subr.mxu0 0.0
    %363 = vmatpush1.msra.mxu0 0.0
    %364 = vmatprep.subr.mxu0 0.0
    %365 = vmatpush1.msra.mxu0 0.0
    %366 = vmatprep.subr.mxu0 0.0
    %367 = vmatpush1.msra.mxu0 0.0
    %368 = vmatprep.subr.mxu0 0.0
    %369 = vmatpush1.msra.mxu0 0.0
    %370 = vmatprep.subr.mxu0 0.0
    %371 = vmatpush1.msra.mxu0 0.0
    %372 = vmatprep.subr.mxu0 0.0
    %373 = vmatpush1.msra.mxu0 0.0
    %374 = vmatprep.subr.mxu0 0.0
    %375 = vmatpush1.msra.mxu0 0.0
    %376 = vmatprep.mubr.f32.mxu0 0.0
    %377 = vmatmul.mubr.f32.gmra.mrb[0].mxu0 %v310
    %v378 = vpop.f32.mrb[0].mxu0
    %v379 = vadd.f32 0.0, %v378
    %v380 = vpop.f32.mrb[0].mxu0
    %381 = vdwg.mxu0
    %v383 = vsel %vm308, %v304, 0
    %385 = vmatprep.subr.mxu0 0.0
    %386 = vmatpush1.msra.mxu0 %v229
    %387 = vmatprep.subr.mxu0 0.0
    %388 = vmatpush1.msra.mxu0 0.0
    %389 = vmatprep.subr.mxu0 0.0
    %390 = vmatpush1.msra.mxu0 0.0
    %391 = vmatprep.subr.mxu0 0.0
    %392 = vmatpush1.msra.mxu0 0.0
    %393 = vmatprep.subr.mxu0 0.0
    %394 = vmatpush1.msra.mxu0 0.0
    %395 = vmatprep.subr.mxu0 0.0
    %396 = vmatpush1.msra.mxu0 0.0
    %397 = vmatprep.subr.mxu0 0.0
    %398 = vmatpush1.msra.mxu0 0.0
    %399 = vmatprep.subr.mxu0 0.0
    %400 = vmatpush1.msra.mxu0 0.0
    %401 = vmatprep.subr.mxu0 0.0
    %402 = vmatpush1.msra.mxu0 0.0
    %403 = vmatprep.subr.mxu0 0.0
    %404 = vmatpush1.msra.mxu0 0.0
    %405 = vmatprep.subr.mxu0 0.0
    %406 = vmatpush1.msra.mxu0 0.0
    %407 = vmatprep.subr.mxu0 0.0
    %408 = vmatpush1.msra.mxu0 0.0
    %409 = vmatprep.subr.mxu0 0.0
    %410 = vmatpush1.msra.mxu0 0.0
    %411 = vmatprep.subr.mxu0 0.0
    %412 = vmatpush1.msra.mxu0 0.0
    %413 = vmatprep.subr.mxu0 0.0
    %414 = vmatpush1.msra.mxu0 0.0
    %415 = vmatprep.subr.mxu0 0.0
    %416 = vmatpush1.msra.mxu0 0.0
    %417 = vmatprep.subr.mxu0 0.0
    %418 = vmatpush1.msra.mxu0 0.0
    %419 = vmatprep.subr.mxu0 0.0
    %420 = vmatpush1.msra.mxu0 0.0
    %421 = vmatprep.subr.mxu0 0.0
    %422 = vmatpush1.msra.mxu0 0.0
    %423 = vmatprep.subr.mxu0 0.0
    %424 = vmatpush1.msra.mxu0 0.0
    %425 = vmatprep.subr.mxu0 0.0
    %426 = vmatpush1.msra.mxu0 0.0
    %427 = vmatprep.subr.mxu0 0.0
    %428 = vmatpush1.msra.mxu0 0.0
    %429 = vmatprep.subr.mxu0 0.0
    %430 = vmatpush1.msra.mxu0 0.0
    %431 = vmatprep.subr.mxu0 0.0
    %432 = vmatpush1.msra.mxu0 0.0
    %433 = vmatprep.subr.mxu0 0.0
    %434 = vmatpush1.msra.mxu0 0.0
    %435 = vmatprep.subr.mxu0 0.0
    %436 = vmatpush1.msra.mxu0 0.0
    %437 = vmatprep.subr.mxu0 0.0
    %438 = vmatpush1.msra.mxu0 0.0
    %439 = vmatprep.subr.mxu0 0.0
    %440 = vmatpush1.msra.mxu0 0.0
    %441 = vmatprep.subr.mxu0 0.0
    %442 = vmatpush1.msra.mxu0 0.0
    %443 = vmatprep.subr.mxu0 0.0
    %444 = vmatpush1.msra.mxu0 0.0
    %445 = vmatprep.subr.mxu0 0.0
    %446 = vmatpush1.msra.mxu0 0.0
    %447 = vmatprep.subr.mxu0 0.0
    %448 = vmatpush1.msra.mxu0 0.0
    %449 = vmatprep.mubr.f32.mxu0 0.0
    %450 = vmatmul.mubr.f32.gmra.mrb[0].mxu0 %v383
    %v451 = vpop.f32.mrb[0].mxu0
    %v452 = vadd.f32 0.0, %v451
    %v453 = vpop.f32.mrb[0].mxu0
    %454 = vdwg.mxu0
    %v456 = vsel %vm308, %v287, 0
    %458 = vmatprep.subr.mxu0 0.0
    %459 = vmatpush1.msra.mxu0 %v230
    %460 = vmatprep.subr.mxu0 0.0
    %461 = vmatpush1.msra.mxu0 0.0
    %462 = vmatprep.subr.mxu0 0.0
    %463 = vmatpush1.msra.mxu0 0.0
    %464 = vmatprep.subr.mxu0 0.0
    %465 = vmatpush1.msra.mxu0 0.0
    %466 = vmatprep.subr.mxu0 0.0
    %467 = vmatpush1.msra.mxu0 0.0
    %468 = vmatprep.subr.mxu0 0.0
    %469 = vmatpush1.msra.mxu0 0.0
    %470 = vmatprep.subr.mxu0 0.0
    %471 = vmatpush1.msra.mxu0 0.0
    %472 = vmatprep.subr.mxu0 0.0
    %473 = vmatpush1.msra.mxu0 0.0
    %474 = vmatprep.subr.mxu0 0.0
    %475 = vmatpush1.msra.mxu0 0.0
    %476 = vmatprep.subr.mxu0 0.0
    %477 = vmatpush1.msra.mxu0 0.0
    %478 = vmatprep.subr.mxu0 0.0
    %479 = vmatpush1.msra.mxu0 0.0
    %480 = vmatprep.subr.mxu0 0.0
    %481 = vmatpush1.msra.mxu0 0.0
    %482 = vmatprep.subr.mxu0 0.0
    %483 = vmatpush1.msra.mxu0 0.0
    %484 = vmatprep.subr.mxu0 0.0
    %485 = vmatpush1.msra.mxu0 0.0
    %486 = vmatprep.subr.mxu0 0.0
    %487 = vmatpush1.msra.mxu0 0.0
    %488 = vmatprep.subr.mxu0 0.0
    %489 = vmatpush1.msra.mxu0 0.0
    %490 = vmatprep.subr.mxu0 0.0
    %491 = vmatpush1.msra.mxu0 0.0
    %492 = vmatprep.subr.mxu0 0.0
    %493 = vmatpush1.msra.mxu0 0.0
    %494 = vmatprep.subr.mxu0 0.0
    %495 = vmatpush1.msra.mxu0 0.0
    %496 = vmatprep.subr.mxu0 0.0
    %497 = vmatpush1.msra.mxu0 0.0
    %498 = vmatprep.subr.mxu0 0.0
    %499 = vmatpush1.msra.mxu0 0.0
    %500 = vmatprep.subr.mxu0 0.0
    %501 = vmatpush1.msra.mxu0 0.0
    %502 = vmatprep.subr.mxu0 0.0
    %503 = vmatpush1.msra.mxu0 0.0
    %504 = vmatprep.subr.mxu0 0.0
    %505 = vmatpush1.msra.mxu0 0.0
    %506 = vmatprep.subr.mxu0 0.0
    %507 = vmatpush1.msra.mxu0 0.0
    %508 = vmatprep.subr.mxu0 0.0
    %509 = vmatpush1.msra.mxu0 0.0
    %510 = vmatprep.subr.mxu0 0.0
    %511 = vmatpush1.msra.mxu0 0.0
    %512 = vmatprep.subr.mxu0 0.0
    %513 = vmatpush1.msra.mxu0 0.0
    %514 = vmatprep.subr.mxu0 0.0
    %515 = vmatpush1.msra.mxu0 0.0
    %516 = vmatprep.subr.mxu0 0.0
    %517 = vmatpush1.msra.mxu0 0.0
    %518 = vmatprep.subr.mxu0 0.0
    %519 = vmatpush1.msra.mxu0 0.0
    %520 = vmatprep.subr.mxu0 0.0
    %521 = vmatpush1.msra.mxu0 0.0
    %522 = vmatprep.mubr.f32.mxu0 0.0
    %523 = vmatmul.mubr.f32.gmra.mrb[0].mxu0 %v456
    %v524 = vpop.f32.mrb[0].mxu0
    %v525 = vadd.f32 0.0, %v524
    %v526 = vpop.f32.mrb[0].mxu0
    %527 = vdwg.mxu0
    %v529 = vsel %vm308, %v305, 0
    %531 = vmatprep.subr.mxu0 0.0
    %532 = vmatpush1.msra.mxu0 %v231
    %533 = vmatprep.subr.mxu0 0.0
    %534 = vmatpush1.msra.mxu0 0.0
    %535 = vmatprep.subr.mxu0 0.0
    %536 = vmatpush1.msra.mxu0 0.0
    %537 = vmatprep.subr.mxu0 0.0
    %538 = vmatpush1.msra.mxu0 0.0
    %539 = vmatprep.subr.mxu0 0.0
    %540 = vmatpush1.msra.mxu0 0.0
    %541 = vmatprep.subr.mxu0 0.0
    %542 = vmatpush1.msra.mxu0 0.0
    %543 = vmatprep.subr.mxu0 0.0
    %544 = vmatpush1.msra.mxu0 0.0
    %545 = vmatprep.subr.mxu0 0.0
    %546 = vmatpush1.msra.mxu0 0.0
    %547 = vmatprep.subr.mxu0 0.0
    %548 = vmatpush1.msra.mxu0 0.0
    %549 = vmatprep.subr.mxu0 0.0
    %550 = vmatpush1.msra.mxu0 0.0
    %551 = vmatprep.subr.mxu0 0.0
    %552 = vmatpush1.msra.mxu0 0.0
    %553 = vmatprep.subr.mxu0 0.0
    %554 = vmatpush1.msra.mxu0 0.0
    %555 = vmatprep.subr.mxu0 0.0
    %556 = vmatpush1.msra.mxu0 0.0
    %557 = vmatprep.subr.mxu0 0.0
    %558 = vmatpush1.msra.mxu0 0.0
    %559 = vmatprep.subr.mxu0 0.0
    %560 = vmatpush1.msra.mxu0 0.0
    %561 = vmatprep.subr.mxu0 0.0
    %562 = vmatpush1.msra.mxu0 0.0
    %563 = vmatprep.subr.mxu0 0.0
    %564 = vmatpush1.msra.mxu0 0.0
    %565 = vmatprep.subr.mxu0 0.0
    %566 = vmatpush1.msra.mxu0 0.0
    %567 = vmatprep.subr.mxu0 0.0
    %568 = vmatpush1.msra.mxu0 0.0
    %569 = vmatprep.subr.mxu0 0.0
    %570 = vmatpush1.msra.mxu0 0.0
    %571 = vmatprep.subr.mxu0 0.0
    %572 = vmatpush1.msra.mxu0 0.0
    %573 = vmatprep.subr.mxu0 0.0
    %574 = vmatpush1.msra.mxu0 0.0
    %575 = vmatprep.subr.mxu0 0.0
    %576 = vmatpush1.msra.mxu0 0.0
    %577 = vmatprep.subr.mxu0 0.0
    %578 = vmatpush1.msra.mxu0 0.0
    %579 = vmatprep.subr.mxu0 0.0
    %580 = vmatpush1.msra.mxu0 0.0
    %581 = vmatprep.subr.mxu0 0.0
    %582 = vmatpush1.msra.mxu0 0.0
    %583 = vmatprep.subr.mxu0 0.0
    %584 = vmatpush1.msra.mxu0 0.0
    %585 = vmatprep.subr.mxu0 0.0
    %586 = vmatpush1.msra.mxu0 0.0
    %587 = vmatprep.subr.mxu0 0.0
    %588 = vmatpush1.msra.mxu0 0.0
    %589 = vmatprep.subr.mxu0 0.0
    %590 = vmatpush1.msra.mxu0 0.0
    %591 = vmatprep.subr.mxu0 0.0
    %592 = vmatpush1.msra.mxu0 0.0
    %593 = vmatprep.subr.mxu0 0.0
    %594 = vmatpush1.msra.mxu0 0.0
    %595 = vmatprep.mubr.f32.mxu0 0.0
    %596 = vmatmul.mubr.f32.gmra.mrb[0].mxu0 %v529
    %v597 = vpop.f32.mrb[0].mxu0
    %v598 = vadd.f32 0.0, %v597
    %v599 = vpop.f32.mrb[0].mxu0
    %600 = vdwg.mxu0
    %v602 = vsel %vm308, %v296, 0
    %604 = vmatprep.subr.mxu0 0.0
    %605 = vmatpush1.msra.mxu0 %v232
    %606 = vmatprep.subr.mxu0 0.0
    %607 = vmatpush1.msra.mxu0 0.0
    %608 = vmatprep.subr.mxu0 0.0
    %609 = vmatpush1.msra.mxu0 0.0
    %610 = vmatprep.subr.mxu0 0.0
    %611 = vmatpush1.msra.mxu0 0.0
    %612 = vmatprep.subr.mxu0 0.0
    %613 = vmatpush1.msra.mxu0 0.0
    %614 = vmatprep.subr.mxu0 0.0
    %615 = vmatpush1.msra.mxu0 0.0
    %616 = vmatprep.subr.mxu0 0.0
    %617 = vmatpush1.msra.mxu0 0.0
    %618 = vmatprep.subr.mxu0 0.0
    %619 = vmatpush1.msra.mxu0 0.0
    %620 = vmatprep.subr.mxu0 0.0
    %621 = vmatpush1.msra.mxu0 0.0
    %622 = vmatprep.subr.mxu0 0.0
    %623 = vmatpush1.msra.mxu0 0.0
    %624 = vmatprep.subr.mxu0 0.0
    %625 = vmatpush1.msra.mxu0 0.0
    %626 = vmatprep.subr.mxu0 0.0
    %627 = vmatpush1.msra.mxu0 0.0
    %628 = vmatprep.subr.mxu0 0.0
    %629 = vmatpush1.msra.mxu0 0.0
    %630 = vmatprep.subr.mxu0 0.0
    %631 = vmatpush1.msra.mxu0 0.0
    %632 = vmatprep.subr.mxu0 0.0
    %633 = vmatpush1.msra.mxu0 0.0
    %634 = vmatprep.subr.mxu0 0.0
    %635 = vmatpush1.msra.mxu0 0.0
    %636 = vmatprep.subr.mxu0 0.0
    %637 = vmatpush1.msra.mxu0 0.0
    %638 = vmatprep.subr.mxu0 0.0
    %639 = vmatpush1.msra.mxu0 0.0
    %640 = vmatprep.subr.mxu0 0.0
    %641 = vmatpush1.msra.mxu0 0.0
    %642 = vmatprep.subr.mxu0 0.0
    %643 = vmatpush1.msra.mxu0 0.0
    %644 = vmatprep.subr.mxu0 0.0
    %645 = vmatpush1.msra.mxu0 0.0
    %646 = vmatprep.subr.mxu0 0.0
    %647 = vmatpush1.msra.mxu0 0.0
    %648 = vmatprep.subr.mxu0 0.0
    %649 = vmatpush1.msra.mxu0 0.0
    %650 = vmatprep.subr.mxu0 0.0
    %651 = vmatpush1.msra.mxu0 0.0
    %652 = vmatprep.subr.mxu0 0.0
    %653 = vmatpush1.msra.mxu0 0.0
    %654 = vmatprep.subr.mxu0 0.0
    %655 = vmatpush1.msra.mxu0 0.0
    %656 = vmatprep.subr.mxu0 0.0
    %657 = vmatpush1.msra.mxu0 0.0
    %658 = vmatprep.subr.mxu0 0.0
    %659 = vmatpush1.msra.mxu0 0.0
    %660 = vmatprep.subr.mxu0 0.0
    %661 = vmatpush1.msra.mxu0 0.0
    %662 = vmatprep.subr.mxu0 0.0
    %663 = vmatpush1.msra.mxu0 0.0
    %664 = vmatprep.subr.mxu0 0.0
    %665 = vmatpush1.msra.mxu0 0.0
    %666 = vmatprep.subr.mxu0 0.0
    %667 = vmatpush1.msra.mxu0 0.0
    %668 = vmatprep.mubr.f32.mxu0 0.0
    %669 = vmatmul.mubr.f32.gmra.mrb[0].mxu0 %v602
    %v670 = vpop.f32.mrb[0].mxu0
    %v671 = vadd.f32 0.0, %v670
    %v672 = vpop.f32.mrb[0].mxu0
    %673 = vdwg.mxu0
    %v675 = vsel %vm308, %v306, 0
    %677 = vmatprep.subr.mxu0 0.0
    %678 = vmatpush1.msra.mxu0 %v233
    %679 = vmatprep.subr.mxu0 0.0
    %680 = vmatpush1.msra.mxu0 0.0
    %681 = vmatprep.subr.mxu0 0.0
    %682 = vmatpush1.msra.mxu0 0.0
    %683 = vmatprep.subr.mxu0 0.0
    %684 = vmatpush1.msra.mxu0 0.0
    %685 = vmatprep.subr.mxu0 0.0
    %686 = vmatpush1.msra.mxu0 0.0
    %687 = vmatprep.subr.mxu0 0.0
    %688 = vmatpush1.msra.mxu0 0.0
    %689 = vmatprep.subr.mxu0 0.0
    %690 = vmatpush1.msra.mxu0 0.0
    %691 = vmatprep.subr.mxu0 0.0
    %692 = vmatpush1.msra.mxu0 0.0
    %693 = vmatprep.subr.mxu0 0.0
    %694 = vmatpush1.msra.mxu0 0.0
    %695 = vmatprep.subr.mxu0 0.0
    %696 = vmatpush1.msra.mxu0 0.0
    %697 = vmatprep.subr.mxu0 0.0
    %698 = vmatpush1.msra.mxu0 0.0
    %699 = vmatprep.subr.mxu0 0.0
    %700 = vmatpush1.msra.mxu0 0.0
    %701 = vmatprep.subr.mxu0 0.0
    %702 = vmatpush1.msra.mxu0 0.0
    %703 = vmatprep.subr.mxu0 0.0
    %704 = vmatpush1.msra.mxu0 0.0
    %705 = vmatprep.subr.mxu0 0.0
    %706 = vmatpush1.msra.mxu0 0.0
    %707 = vmatprep.subr.mxu0 0.0
    %708 = vmatpush1.msra.mxu0 0.0
    %709 = vmatprep.subr.mxu0 0.0
    %710 = vmatpush1.msra.mxu0 0.0
    %711 = vmatprep.subr.mxu0 0.0
    %712 = vmatpush1.msra.mxu0 0.0
    %713 = vmatprep.subr.mxu0 0.0
    %714 = vmatpush1.msra.mxu0 0.0
    %715 = vmatprep.subr.mxu0 0.0
    %716 = vmatpush1.msra.mxu0 0.0
    %717 = vmatprep.subr.mxu0 0.0
    %718 = vmatpush1.msra.mxu0 0.0
    %719 = vmatprep.subr.mxu0 0.0
    %720 = vmatpush1.msra.mxu0 0.0
    %721 = vmatprep.subr.mxu0 0.0
    %722 = vmatpush1.msra.mxu0 0.0
    %723 = vmatprep.subr.mxu0 0.0
    %724 = vmatpush1.msra.mxu0 0.0
    %725 = vmatprep.subr.mxu0 0.0
    %726 = vmatpush1.msra.mxu0 0.0
    %727 = vmatprep.subr.mxu0 0.0
    %728 = vmatpush1.msra.mxu0 0.0
    %729 = vmatprep.subr.mxu0 0.0
    %730 = vmatpush1.msra.mxu0 0.0
    %731 = vmatprep.subr.mxu0 0.0
    %732 = vmatpush1.msra.mxu0 0.0
    %733 = vmatprep.subr.mxu0 0.0
    %734 = vmatpush1.msra.mxu0 0.0
    %735 = vmatprep.subr.mxu0 0.0
    %736 = vmatpush1.msra.mxu0 0.0
    %737 = vmatprep.subr.mxu0 0.0
    %738 = vmatpush1.msra.mxu0 0.0
    %739 = vmatprep.subr.mxu0 0.0
    %740 = vmatpush1.msra.mxu0 0.0
    %741 = vmatprep.mubr.f32.mxu0 0.0
    %742 = vmatmul.mubr.f32.gmra.mrb[0].mxu0 %v675
    %v743 = vpop.f32.mrb[0].mxu0
    %v744 = vadd.f32 0.0, %v743
    %v745 = vpop.f32.mrb[0].mxu0
    %746 = vdwg.mxu0
    %v748 = vsel %vm308, %v303, 0
    %750 = vmatprep.subr.mxu0 0.0
    %751 = vmatpush1.msra.mxu0 %v234
    %752 = vmatprep.subr.mxu0 0.0
    %753 = vmatpush1.msra.mxu0 0.0
    %754 = vmatprep.subr.mxu0 0.0
    %755 = vmatpush1.msra.mxu0 0.0
    %756 = vmatprep.subr.mxu0 0.0
    %757 = vmatpush1.msra.mxu0 0.0
    %758 = vmatprep.subr.mxu0 0.0
    %759 = vmatpush1.msra.mxu0 0.0
    %760 = vmatprep.subr.mxu0 0.0
    %761 = vmatpush1.msra.mxu0 0.0
    %762 = vmatprep.subr.mxu0 0.0
    %763 = vmatpush1.msra.mxu0 0.0
    %764 = vmatprep.subr.mxu0 0.0
    %765 = vmatpush1.msra.mxu0 0.0
    %766 = vmatprep.subr.mxu0 0.0
    %767 = vmatpush1.msra.mxu0 0.0
    %768 = vmatprep.subr.mxu0 0.0
    %769 = vmatpush1.msra.mxu0 0.0
    %770 = vmatprep.subr.mxu0 0.0
    %771 = vmatpush1.msra.mxu0 0.0
    %772 = vmatprep.subr.mxu0 0.0
    %773 = vmatpush1.msra.mxu0 0.0
    %774 = vmatprep.subr.mxu0 0.0
    %775 = vmatpush1.msra.mxu0 0.0
    %776 = vmatprep.subr.mxu0 0.0
    %777 = vmatpush1.msra.mxu0 0.0
    %778 = vmatprep.subr.mxu0 0.0
    %779 = vmatpush1.msra.mxu0 0.0
    %780 = vmatprep.subr.mxu0 0.0
    %781 = vmatpush1.msra.mxu0 0.0
    %782 = vmatprep.subr.mxu0 0.0
    %783 = vmatpush1.msra.mxu0 0.0
    %784 = vmatprep.subr.mxu0 0.0
    %785 = vmatpush1.msra.mxu0 0.0
    %786 = vmatprep.subr.mxu0 0.0
    %787 = vmatpush1.msra.mxu0 0.0
    %788 = vmatprep.subr.mxu0 0.0
    %789 = vmatpush1.msra.mxu0 0.0
    %790 = vmatprep.subr.mxu0 0.0
    %791 = vmatpush1.msra.mxu0 0.0
    %792 = vmatprep.subr.mxu0 0.0
    %793 = vmatpush1.msra.mxu0 0.0
    %794 = vmatprep.subr.mxu0 0.0
    %795 = vmatpush1.msra.mxu0 0.0
    %796 = vmatprep.subr.mxu0 0.0
    %797 = vmatpush1.msra.mxu0 0.0
    %798 = vmatprep.subr.mxu0 0.0
    %799 = vmatpush1.msra.mxu0 0.0
    %800 = vmatprep.subr.mxu0 0.0
    %801 = vmatpush1.msra.mxu0 0.0
    %802 = vmatprep.subr.mxu0 0.0
    %803 = vmatpush1.msra.mxu0 0.0
    %804 = vmatprep.subr.mxu0 0.0
    %805 = vmatpush1.msra.mxu0 0.0
    %806 = vmatprep.subr.mxu0 0.0
    %807 = vmatpush1.msra.mxu0 0.0
    %808 = vmatprep.subr.mxu0 0.0
    %809 = vmatpush1.msra.mxu0 0.0
    %810 = vmatprep.subr.mxu0 0.0
    %811 = vmatpush1.msra.mxu0 0.0
    %812 = vmatprep.subr.mxu0 0.0
    %813 = vmatpush1.msra.mxu0 0.0
    %814 = vmatprep.mubr.f32.mxu0 0.0
    %815 = vmatmul.mubr.f32.gmra.mrb[0].mxu0 %v748
    %v816 = vpop.f32.mrb[0].mxu0
    %v817 = vadd.f32 0.0, %v816
    %v818 = vpop.f32.mrb[0].mxu0
    %819 = vdwg.mxu0
    %v821 = vsel %vm308, %v307, 0
    %823 = vmatprep.subr.mxu0 0.0
    %824 = vmatpush1.msra.mxu0 %v235
    %825 = vmatprep.subr.mxu0 0.0
    %826 = vmatpush1.msra.mxu0 0.0
    %827 = vmatprep.subr.mxu0 0.0
    %828 = vmatpush1.msra.mxu0 0.0
    %829 = vmatprep.subr.mxu0 0.0
    %830 = vmatpush1.msra.mxu0 0.0
    %831 = vmatprep.subr.mxu0 0.0
    %832 = vmatpush1.msra.mxu0 0.0
    %833 = vmatprep.subr.mxu0 0.0
    %834 = vmatpush1.msra.mxu0 0.0
    %835 = vmatprep.subr.mxu0 0.0
    %836 = vmatpush1.msra.mxu0 0.0
    %837 = vmatprep.subr.mxu0 0.0
    %838 = vmatpush1.msra.mxu0 0.0
    %839 = vmatprep.subr.mxu0 0.0
    %840 = vmatpush1.msra.mxu0 0.0
    %841 = vmatprep.subr.mxu0 0.0
    %842 = vmatpush1.msra.mxu0 0.0
    %843 = vmatprep.subr.mxu0 0.0
    %844 = vmatpush1.msra.mxu0 0.0
    %845 = vmatprep.subr.mxu0 0.0
    %846 = vmatpush1.msra.mxu0 0.0
    %847 = vmatprep.subr.mxu0 0.0
    %848 = vmatpush1.msra.mxu0 0.0
    %849 = vmatprep.subr.mxu0 0.0
    %850 = vmatpush1.msra.mxu0 0.0
    %851 = vmatprep.subr.mxu0 0.0
    %852 = vmatpush1.msra.mxu0 0.0
    %853 = vmatprep.subr.mxu0 0.0
    %854 = vmatpush1.msra.mxu0 0.0
    %855 = vmatprep.subr.mxu0 0.0
    %856 = vmatpush1.msra.mxu0 0.0
    %857 = vmatprep.subr.mxu0 0.0
    %858 = vmatpush1.msra.mxu0 0.0
    %859 = vmatprep.subr.mxu0 0.0
    %860 = vmatpush1.msra.mxu0 0.0
    %861 = vmatprep.subr.mxu0 0.0
    %862 = vmatpush1.msra.mxu0 0.0
    %863 = vmatprep.subr.mxu0 0.0
    %864 = vmatpush1.msra.mxu0 0.0
    %865 = vmatprep.subr.mxu0 0.0
    %866 = vmatpush1.msra.mxu0 0.0
    %867 = vmatprep.subr.mxu0 0.0
    %868 = vmatpush1.msra.mxu0 0.0
    %869 = vmatprep.subr.mxu0 0.0
    %870 = vmatpush1.msra.mxu0 0.0
    %871 = vmatprep.subr.mxu0 0.0
    %872 = vmatpush1.msra.mxu0 0.0
    %873 = vmatprep.subr.mxu0 0.0
    %874 = vmatpush1.msra.mxu0 0.0
    %875 = vmatprep.subr.mxu0 0.0
    %876 = vmatpush1.msra.mxu0 0.0
    %877 = vmatprep.subr.mxu0 0.0
    %878 = vmatpush1.msra.mxu0 0.0
    %879 = vmatprep.subr.mxu0 0.0
    %880 = vmatpush1.msra.mxu0 0.0
    %881 = vmatprep.subr.mxu0 0.0
    %882 = vmatpush1.msra.mxu0 0.0
    %883 = vmatprep.subr.mxu0 0.0
    %884 = vmatpush1.msra.mxu0 0.0
    %885 = vmatprep.subr.mxu0 0.0
    %886 = vmatpush1.msra.mxu0 0.0
    %887 = vmatprep.mubr.f32.mxu0 0.0
    %888 = vmatmul.mubr.f32.gmra.mrb[0].mxu0 %v821
    %v889 = vpop.f32.mrb[0].mxu0
    %v890 = vadd.f32 0.0, %v889
    %v891 = vpop.f32.mrb[0].mxu0
    %892 = vdwg.mxu0
    %v893 = vcombine.low %v379, %v525
    %v895 = vunpack.c.l.s4 1983009808
    %v896 = vunpack.c.0.s8 %v895
    %v897 = vlaneseq
    %v898 = vshrl.u32 %v897, 7
    %v899 = vsub.s32 %v896, %v898
    %v900 = vrot.slane %v893, %v899
    %v901 = vcombine.low %v452, %v598
    %v903 = vunpack.c.l.s4 1983009808
    %v904 = vunpack.c.0.s8 %v903
    %v905 = vlaneseq
    %v906 = vshrl.u32 %v905, 7
    %v907 = vsub.s32 %v904, %v906
    %v908 = vrot.slane %v901, %v907
    %v909 = vcombine.low %v671, %v817
    %v911 = vunpack.c.l.s4 1983009808
    %v912 = vunpack.c.0.s8 %v911
    %v913 = vlaneseq
    %v914 = vshrl.u32 %v913, 7
    %v915 = vsub.s32 %v912, %v914
    %v916 = vrot.slane %v909, %v915
    %v917 = vcombine.low %v744, %v890
    %v919 = vunpack.c.l.s4 1983009808
    %v920 = vunpack.c.0.s8 %v919
    %v921 = vlaneseq
    %v922 = vshrl.u32 %v921, 7
    %v923 = vsub.s32 %v920, %v922
    %v924 = vrot.slane %v917, %v923
    %v925 = vcombine.low %v900, %v908
    %v926 = vcombine.high %v900, %v908
    %v928 = vunpack.c.l.s4 1934713408
    %v929 = vunpack.c.0.s8 %v928
    %v930 = vlaneseq
    %v931 = vshrl.u32 %v930, 7
    %v932 = vsub.s32 %v929, %v931
    %v933 = vrot.slane %v925, %v932
    %v935 = vunpack.c.l.s4 1934713408
    %v936 = vunpack.c.0.s8 %v935
    %v937 = vlaneseq
    %v938 = vshrl.u32 %v937, 7
    %v939 = vsub.s32 %v936, %v938
    %v940 = vrot.slane %v926, %v939
    %v941 = vcombine.low %v916, %v924
    %v942 = vcombine.high %v916, %v924
    %v944 = vunpack.c.l.s4 1934713408
    %v945 = vunpack.c.0.s8 %v944
    %v946 = vlaneseq
    %v947 = vshrl.u32 %v946, 7
    %v948 = vsub.s32 %v945, %v947
    %v949 = vrot.slane %v941, %v948
    %v951 = vunpack.c.l.s4 1934713408
    %v952 = vunpack.c.0.s8 %v951
    %v953 = vlaneseq
    %v954 = vshrl.u32 %v953, 7
    %v955 = vsub.s32 %v952, %v954
    %v956 = vrot.slane %v942, %v955
    %v957 = vcombine.low %v933, %v949
    %v958 = vcombine.high %v933, %v949
    %v959 = vcombine.low %v940, %v956
    %v960 = vcombine.high %v940, %v956
    %961 = vrot.lane.b32.xlu0 %v200, 96
    %v962 = vpop.permute.xlu0 %961
    %v963 = vsel %vm308, %v200, 0
    %v965 = vsel %vm308, %v962, 0
    %967 = vmatprep.subr.mxu0 0.0
    %968 = vmatpush1.xpose.msra.mxu0 %v965
    %969 = vmatprep.subr.mxu0 0.0
    %970 = vmatpush1.xpose.msra.mxu0 0.0
    %971 = vmatprep.subr.mxu0 0.0
    %972 = vmatpush1.xpose.msra.mxu0 0.0
    %973 = vmatprep.subr.mxu0 0.0
    %974 = vmatpush1.xpose.msra.mxu0 0.0
    %975 = vmatprep.subr.mxu0 0.0
    %976 = vmatpush1.xpose.msra.mxu0 0.0
    %977 = vmatprep.subr.mxu0 0.0
    %978 = vmatpush1.xpose.msra.mxu0 0.0
    %979 = vmatprep.subr.mxu0 0.0
    %980 = vmatpush1.xpose.msra.mxu0 0.0
    %981 = vmatprep.subr.mxu0 0.0
    %982 = vmatpush1.xpose.msra.mxu0 0.0
    %983 = vmatprep.subr.mxu0 0.0
    %984 = vmatpush1.xpose.msra.mxu0 0.0
    %985 = vmatprep.subr.mxu0 0.0
    %986 = vmatpush1.xpose.msra.mxu0 0.0
    %987 = vmatprep.subr.mxu0 0.0
    %988 = vmatpush1.xpose.msra.mxu0 0.0
    %989 = vmatprep.subr.mxu0 0.0
    %990 = vmatpush1.xpose.msra.mxu0 0.0
    %991 = vmatprep.subr.mxu0 0.0
    %992 = vmatpush1.xpose.msra.mxu0 0.0
    %993 = vmatprep.subr.mxu0 0.0
    %994 = vmatpush1.xpose.msra.mxu0 0.0
    %995 = vmatprep.subr.mxu0 0.0
    %996 = vmatpush1.xpose.msra.mxu0 0.0
    %997 = vmatprep.subr.mxu0 0.0
    %998 = vmatpush1.xpose.msra.mxu0 0.0
    %999 = vmatprep.subr.mxu0 0.0
    %1000 = vmatpush1.xpose.msra.mxu0 0.0
    %1001 = vmatprep.subr.mxu0 0.0
    %1002 = vmatpush1.xpose.msra.mxu0 0.0
    %1003 = vmatprep.subr.mxu0 0.0
    %1004 = vmatpush1.xpose.msra.mxu0 0.0
    %1005 = vmatprep.subr.mxu0 0.0
    %1006 = vmatpush1.xpose.msra.mxu0 0.0
    %1007 = vmatprep.subr.mxu0 0.0
    %1008 = vmatpush1.xpose.msra.mxu0 0.0
    %1009 = vmatprep.subr.mxu0 0.0
    %1010 = vmatpush1.xpose.msra.mxu0 0.0
    %1011 = vmatprep.subr.mxu0 0.0
    %1012 = vmatpush1.xpose.msra.mxu0 0.0
    %1013 = vmatprep.subr.mxu0 0.0
    %1014 = vmatpush1.xpose.msra.mxu0 0.0
    %1015 = vmatprep.subr.mxu0 0.0
    %1016 = vmatpush1.xpose.msra.mxu0 0.0
    %1017 = vmatprep.subr.mxu0 0.0
    %1018 = vmatpush1.xpose.msra.mxu0 0.0
    %1019 = vmatprep.subr.mxu0 0.0
    %1020 = vmatpush1.xpose.msra.mxu0 0.0
    %1021 = vmatprep.subr.mxu0 0.0
    %1022 = vmatpush1.xpose.msra.mxu0 0.0
    %1023 = vmatprep.subr.mxu0 0.0
    %1024 = vmatpush1.xpose.msra.mxu0 0.0
    %1025 = vmatprep.subr.mxu0 0.0
    %1026 = vmatpush1.xpose.msra.mxu0 0.0
    %1027 = vmatprep.subr.mxu0 0.0
    %1028 = vmatpush1.xpose.msra.mxu0 0.0
    %1029 = vmatprep.subr.mxu0 0.0
    %1030 = vmatpush1.xpose.msra.mxu0 0.0
    %1031 = vmatprep.mubr.f32.mxu0 0.0
    %1032 = vmatmul.mubr.f32.gmra.mrb[0].mxu0 %v963
    %v1033 = vpop.f32.mrb[0].mxu0
    %v1034 = vadd.f32 %v957, %v1033
    %v1035 = vpop.f32.mrb[0].mxu0
    %1036 = vdwg.mxu0
    %1037 = vrot.lane.b32.xlu0 %v211, 96
    %v1038 = vpop.permute.xlu0 %1037
    %v1039 = vsel %vm308, %v211, 0
    %v1041 = vsel %vm308, %v1038, 0
    %1043 = vmatprep.subr.mxu0 0.0
    %1044 = vmatpush1.xpose.msra.mxu0 %v1041
    %1045 = vmatprep.subr.mxu0 0.0
    %1046 = vmatpush1.xpose.msra.mxu0 0.0
    %1047 = vmatprep.subr.mxu0 0.0
    %1048 = vmatpush1.xpose.msra.mxu0 0.0
    %1049 = vmatprep.subr.mxu0 0.0
    %1050 = vmatpush1.xpose.msra.mxu0 0.0
    %1051 = vmatprep.subr.mxu0 0.0
    %1052 = vmatpush1.xpose.msra.mxu0 0.0
    %1053 = vmatprep.subr.mxu0 0.0
    %1054 = vmatpush1.xpose.msra.mxu0 0.0
    %1055 = vmatprep.subr.mxu0 0.0
    %1056 = vmatpush1.xpose.msra.mxu0 0.0
    %1057 = vmatprep.subr.mxu0 0.0
    %1058 = vmatpush1.xpose.msra.mxu0 0.0
    %1059 = vmatprep.subr.mxu0 0.0
    %1060 = vmatpush1.xpose.msra.mxu0 0.0
    %1061 = vmatprep.subr.mxu0 0.0
    %1062 = vmatpush1.xpose.msra.mxu0 0.0
    %1063 = vmatprep.subr.mxu0 0.0
    %1064 = vmatpush1.xpose.msra.mxu0 0.0
    %1065 = vmatprep.subr.mxu0 0.0
    %1066 = vmatpush1.xpose.msra.mxu0 0.0
    %1067 = vmatprep.subr.mxu0 0.0
    %1068 = vmatpush1.xpose.msra.mxu0 0.0
    %1069 = vmatprep.subr.mxu0 0.0
    %1070 = vmatpush1.xpose.msra.mxu0 0.0
    %1071 = vmatprep.subr.mxu0 0.0
    %1072 = vmatpush1.xpose.msra.mxu0 0.0
    %1073 = vmatprep.subr.mxu0 0.0
    %1074 = vmatpush1.xpose.msra.mxu0 0.0
    %1075 = vmatprep.subr.mxu0 0.0
    %1076 = vmatpush1.xpose.msra.mxu0 0.0
    %1077 = vmatprep.subr.mxu0 0.0
    %1078 = vmatpush1.xpose.msra.mxu0 0.0
    %1079 = vmatprep.subr.mxu0 0.0
    %1080 = vmatpush1.xpose.msra.mxu0 0.0
    %1081 = vmatprep.subr.mxu0 0.0
    %1082 = vmatpush1.xpose.msra.mxu0 0.0
    %1083 = vmatprep.subr.mxu0 0.0
    %1084 = vmatpush1.xpose.msra.mxu0 0.0
    %1085 = vmatprep.subr.mxu0 0.0
    %1086 = vmatpush1.xpose.msra.mxu0 0.0
    %1087 = vmatprep.subr.mxu0 0.0
    %1088 = vmatpush1.xpose.msra.mxu0 0.0
    %1089 = vmatprep.subr.mxu0 0.0
    %1090 = vmatpush1.xpose.msra.mxu0 0.0
    %1091 = vmatprep.subr.mxu0 0.0
    %1092 = vmatpush1.xpose.msra.mxu0 0.0
    %1093 = vmatprep.subr.mxu0 0.0
    %1094 = vmatpush1.xpose.msra.mxu0 0.0
    %1095 = vmatprep.subr.mxu0 0.0
    %1096 = vmatpush1.xpose.msra.mxu0 0.0
    %1097 = vmatprep.subr.mxu0 0.0
    %1098 = vmatpush1.xpose.msra.mxu0 0.0
    %1099 = vmatprep.subr.mxu0 0.0
    %1100 = vmatpush1.xpose.msra.mxu0 0.0
    %1101 = vmatprep.subr.mxu0 0.0
    %1102 = vmatpush1.xpose.msra.mxu0 0.0
    %1103 = vmatprep.subr.mxu0 0.0
    %1104 = vmatpush1.xpose.msra.mxu0 0.0
    %1105 = vmatprep.subr.mxu0 0.0
    %1106 = vmatpush1.xpose.msra.mxu0 0.0
    %1107 = vmatprep.mubr.f32.mxu0 0.0
    %1108 = vmatmul.mubr.f32.gmra.mrb[0].mxu0 %v1039
    %v1109 = vpop.f32.mrb[0].mxu0
    %v1110 = vadd.f32 %v958, %v1109
    %v1111 = vpop.f32.mrb[0].mxu0
    %1112 = vdwg.mxu0
    %1113 = vrot.lane.b32.xlu0 %v217, 96
    %v1114 = vpop.permute.xlu0 %1113
    %v1115 = vsel %vm308, %v217, 0
    %v1117 = vsel %vm308, %v1114, 0
    %1119 = vmatprep.subr.mxu0 0.0
    %1120 = vmatpush1.xpose.msra.mxu0 %v1117
    %1121 = vmatprep.subr.mxu0 0.0
    %1122 = vmatpush1.xpose.msra.mxu0 0.0
    %1123 = vmatprep.subr.mxu0 0.0
    %1124 = vmatpush1.xpose.msra.mxu0 0.0
    %1125 = vmatprep.subr.mxu0 0.0
    %1126 = vmatpush1.xpose.msra.mxu0 0.0
    %1127 = vmatprep.subr.mxu0 0.0
    %1128 = vmatpush1.xpose.msra.mxu0 0.0
    %1129 = vmatprep.subr.mxu0 0.0
    %1130 = vmatpush1.xpose.msra.mxu0 0.0
    %1131 = vmatprep.subr.mxu0 0.0
    %1132 = vmatpush1.xpose.msra.mxu0 0.0
    %1133 = vmatprep.subr.mxu0 0.0
    %1134 = vmatpush1.xpose.msra.mxu0 0.0
    %1135 = vmatprep.subr.mxu0 0.0
    %1136 = vmatpush1.xpose.msra.mxu0 0.0
    %1137 = vmatprep.subr.mxu0 0.0
    %1138 = vmatpush1.xpose.msra.mxu0 0.0
    %1139 = vmatprep.subr.mxu0 0.0
    %1140 = vmatpush1.xpose.msra.mxu0 0.0
    %1141 = vmatprep.subr.mxu0 0.0
    %1142 = vmatpush1.xpose.msra.mxu0 0.0
    %1143 = vmatprep.subr.mxu0 0.0
    %1144 = vmatpush1.xpose.msra.mxu0 0.0
    %1145 = vmatprep.subr.mxu0 0.0
    %1146 = vmatpush1.xpose.msra.mxu0 0.0
    %1147 = vmatprep.subr.mxu0 0.0
    %1148 = vmatpush1.xpose.msra.mxu0 0.0
    %1149 = vmatprep.subr.mxu0 0.0
    %1150 = vmatpush1.xpose.msra.mxu0 0.0
    %1151 = vmatprep.subr.mxu0 0.0
    %1152 = vmatpush1.xpose.msra.mxu0 0.0
    %1153 = vmatprep.subr.mxu0 0.0
    %1154 = vmatpush1.xpose.msra.mxu0 0.0
    %1155 = vmatprep.subr.mxu0 0.0
    %1156 = vmatpush1.xpose.msra.mxu0 0.0
    %1157 = vmatprep.subr.mxu0 0.0
    %1158 = vmatpush1.xpose.msra.mxu0 0.0
    %1159 = vmatprep.subr.mxu0 0.0
    %1160 = vmatpush1.xpose.msra.mxu0 0.0
    %1161 = vmatprep.subr.mxu0 0.0
    %1162 = vmatpush1.xpose.msra.mxu0 0.0
    %1163 = vmatprep.subr.mxu0 0.0
    %1164 = vmatpush1.xpose.msra.mxu0 0.0
    %1165 = vmatprep.subr.mxu0 0.0
    %1166 = vmatpush1.xpose.msra.mxu0 0.0
    %1167 = vmatprep.subr.mxu0 0.0
    %1168 = vmatpush1.xpose.msra.mxu0 0.0
    %1169 = vmatprep.subr.mxu0 0.0
    %1170 = vmatpush1.xpose.msra.mxu0 0.0
    %1171 = vmatprep.subr.mxu0 0.0
    %1172 = vmatpush1.xpose.msra.mxu0 0.0
    %1173 = vmatprep.subr.mxu0 0.0
    %1174 = vmatpush1.xpose.msra.mxu0 0.0
    %1175 = vmatprep.subr.mxu0 0.0
    %1176 = vmatpush1.xpose.msra.mxu0 0.0
    %1177 = vmatprep.subr.mxu0 0.0
    %1178 = vmatpush1.xpose.msra.mxu0 0.0
    %1179 = vmatprep.subr.mxu0 0.0
    %1180 = vmatpush1.xpose.msra.mxu0 0.0
    %1181 = vmatprep.subr.mxu0 0.0
    %1182 = vmatpush1.xpose.msra.mxu0 0.0
    %1183 = vmatprep.mubr.f32.mxu0 0.0
    %1184 = vmatmul.mubr.f32.gmra.mrb[0].mxu0 %v1115
    %v1185 = vpop.f32.mrb[0].mxu0
    %v1186 = vadd.f32 %v959, %v1185
    %v1187 = vpop.f32.mrb[0].mxu0
    %1188 = vdwg.mxu0
    %1189 = vrot.lane.b32.xlu0 %v223, 96
    %v1190 = vpop.permute.xlu0 %1189
    %v1191 = vsel %vm308, %v223, 0
    %v1193 = vsel %vm308, %v1190, 0
    %1195 = vmatprep.subr.mxu0 0.0
    %1196 = vmatpush1.xpose.msra.mxu0 %v1193
    %1197 = vmatprep.subr.mxu0 0.0
    %1198 = vmatpush1.xpose.msra.mxu0 0.0
    %1199 = vmatprep.subr.mxu0 0.0
    %1200 = vmatpush1.xpose.msra.mxu0 0.0
    %1201 = vmatprep.subr.mxu0 0.0
    %1202 = vmatpush1.xpose.msra.mxu0 0.0
    %1203 = vmatprep.subr.mxu0 0.0
    %1204 = vmatpush1.xpose.msra.mxu0 0.0
    %1205 = vmatprep.subr.mxu0 0.0
    %1206 = vmatpush1.xpose.msra.mxu0 0.0
    %1207 = vmatprep.subr.mxu0 0.0
    %1208 = vmatpush1.xpose.msra.mxu0 0.0
    %1209 = vmatprep.subr.mxu0 0.0
    %1210 = vmatpush1.xpose.msra.mxu0 0.0
    %1211 = vmatprep.subr.mxu0 0.0
    %1212 = vmatpush1.xpose.msra.mxu0 0.0
    %1213 = vmatprep.subr.mxu0 0.0
    %1214 = vmatpush1.xpose.msra.mxu0 0.0
    %1215 = vmatprep.subr.mxu0 0.0
    %1216 = vmatpush1.xpose.msra.mxu0 0.0
    %1217 = vmatprep.subr.mxu0 0.0
    %1218 = vmatpush1.xpose.msra.mxu0 0.0
    %1219 = vmatprep.subr.mxu0 0.0
    %1220 = vmatpush1.xpose.msra.mxu0 0.0
    %1221 = vmatprep.subr.mxu0 0.0
    %1222 = vmatpush1.xpose.msra.mxu0 0.0
    %1223 = vmatprep.subr.mxu0 0.0
    %1224 = vmatpush1.xpose.msra.mxu0 0.0
    %1225 = vmatprep.subr.mxu0 0.0
    %1226 = vmatpush1.xpose.msra.mxu0 0.0
    %1227 = vmatprep.subr.mxu0 0.0
    %1228 = vmatpush1.xpose.msra.mxu0 0.0
    %1229 = vmatprep.subr.mxu0 0.0
    %1230 = vmatpush1.xpose.msra.mxu0 0.0
    %1231 = vmatprep.subr.mxu0 0.0
    %1232 = vmatpush1.xpose.msra.mxu0 0.0
    %1233 = vmatprep.subr.mxu0 0.0
    %1234 = vmatpush1.xpose.msra.mxu0 0.0
    %1235 = vmatprep.subr.mxu0 0.0
    %1236 = vmatpush1.xpose.msra.mxu0 0.0
    %1237 = vmatprep.subr.mxu0 0.0
    %1238 = vmatpush1.xpose.msra.mxu0 0.0
    %1239 = vmatprep.subr.mxu0 0.0
    %1240 = vmatpush1.xpose.msra.mxu0 0.0
    %1241 = vmatprep.subr.mxu0 0.0
    %1242 = vmatpush1.xpose.msra.mxu0 0.0
    %1243 = vmatprep.subr.mxu0 0.0
    %1244 = vmatpush1.xpose.msra.mxu0 0.0
    %1245 = vmatprep.subr.mxu0 0.0
    %1246 = vmatpush1.xpose.msra.mxu0 0.0
    %1247 = vmatprep.subr.mxu0 0.0
    %1248 = vmatpush1.xpose.msra.mxu0 0.0
    %1249 = vmatprep.subr.mxu0 0.0
    %1250 = vmatpush1.xpose.msra.mxu0 0.0
    %1251 = vmatprep.subr.mxu0 0.0
    %1252 = vmatpush1.xpose.msra.mxu0 0.0
    %1253 = vmatprep.subr.mxu0 0.0
    %1254 = vmatpush1.xpose.msra.mxu0 0.0
    %1255 = vmatprep.subr.mxu0 0.0
    %1256 = vmatpush1.xpose.msra.mxu0 0.0
    %1257 = vmatprep.subr.mxu0 0.0
    %1258 = vmatpush1.xpose.msra.mxu0 0.0
    %1259 = vmatprep.mubr.f32.mxu0 0.0
    %1260 = vmatmul.mubr.f32.gmra.mrb[0].mxu0 %v1191
    %v1261 = vpop.f32.mrb[0].mxu0
    %v1262 = vadd.f32 %v960, %v1261
    %v1263 = vpop.f32.mrb[0].mxu0
    %1264 = vdwg.mxu0
    %v1265 = vmul.f32 %v1034, 0.35355338
    %v1266 = vmul.f32 %v1110, 0.35355338
    %v1267 = vmul.f32 %v1186, 0.35355338
    %v1268 = vmul.f32 %v1262, 0.35355338
    %v1269 = vsel %vm238, 1, 0
    %vm1270 = vcmp.eq.s32.totalorder %v1269, 1
    %v1271 = vsel %vm1270, -1e+30, %v1265
    %v1272 = vsel %vm1270, -1e+30, %v1266
    %v1273 = vsel %vm1270, -1e+30, %v1267
    %v1274 = vsel %vm1270, -1e+30, %v1268
    %v1275 = vsel %vm308, %v1271, -inf
    %1276 = vmax.xlane.f32.xlu0 %v1275
    %v1277 = vpop.xlane.xlu0 %1276
    %v1278 = vsel %vm308, %v1272, -inf
    %1279 = vmax.xlane.f32.xlu0 %v1278
    %v1280 = vpop.xlane.xlu0 %1279
    %v1281 = vsel %vm308, %v1273, -inf
    %1282 = vmax.xlane.f32.xlu0 %v1281
    %v1283 = vpop.xlane.xlu0 %1282
    %v1284 = vsel %vm308, %v1274, -inf
    %1285 = vmax.xlane.f32.xlu0 %v1284
    %v1286 = vpop.xlane.xlu0 %1285
    %v1287 = vsub.f32 %v1271, %v1277
    %v1288 = vsub.f32 %v1272, %v1280
    %v1289 = vsub.f32 %v1273, %v1283
    %v1290 = vsub.f32 %v1274, %v1286
    %v1291 = vmul.f32 %v1287, 1.442695
    %v1292 = vpow.pop %v1291
    %v1293 = vmul.f32 %v1288, 1.442695
    %v1294 = vpow.pop %v1293
    %v1295 = vmul.f32 %v1289, 1.442695
    %v1296 = vpow.pop %v1295
    %v1297 = vmul.f32 %v1290, 1.442695
    %v1298 = vpow.pop %v1297
    %v1299 = vsel %vm308, %v1292, 0.0
    %1300 = vadd.xlane.f32.xlu0 %v1299
    %v1301 = vpop.xlane.xlu0 %1300
    %v1302 = vsel %vm308, %v1294, 0.0
    %1303 = vadd.xlane.f32.xlu0 %v1302
    %v1304 = vpop.xlane.xlu0 %1303
    %v1305 = vsel %vm308, %v1296, 0.0
    %1306 = vadd.xlane.f32.xlu0 %v1305
    %v1307 = vpop.xlane.xlu0 %1306
    %v1308 = vsel %vm308, %v1298, 0.0
    %1309 = vadd.xlane.f32.xlu0 %v1308
    %v1310 = vpop.xlane.xlu0 %1309
    %v1311 = vrcp.pop %v1301
    %v1312 = vrcp.pop %v1304
    %v1313 = vrcp.pop %v1307
    %v1314 = vrcp.pop %v1310
    %v1315 = vmul.f32 %v1292, %v1311
    %v1316 = vmul.f32 %v1294, %v1312
    %v1317 = vmul.f32 %v1296, %v1313
    %v1318 = vmul.f32 %v1298, %v1314
    %v1319 = vsel %vm1270, 0.0, %v1315
    %v1320 = vsel %vm1270, 0.0, %v1316
    %v1321 = vsel %vm1270, 0.0, %v1317
    %v1322 = vsel %vm1270, 0.0, %v1318
    %1323 = vrot.lane.b32.xlu0 %v200, 64
    %v1324 = vpop.permute.xlu0 %1323
    %v1327 = vsel %vm308, %v1319, 0
    %1329 = vmatprep.subr.mxu0 0.0
    %1330 = vmatpush1.msra.mxu0 %v1324
    %1331 = vmatprep.subr.mxu0 0.0
    %1332 = vmatpush1.msra.mxu0 0.0
    %1333 = vmatprep.subr.mxu0 0.0
    %1334 = vmatpush1.msra.mxu0 0.0
    %1335 = vmatprep.subr.mxu0 0.0
    %1336 = vmatpush1.msra.mxu0 0.0
    %1337 = vmatprep.subr.mxu0 0.0
    %1338 = vmatpush1.msra.mxu0 0.0
    %1339 = vmatprep.subr.mxu0 0.0
    %1340 = vmatpush1.msra.mxu0 0.0
    %1341 = vmatprep.subr.mxu0 0.0
    %1342 = vmatpush1.msra.mxu0 0.0
    %1343 = vmatprep.subr.mxu0 0.0
    %1344 = vmatpush1.msra.mxu0 0.0
    %1345 = vmatprep.subr.mxu0 0.0
    %1346 = vmatpush1.msra.mxu0 0.0
    %1347 = vmatprep.subr.mxu0 0.0
    %1348 = vmatpush1.msra.mxu0 0.0
    %1349 = vmatprep.subr.mxu0 0.0
    %1350 = vmatpush1.msra.mxu0 0.0
    %1351 = vmatprep.subr.mxu0 0.0
    %1352 = vmatpush1.msra.mxu0 0.0
    %1353 = vmatprep.subr.mxu0 0.0
    %1354 = vmatpush1.msra.mxu0 0.0
    %1355 = vmatprep.subr.mxu0 0.0
    %1356 = vmatpush1.msra.mxu0 0.0
    %1357 = vmatprep.subr.mxu0 0.0
    %1358 = vmatpush1.msra.mxu0 0.0
    %1359 = vmatprep.subr.mxu0 0.0
    %1360 = vmatpush1.msra.mxu0 0.0
    %1361 = vmatprep.subr.mxu0 0.0
    %1362 = vmatpush1.msra.mxu0 0.0
    %1363 = vmatprep.subr.mxu0 0.0
    %1364 = vmatpush1.msra.mxu0 0.0
    %1365 = vmatprep.subr.mxu0 0.0
    %1366 = vmatpush1.msra.mxu0 0.0
    %1367 = vmatprep.subr.mxu0 0.0
    %1368 = vmatpush1.msra.mxu0 0.0
    %1369 = vmatprep.subr.mxu0 0.0
    %1370 = vmatpush1.msra.mxu0 0.0
    %1371 = vmatprep.subr.mxu0 0.0
    %1372 = vmatpush1.msra.mxu0 0.0
    %1373 = vmatprep.subr.mxu0 0.0
    %1374 = vmatpush1.msra.mxu0 0.0
    %1375 = vmatprep.subr.mxu0 0.0
    %1376 = vmatpush1.msra.mxu0 0.0
    %1377 = vmatprep.subr.mxu0 0.0
    %1378 = vmatpush1.msra.mxu0 0.0
    %1379 = vmatprep.subr.mxu0 0.0
    %1380 = vmatpush1.msra.mxu0 0.0
    %1381 = vmatprep.subr.mxu0 0.0
    %1382 = vmatpush1.msra.mxu0 0.0
    %1383 = vmatprep.subr.mxu0 0.0
    %1384 = vmatpush1.msra.mxu0 0.0
    %1385 = vmatprep.subr.mxu0 0.0
    %1386 = vmatpush1.msra.mxu0 0.0
    %1387 = vmatprep.subr.mxu0 0.0
    %1388 = vmatpush1.msra.mxu0 0.0
    %1389 = vmatprep.subr.mxu0 0.0
    %1390 = vmatpush1.msra.mxu0 0.0
    %1391 = vmatprep.subr.mxu0 0.0
    %1392 = vmatpush1.msra.mxu0 0.0
    %1393 = vmatprep.mubr.f32.mxu0 0.0
    %1394 = vmatmul.mubr.f32.gmra.mrb[0].mxu0 %v1327
    %v1395 = vpop.f32.mrb[0].mxu0
    %v1396 = vadd.f32 0.0, %v1395
    %v1397 = vpop.f32.mrb[0].mxu0
    %1398 = vdwg.mxu0
    %1399 = vrot.lane.b32.xlu0 %v211, 64
    %v1400 = vpop.permute.xlu0 %1399
    %v1403 = vsel %vm308, %v1320, 0
    %1405 = vmatprep.subr.mxu0 0.0
    %1406 = vmatpush1.msra.mxu0 %v1400
    %1407 = vmatprep.subr.mxu0 0.0
    %1408 = vmatpush1.msra.mxu0 0.0
    %1409 = vmatprep.subr.mxu0 0.0
    %1410 = vmatpush1.msra.mxu0 0.0
    %1411 = vmatprep.subr.mxu0 0.0
    %1412 = vmatpush1.msra.mxu0 0.0
    %1413 = vmatprep.subr.mxu0 0.0
    %1414 = vmatpush1.msra.mxu0 0.0
    %1415 = vmatprep.subr.mxu0 0.0
    %1416 = vmatpush1.msra.mxu0 0.0
    %1417 = vmatprep.subr.mxu0 0.0
    %1418 = vmatpush1.msra.mxu0 0.0
    %1419 = vmatprep.subr.mxu0 0.0
    %1420 = vmatpush1.msra.mxu0 0.0
    %1421 = vmatprep.subr.mxu0 0.0
    %1422 = vmatpush1.msra.mxu0 0.0
    %1423 = vmatprep.subr.mxu0 0.0
    %1424 = vmatpush1.msra.mxu0 0.0
    %1425 = vmatprep.subr.mxu0 0.0
    %1426 = vmatpush1.msra.mxu0 0.0
    %1427 = vmatprep.subr.mxu0 0.0
    %1428 = vmatpush1.msra.mxu0 0.0
    %1429 = vmatprep.subr.mxu0 0.0
    %1430 = vmatpush1.msra.mxu0 0.0
    %1431 = vmatprep.subr.mxu0 0.0
    %1432 = vmatpush1.msra.mxu0 0.0
    %1433 = vmatprep.subr.mxu0 0.0
    %1434 = vmatpush1.msra.mxu0 0.0
    %1435 = vmatprep.subr.mxu0 0.0
    %1436 = vmatpush1.msra.mxu0 0.0
    %1437 = vmatprep.subr.mxu0 0.0
    %1438 = vmatpush1.msra.mxu0 0.0
    %1439 = vmatprep.subr.mxu0 0.0
    %1440 = vmatpush1.msra.mxu0 0.0
    %1441 = vmatprep.subr.mxu0 0.0
    %1442 = vmatpush1.msra.mxu0 0.0
    %1443 = vmatprep.subr.mxu0 0.0
    %1444 = vmatpush1.msra.mxu0 0.0
    %1445 = vmatprep.subr.mxu0 0.0
    %1446 = vmatpush1.msra.mxu0 0.0
    %1447 = vmatprep.subr.mxu0 0.0
    %1448 = vmatpush1.msra.mxu0 0.0
    %1449 = vmatprep.subr.mxu0 0.0
    %1450 = vmatpush1.msra.mxu0 0.0
    %1451 = vmatprep.subr.mxu0 0.0
    %1452 = vmatpush1.msra.mxu0 0.0
    %1453 = vmatprep.subr.mxu0 0.0
    %1454 = vmatpush1.msra.mxu0 0.0
    %1455 = vmatprep.subr.mxu0 0.0
    %1456 = vmatpush1.msra.mxu0 0.0
    %1457 = vmatprep.subr.mxu0 0.0
    %1458 = vmatpush1.msra.mxu0 0.0
    %1459 = vmatprep.subr.mxu0 0.0
    %1460 = vmatpush1.msra.mxu0 0.0
    %1461 = vmatprep.subr.mxu0 0.0
    %1462 = vmatpush1.msra.mxu0 0.0
    %1463 = vmatprep.subr.mxu0 0.0
    %1464 = vmatpush1.msra.mxu0 0.0
    %1465 = vmatprep.subr.mxu0 0.0
    %1466 = vmatpush1.msra.mxu0 0.0
    %1467 = vmatprep.subr.mxu0 0.0
    %1468 = vmatpush1.msra.mxu0 0.0
    %1469 = vmatprep.mubr.f32.mxu0 0.0
    %1470 = vmatmul.mubr.f32.gmra.mrb[0].mxu0 %v1403
    %v1471 = vpop.f32.mrb[0].mxu0
    %v1472 = vadd.f32 0.0, %v1471
    %v1473 = vpop.f32.mrb[0].mxu0
    %1474 = vdwg.mxu0
    %1475 = vrot.lane.b32.xlu0 %v217, 64
    %v1476 = vpop.permute.xlu0 %1475
    %v1479 = vsel %vm308, %v1321, 0
    %1481 = vmatprep.subr.mxu0 0.0
    %1482 = vmatpush1.msra.mxu0 %v1476
    %1483 = vmatprep.subr.mxu0 0.0
    %1484 = vmatpush1.msra.mxu0 0.0
    %1485 = vmatprep.subr.mxu0 0.0
    %1486 = vmatpush1.msra.mxu0 0.0
    %1487 = vmatprep.subr.mxu0 0.0
    %1488 = vmatpush1.msra.mxu0 0.0
    %1489 = vmatprep.subr.mxu0 0.0
    %1490 = vmatpush1.msra.mxu0 0.0
    %1491 = vmatprep.subr.mxu0 0.0
    %1492 = vmatpush1.msra.mxu0 0.0
    %1493 = vmatprep.subr.mxu0 0.0
    %1494 = vmatpush1.msra.mxu0 0.0
    %1495 = vmatprep.subr.mxu0 0.0
    %1496 = vmatpush1.msra.mxu0 0.0
    %1497 = vmatprep.subr.mxu0 0.0
    %1498 = vmatpush1.msra.mxu0 0.0
    %1499 = vmatprep.subr.mxu0 0.0
    %1500 = vmatpush1.msra.mxu0 0.0
    %1501 = vmatprep.subr.mxu0 0.0
    %1502 = vmatpush1.msra.mxu0 0.0
    %1503 = vmatprep.subr.mxu0 0.0
    %1504 = vmatpush1.msra.mxu0 0.0
    %1505 = vmatprep.subr.mxu0 0.0
    %1506 = vmatpush1.msra.mxu0 0.0
    %1507 = vmatprep.subr.mxu0 0.0
    %1508 = vmatpush1.msra.mxu0 0.0
    %1509 = vmatprep.subr.mxu0 0.0
    %1510 = vmatpush1.msra.mxu0 0.0
    %1511 = vmatprep.subr.mxu0 0.0
    %1512 = vmatpush1.msra.mxu0 0.0
    %1513 = vmatprep.subr.mxu0 0.0
    %1514 = vmatpush1.msra.mxu0 0.0
    %1515 = vmatprep.subr.mxu0 0.0
    %1516 = vmatpush1.msra.mxu0 0.0
    %1517 = vmatprep.subr.mxu0 0.0
    %1518 = vmatpush1.msra.mxu0 0.0
    %1519 = vmatprep.subr.mxu0 0.0
    %1520 = vmatpush1.msra.mxu0 0.0
    %1521 = vmatprep.subr.mxu0 0.0
    %1522 = vmatpush1.msra.mxu0 0.0
    %1523 = vmatprep.subr.mxu0 0.0
    %1524 = vmatpush1.msra.mxu0 0.0
    %1525 = vmatprep.subr.mxu0 0.0
    %1526 = vmatpush1.msra.mxu0 0.0
    %1527 = vmatprep.subr.mxu0 0.0
    %1528 = vmatpush1.msra.mxu0 0.0
    %1529 = vmatprep.subr.mxu0 0.0
    %1530 = vmatpush1.msra.mxu0 0.0
    %1531 = vmatprep.subr.mxu0 0.0
    %1532 = vmatpush1.msra.mxu0 0.0
    %1533 = vmatprep.subr.mxu0 0.0
    %1534 = vmatpush1.msra.mxu0 0.0
    %1535 = vmatprep.subr.mxu0 0.0
    %1536 = vmatpush1.msra.mxu0 0.0
    %1537 = vmatprep.subr.mxu0 0.0
    %1538 = vmatpush1.msra.mxu0 0.0
    %1539 = vmatprep.subr.mxu0 0.0
    %1540 = vmatpush1.msra.mxu0 0.0
    %1541 = vmatprep.subr.mxu0 0.0
    %1542 = vmatpush1.msra.mxu0 0.0
    %1543 = vmatprep.subr.mxu0 0.0
    %1544 = vmatpush1.msra.mxu0 0.0
    %1545 = vmatprep.mubr.f32.mxu0 0.0
    %1546 = vmatmul.mubr.f32.gmra.mrb[0].mxu0 %v1479
    %v1547 = vpop.f32.mrb[0].mxu0
    %v1548 = vadd.f32 0.0, %v1547
    %v1549 = vpop.f32.mrb[0].mxu0
    %1550 = vdwg.mxu0
    %1551 = vrot.lane.b32.xlu0 %v223, 64
    %v1552 = vpop.permute.xlu0 %1551
    %v1555 = vsel %vm308, %v1322, 0
    %1557 = vmatprep.subr.mxu0 0.0
    %1558 = vmatpush1.msra.mxu0 %v1552
    %1559 = vmatprep.subr.mxu0 0.0
    %1560 = vmatpush1.msra.mxu0 0.0
    %1561 = vmatprep.subr.mxu0 0.0
    %1562 = vmatpush1.msra.mxu0 0.0
    %1563 = vmatprep.subr.mxu0 0.0
    %1564 = vmatpush1.msra.mxu0 0.0
    %1565 = vmatprep.subr.mxu0 0.0
    %1566 = vmatpush1.msra.mxu0 0.0
    %1567 = vmatprep.subr.mxu0 0.0
    %1568 = vmatpush1.msra.mxu0 0.0
    %1569 = vmatprep.subr.mxu0 0.0
    %1570 = vmatpush1.msra.mxu0 0.0
    %1571 = vmatprep.subr.mxu0 0.0
    %1572 = vmatpush1.msra.mxu0 0.0
    %1573 = vmatprep.subr.mxu0 0.0
    %1574 = vmatpush1.msra.mxu0 0.0
    %1575 = vmatprep.subr.mxu0 0.0
    %1576 = vmatpush1.msra.mxu0 0.0
    %1577 = vmatprep.subr.mxu0 0.0
    %1578 = vmatpush1.msra.mxu0 0.0
    %1579 = vmatprep.subr.mxu0 0.0
    %1580 = vmatpush1.msra.mxu0 0.0
    %1581 = vmatprep.subr.mxu0 0.0
    %1582 = vmatpush1.msra.mxu0 0.0
    %1583 = vmatprep.subr.mxu0 0.0
    %1584 = vmatpush1.msra.mxu0 0.0
    %1585 = vmatprep.subr.mxu0 0.0
    %1586 = vmatpush1.msra.mxu0 0.0
    %1587 = vmatprep.subr.mxu0 0.0
    %1588 = vmatpush1.msra.mxu0 0.0
    %1589 = vmatprep.subr.mxu0 0.0
    %1590 = vmatpush1.msra.mxu0 0.0
    %1591 = vmatprep.subr.mxu0 0.0
    %1592 = vmatpush1.msra.mxu0 0.0
    %1593 = vmatprep.subr.mxu0 0.0
    %1594 = vmatpush1.msra.mxu0 0.0
    %1595 = vmatprep.subr.mxu0 0.0
    %1596 = vmatpush1.msra.mxu0 0.0
    %1597 = vmatprep.subr.mxu0 0.0
    %1598 = vmatpush1.msra.mxu0 0.0
    %1599 = vmatprep.subr.mxu0 0.0
    %1600 = vmatpush1.msra.mxu0 0.0
    %1601 = vmatprep.subr.mxu0 0.0
    %1602 = vmatpush1.msra.mxu0 0.0
    %1603 = vmatprep.subr.mxu0 0.0
    %1604 = vmatpush1.msra.mxu0 0.0
    %1605 = vmatprep.subr.mxu0 0.0
    %1606 = vmatpush1.msra.mxu0 0.0
    %1607 = vmatprep.subr.mxu0 0.0
    %1608 = vmatpush1.msra.mxu0 0.0
    %1609 = vmatprep.subr.mxu0 0.0
    %1610 = vmatpush1.msra.mxu0 0.0
    %1611 = vmatprep.subr.mxu0 0.0
    %1612 = vmatpush1.msra.mxu0 0.0
    %1613 = vmatprep.subr.mxu0 0.0
    %1614 = vmatpush1.msra.mxu0 0.0
    %1615 = vmatprep.subr.mxu0 0.0
    %1616 = vmatpush1.msra.mxu0 0.0
    %1617 = vmatprep.subr.mxu0 0.0
    %1618 = vmatpush1.msra.mxu0 0.0
    %1619 = vmatprep.subr.mxu0 0.0
    %1620 = vmatpush1.msra.mxu0 0.0
    %1621 = vmatprep.mubr.f32.mxu0 0.0
    %1622 = vmatmul.mubr.f32.gmra.mrb[0].mxu0 %v1555
    %v1623 = vpop.f32.mrb[0].mxu0
    %v1624 = vadd.f32 0.0, %v1623
    %v1625 = vpop.f32.mrb[0].mxu0
    %1626 = vdwg.mxu0
    %1628 = vrot.lane.b32.xlu0 %v1472, 8
    %v1629 = vpop.permute.xlu0 %1628
    %1632 = vrot.lane.b32.xlu0 %v1548, 16
    %v1633 = vpop.permute.xlu0 %1632
    %1636 = vrot.lane.b32.xlu0 %v1624, 24
    %v1637 = vpop.permute.xlu0 %1636
    %v1639 = vsel %vm308, %v1396, %v1629
    %vm1640 = vcmask 130048
    %v1641 = vsel %vm1640, %v1639, %v1633
    %vm1642 = vcmask 195584
    %v1643 = vsel %vm1642, %v1641, %v1637
    %v1644 = vcombine.low %v205, %v219
    %v1645 = vcombine.high %v205, %v219
    %v1647 = vunpack.c.l.s4 1983009808
    %v1648 = vunpack.c.0.s8 %v1647
    %v1649 = vlaneseq
    %v1650 = vshrl.u32 %v1649, 7
    %v1651 = vsub.s32 %v1648, %v1650
    %v1652 = vrot.slane %v1644, %v1651
    %v1654 = vunpack.c.l.s4 1983009808
    %v1655 = vunpack.c.0.s8 %v1654
    %v1656 = vlaneseq
    %v1657 = vshrl.u32 %v1656, 7
    %v1658 = vsub.s32 %v1655, %v1657
    %v1659 = vrot.slane %v1645, %v1658
    %v1660 = vcombine.low %v213, %v225
    %v1661 = vcombine.high %v213, %v225
    %v1663 = vunpack.c.l.s4 1983009808
    %v1664 = vunpack.c.0.s8 %v1663
    %v1665 = vlaneseq
    %v1666 = vshrl.u32 %v1665, 7
    %v1667 = vsub.s32 %v1664, %v1666
    %v1668 = vrot.slane %v1660, %v1667
    %v1670 = vunpack.c.l.s4 1983009808
    %v1671 = vunpack.c.0.s8 %v1670
    %v1672 = vlaneseq
    %v1673 = vshrl.u32 %v1672, 7
    %v1674 = vsub.s32 %v1671, %v1673
    %v1675 = vrot.slane %v1661, %v1674
    %v1676 = vcombine.low %v1652, %v1668
    %v1677 = vcombine.high %v1652, %v1668
    %v1679 = vunpack.c.l.s4 1934713408
    %v1680 = vunpack.c.0.s8 %v1679
    %v1681 = vlaneseq
    %v1682 = vshrl.u32 %v1681, 7
    %v1683 = vsub.s32 %v1680, %v1682
    %v1684 = vrot.slane %v1676, %v1683
    %v1686 = vunpack.c.l.s4 1934713408
    %v1687 = vunpack.c.0.s8 %v1686
    %v1688 = vlaneseq
    %v1689 = vshrl.u32 %v1688, 7
    %v1690 = vsub.s32 %v1687, %v1689
    %v1691 = vrot.slane %v1677, %v1690
    %v1692 = vcombine.low %v1659, %v1675
    %v1693 = vcombine.high %v1659, %v1675
    %v1695 = vunpack.c.l.s4 1934713408
    %v1696 = vunpack.c.0.s8 %v1695
    %v1697 = vlaneseq
    %v1698 = vshrl.u32 %v1697, 7
    %v1699 = vsub.s32 %v1696, %v1698
    %v1700 = vrot.slane %v1692, %v1699
    %v1702 = vunpack.c.l.s4 1934713408
    %v1703 = vunpack.c.0.s8 %v1702
    %v1704 = vlaneseq
    %v1705 = vshrl.u32 %v1704, 7
    %v1706 = vsub.s32 %v1703, %v1705
    %v1707 = vrot.slane %v1693, %v1706
    %v1708 = vcombine.high %v1684, 0.0
    %v1709 = vcombine.high %v1691, 0.0
    %v1710 = vcombine.high %v1700, 0.0
    %v1711 = vcombine.high %v1707, 0.0
    %v1713 = vsel %vm308, %v1684, 0
    %1715 = vmatprep.subr.mxu0 0.0
    %1716 = vmatpush1.msra.mxu0 %v228
    %1717 = vmatprep.subr.mxu0 0.0
    %1718 = vmatpush1.msra.mxu0 0.0
    %1719 = vmatprep.subr.mxu0 0.0
    %1720 = vmatpush1.msra.mxu0 0.0
    %1721 = vmatprep.subr.mxu0 0.0
    %1722 = vmatpush1.msra.mxu0 0.0
    %1723 = vmatprep.subr.mxu0 0.0
    %1724 = vmatpush1.msra.mxu0 0.0
    %1725 = vmatprep.subr.mxu0 0.0
    %1726 = vmatpush1.msra.mxu0 0.0
    %1727 = vmatprep.subr.mxu0 0.0
    %1728 = vmatpush1.msra.mxu0 0.0
    %1729 = vmatprep.subr.mxu0 0.0
    %1730 = vmatpush1.msra.mxu0 0.0
    %1731 = vmatprep.subr.mxu0 0.0
    %1732 = vmatpush1.msra.mxu0 0.0
    %1733 = vmatprep.subr.mxu0 0.0
    %1734 = vmatpush1.msra.mxu0 0.0
    %1735 = vmatprep.subr.mxu0 0.0
    %1736 = vmatpush1.msra.mxu0 0.0
    %1737 = vmatprep.subr.mxu0 0.0
    %1738 = vmatpush1.msra.mxu0 0.0
    %1739 = vmatprep.subr.mxu0 0.0
    %1740 = vmatpush1.msra.mxu0 0.0
    %1741 = vmatprep.subr.mxu0 0.0
    %1742 = vmatpush1.msra.mxu0 0.0
    %1743 = vmatprep.subr.mxu0 0.0
    %1744 = vmatpush1.msra.mxu0 0.0
    %1745 = vmatprep.subr.mxu0 0.0
    %1746 = vmatpush1.msra.mxu0 0.0
    %1747 = vmatprep.subr.mxu0 0.0
    %1748 = vmatpush1.msra.mxu0 0.0
    %1749 = vmatprep.subr.mxu0 0.0
    %1750 = vmatpush1.msra.mxu0 0.0
    %1751 = vmatprep.subr.mxu0 0.0
    %1752 = vmatpush1.msra.mxu0 0.0
    %1753 = vmatprep.subr.mxu0 0.0
    %1754 = vmatpush1.msra.mxu0 0.0
    %1755 = vmatprep.subr.mxu0 0.0
    %1756 = vmatpush1.msra.mxu0 0.0
    %1757 = vmatprep.subr.mxu0 0.0
    %1758 = vmatpush1.msra.mxu0 0.0
    %1759 = vmatprep.subr.mxu0 0.0
    %1760 = vmatpush1.msra.mxu0 0.0
    %1761 = vmatprep.subr.mxu0 0.0
    %1762 = vmatpush1.msra.mxu0 0.0
    %1763 = vmatprep.subr.mxu0 0.0
    %1764 = vmatpush1.msra.mxu0 0.0
    %1765 = vmatprep.subr.mxu0 0.0
    %1766 = vmatpush1.msra.mxu0 0.0
    %1767 = vmatprep.subr.mxu0 0.0
    %1768 = vmatpush1.msra.mxu0 0.0
    %1769 = vmatprep.subr.mxu0 0.0
    %1770 = vmatpush1.msra.mxu0 0.0
    %1771 = vmatprep.subr.mxu0 0.0
    %1772 = vmatpush1.msra.mxu0 0.0
    %1773 = vmatprep.subr.mxu0 0.0
    %1774 = vmatpush1.msra.mxu0 0.0
    %1775 = vmatprep.subr.mxu0 0.0
    %1776 = vmatpush1.msra.mxu0 0.0
    %1777 = vmatprep.subr.mxu0 0.0
    %1778 = vmatpush1.msra.mxu0 0.0
    %1779 = vmatprep.mubr.f32.mxu0 0.0
    %1780 = vmatmul.mubr.f32.gmra.mrb[0].mxu0 %v1713
    %v1781 = vpop.f32.mrb[0].mxu0
    %v1782 = vadd.f32 0.0, %v1781
    %v1783 = vpop.f32.mrb[0].mxu0
    %1784 = vdwg.mxu0
    %v1786 = vsel %vm308, %v1708, 0
    %1788 = vmatprep.subr.mxu0 0.0
    %1789 = vmatpush1.msra.mxu0 %v229
    %1790 = vmatprep.subr.mxu0 0.0
    %1791 = vmatpush1.msra.mxu0 0.0
    %1792 = vmatprep.subr.mxu0 0.0
    %1793 = vmatpush1.msra.mxu0 0.0
    %1794 = vmatprep.subr.mxu0 0.0
    %1795 = vmatpush1.msra.mxu0 0.0
    %1796 = vmatprep.subr.mxu0 0.0
    %1797 = vmatpush1.msra.mxu0 0.0
    %1798 = vmatprep.subr.mxu0 0.0
    %1799 = vmatpush1.msra.mxu0 0.0
    %1800 = vmatprep.subr.mxu0 0.0
    %1801 = vmatpush1.msra.mxu0 0.0
    %1802 = vmatprep.subr.mxu0 0.0
    %1803 = vmatpush1.msra.mxu0 0.0
    %1804 = vmatprep.subr.mxu0 0.0
    %1805 = vmatpush1.msra.mxu0 0.0
    %1806 = vmatprep.subr.mxu0 0.0
    %1807 = vmatpush1.msra.mxu0 0.0
    %1808 = vmatprep.subr.mxu0 0.0
    %1809 = vmatpush1.msra.mxu0 0.0
    %1810 = vmatprep.subr.mxu0 0.0
    %1811 = vmatpush1.msra.mxu0 0.0
    %1812 = vmatprep.subr.mxu0 0.0
    %1813 = vmatpush1.msra.mxu0 0.0
    %1814 = vmatprep.subr.mxu0 0.0
    %1815 = vmatpush1.msra.mxu0 0.0
    %1816 = vmatprep.subr.mxu0 0.0
    %1817 = vmatpush1.msra.mxu0 0.0
    %1818 = vmatprep.subr.mxu0 0.0
    %1819 = vmatpush1.msra.mxu0 0.0
    %1820 = vmatprep.subr.mxu0 0.0
    %1821 = vmatpush1.msra.mxu0 0.0
    %1822 = vmatprep.subr.mxu0 0.0
    %1823 = vmatpush1.msra.mxu0 0.0
    %1824 = vmatprep.subr.mxu0 0.0
    %1825 = vmatpush1.msra.mxu0 0.0
    %1826 = vmatprep.subr.mxu0 0.0
    %1827 = vmatpush1.msra.mxu0 0.0
    %1828 = vmatprep.subr.mxu0 0.0
    %1829 = vmatpush1.msra.mxu0 0.0
    %1830 = vmatprep.subr.mxu0 0.0
    %1831 = vmatpush1.msra.mxu0 0.0
    %1832 = vmatprep.subr.mxu0 0.0
    %1833 = vmatpush1.msra.mxu0 0.0
    %1834 = vmatprep.subr.mxu0 0.0
    %1835 = vmatpush1.msra.mxu0 0.0
    %1836 = vmatprep.subr.mxu0 0.0
    %1837 = vmatpush1.msra.mxu0 0.0
    %1838 = vmatprep.subr.mxu0 0.0
    %1839 = vmatpush1.msra.mxu0 0.0
    %1840 = vmatprep.subr.mxu0 0.0
    %1841 = vmatpush1.msra.mxu0 0.0
    %1842 = vmatprep.subr.mxu0 0.0
    %1843 = vmatpush1.msra.mxu0 0.0
    %1844 = vmatprep.subr.mxu0 0.0
    %1845 = vmatpush1.msra.mxu0 0.0
    %1846 = vmatprep.subr.mxu0 0.0
    %1847 = vmatpush1.msra.mxu0 0.0
    %1848 = vmatprep.subr.mxu0 0.0
    %1849 = vmatpush1.msra.mxu0 0.0
    %1850 = vmatprep.subr.mxu0 0.0
    %1851 = vmatpush1.msra.mxu0 0.0
    %1852 = vmatprep.mubr.f32.mxu0 0.0
    %1853 = vmatmul.mubr.f32.gmra.mrb[0].mxu0 %v1786
    %v1854 = vpop.f32.mrb[0].mxu0
    %v1855 = vadd.f32 0.0, %v1854
    %v1856 = vpop.f32.mrb[0].mxu0
    %1857 = vdwg.mxu0
    %v1859 = vsel %vm308, %v1691, 0
    %1861 = vmatprep.subr.mxu0 0.0
    %1862 = vmatpush1.msra.mxu0 %v230
    %1863 = vmatprep.subr.mxu0 0.0
    %1864 = vmatpush1.msra.mxu0 0.0
    %1865 = vmatprep.subr.mxu0 0.0
    %1866 = vmatpush1.msra.mxu0 0.0
    %1867 = vmatprep.subr.mxu0 0.0
    %1868 = vmatpush1.msra.mxu0 0.0
    %1869 = vmatprep.subr.mxu0 0.0
    %1870 = vmatpush1.msra.mxu0 0.0
    %1871 = vmatprep.subr.mxu0 0.0
    %1872 = vmatpush1.msra.mxu0 0.0
    %1873 = vmatprep.subr.mxu0 0.0
    %1874 = vmatpush1.msra.mxu0 0.0
    %1875 = vmatprep.subr.mxu0 0.0
    %1876 = vmatpush1.msra.mxu0 0.0
    %1877 = vmatprep.subr.mxu0 0.0
    %1878 = vmatpush1.msra.mxu0 0.0
    %1879 = vmatprep.subr.mxu0 0.0
    %1880 = vmatpush1.msra.mxu0 0.0
    %1881 = vmatprep.subr.mxu0 0.0
    %1882 = vmatpush1.msra.mxu0 0.0
    %1883 = vmatprep.subr.mxu0 0.0
    %1884 = vmatpush1.msra.mxu0 0.0
    %1885 = vmatprep.subr.mxu0 0.0
    %1886 = vmatpush1.msra.mxu0 0.0
    %1887 = vmatprep.subr.mxu0 0.0
    %1888 = vmatpush1.msra.mxu0 0.0
    %1889 = vmatprep.subr.mxu0 0.0
    %1890 = vmatpush1.msra.mxu0 0.0
    %1891 = vmatprep.subr.mxu0 0.0
    %1892 = vmatpush1.msra.mxu0 0.0
    %1893 = vmatprep.subr.mxu0 0.0
    %1894 = vmatpush1.msra.mxu0 0.0
    %1895 = vmatprep.subr.mxu0 0.0
    %1896 = vmatpush1.msra.mxu0 0.0
    %1897 = vmatprep.subr.mxu0 0.0
    %1898 = vmatpush1.msra.mxu0 0.0
    %1899 = vmatprep.subr.mxu0 0.0
    %1900 = vmatpush1.msra.mxu0 0.0
    %1901 = vmatprep.subr.mxu0 0.0
    %1902 = vmatpush1.msra.mxu0 0.0
    %1903 = vmatprep.subr.mxu0 0.0
    %1904 = vmatpush1.msra.mxu0 0.0
    %1905 = vmatprep.subr.mxu0 0.0
    %1906 = vmatpush1.msra.mxu0 0.0
    %1907 = vmatprep.subr.mxu0 0.0
    %1908 = vmatpush1.msra.mxu0 0.0
    %1909 = vmatprep.subr.mxu0 0.0
    %1910 = vmatpush1.msra.mxu0 0.0
    %1911 = vmatprep.subr.mxu0 0.0
    %1912 = vmatpush1.msra.mxu0 0.0
    %1913 = vmatprep.subr.mxu0 0.0
    %1914 = vmatpush1.msra.mxu0 0.0
    %1915 = vmatprep.subr.mxu0 0.0
    %1916 = vmatpush1.msra.mxu0 0.0
    %1917 = vmatprep.subr.mxu0 0.0
    %1918 = vmatpush1.msra.mxu0 0.0
    %1919 = vmatprep.subr.mxu0 0.0
    %1920 = vmatpush1.msra.mxu0 0.0
    %1921 = vmatprep.subr.mxu0 0.0
    %1922 = vmatpush1.msra.mxu0 0.0
    %1923 = vmatprep.subr.mxu0 0.0
    %1924 = vmatpush1.msra.mxu0 0.0
    %1925 = vmatprep.mubr.f32.mxu0 0.0
    %1926 = vmatmul.mubr.f32.gmra.mrb[0].mxu0 %v1859
    %v1927 = vpop.f32.mrb[0].mxu0
    %v1928 = vadd.f32 0.0, %v1927
    %v1929 = vpop.f32.mrb[0].mxu0
    %1930 = vdwg.mxu0
    %v1932 = vsel %vm308, %v1709, 0
    %1934 = vmatprep.subr.mxu0 0.0
    %1935 = vmatpush1.msra.mxu0 %v231
    %1936 = vmatprep.subr.mxu0 0.0
    %1937 = vmatpush1.msra.mxu0 0.0
    %1938 = vmatprep.subr.mxu0 0.0
    %1939 = vmatpush1.msra.mxu0 0.0
    %1940 = vmatprep.subr.mxu0 0.0
    %1941 = vmatpush1.msra.mxu0 0.0
    %1942 = vmatprep.subr.mxu0 0.0
    %1943 = vmatpush1.msra.mxu0 0.0
    %1944 = vmatprep.subr.mxu0 0.0
    %1945 = vmatpush1.msra.mxu0 0.0
    %1946 = vmatprep.subr.mxu0 0.0
    %1947 = vmatpush1.msra.mxu0 0.0
    %1948 = vmatprep.subr.mxu0 0.0
    %1949 = vmatpush1.msra.mxu0 0.0
    %1950 = vmatprep.subr.mxu0 0.0
    %1951 = vmatpush1.msra.mxu0 0.0
    %1952 = vmatprep.subr.mxu0 0.0
    %1953 = vmatpush1.msra.mxu0 0.0
    %1954 = vmatprep.subr.mxu0 0.0
    %1955 = vmatpush1.msra.mxu0 0.0
    %1956 = vmatprep.subr.mxu0 0.0
    %1957 = vmatpush1.msra.mxu0 0.0
    %1958 = vmatprep.subr.mxu0 0.0
    %1959 = vmatpush1.msra.mxu0 0.0
    %1960 = vmatprep.subr.mxu0 0.0
    %1961 = vmatpush1.msra.mxu0 0.0
    %1962 = vmatprep.subr.mxu0 0.0
    %1963 = vmatpush1.msra.mxu0 0.0
    %1964 = vmatprep.subr.mxu0 0.0
    %1965 = vmatpush1.msra.mxu0 0.0
    %1966 = vmatprep.subr.mxu0 0.0
    %1967 = vmatpush1.msra.mxu0 0.0
    %1968 = vmatprep.subr.mxu0 0.0
    %1969 = vmatpush1.msra.mxu0 0.0
    %1970 = vmatprep.subr.mxu0 0.0
    %1971 = vmatpush1.msra.mxu0 0.0
    %1972 = vmatprep.subr.mxu0 0.0
    %1973 = vmatpush1.msra.mxu0 0.0
    %1974 = vmatprep.subr.mxu0 0.0
    %1975 = vmatpush1.msra.mxu0 0.0
    %1976 = vmatprep.subr.mxu0 0.0
    %1977 = vmatpush1.msra.mxu0 0.0
    %1978 = vmatprep.subr.mxu0 0.0
    %1979 = vmatpush1.msra.mxu0 0.0
    %1980 = vmatprep.subr.mxu0 0.0
    %1981 = vmatpush1.msra.mxu0 0.0
    %1982 = vmatprep.subr.mxu0 0.0
    %1983 = vmatpush1.msra.mxu0 0.0
    %1984 = vmatprep.subr.mxu0 0.0
    %1985 = vmatpush1.msra.mxu0 0.0
    %1986 = vmatprep.subr.mxu0 0.0
    %1987 = vmatpush1.msra.mxu0 0.0
    %1988 = vmatprep.subr.mxu0 0.0
    %1989 = vmatpush1.msra.mxu0 0.0
    %1990 = vmatprep.subr.mxu0 0.0
    %1991 = vmatpush1.msra.mxu0 0.0
    %1992 = vmatprep.subr.mxu0 0.0
    %1993 = vmatpush1.msra.mxu0 0.0
    %1994 = vmatprep.subr.mxu0 0.0
    %1995 = vmatpush1.msra.mxu0 0.0
    %1996 = vmatprep.subr.mxu0 0.0
    %1997 = vmatpush1.msra.mxu0 0.0
    %1998 = vmatprep.mubr.f32.mxu0 0.0
    %1999 = vmatmul.mubr.f32.gmra.mrb[0].mxu0 %v1932
    %v2000 = vpop.f32.mrb[0].mxu0
    %v2001 = vadd.f32 0.0, %v2000
    %v2002 = vpop.f32.mrb[0].mxu0
    %2003 = vdwg.mxu0
    %v2005 = vsel %vm308, %v1700, 0
    %2007 = vmatprep.subr.mxu0 0.0
    %2008 = vmatpush1.msra.mxu0 %v232
    %2009 = vmatprep.subr.mxu0 0.0
    %2010 = vmatpush1.msra.mxu0 0.0
    %2011 = vmatprep.subr.mxu0 0.0
    %2012 = vmatpush1.msra.mxu0 0.0
    %2013 = vmatprep.subr.mxu0 0.0
    %2014 = vmatpush1.msra.mxu0 0.0
    %2015 = vmatprep.subr.mxu0 0.0
    %2016 = vmatpush1.msra.mxu0 0.0
    %2017 = vmatprep.subr.mxu0 0.0
    %2018 = vmatpush1.msra.mxu0 0.0
    %2019 = vmatprep.subr.mxu0 0.0
    %2020 = vmatpush1.msra.mxu0 0.0
    %2021 = vmatprep.subr.mxu0 0.0
    %2022 = vmatpush1.msra.mxu0 0.0
    %2023 = vmatprep.subr.mxu0 0.0
    %2024 = vmatpush1.msra.mxu0 0.0
    %2025 = vmatprep.subr.mxu0 0.0
    %2026 = vmatpush1.msra.mxu0 0.0
    %2027 = vmatprep.subr.mxu0 0.0
    %2028 = vmatpush1.msra.mxu0 0.0
    %2029 = vmatprep.subr.mxu0 0.0
    %2030 = vmatpush1.msra.mxu0 0.0
    %2031 = vmatprep.subr.mxu0 0.0
    %2032 = vmatpush1.msra.mxu0 0.0
    %2033 = vmatprep.subr.mxu0 0.0
    %2034 = vmatpush1.msra.mxu0 0.0
    %2035 = vmatprep.subr.mxu0 0.0
    %2036 = vmatpush1.msra.mxu0 0.0
    %2037 = vmatprep.subr.mxu0 0.0
    %2038 = vmatpush1.msra.mxu0 0.0
    %2039 = vmatprep.subr.mxu0 0.0
    %2040 = vmatpush1.msra.mxu0 0.0
    %2041 = vmatprep.subr.mxu0 0.0
    %2042 = vmatpush1.msra.mxu0 0.0
    %2043 = vmatprep.subr.mxu0 0.0
    %2044 = vmatpush1.msra.mxu0 0.0
    %2045 = vmatprep.subr.mxu0 0.0
    %2046 = vmatpush1.msra.mxu0 0.0
    %2047 = vmatprep.subr.mxu0 0.0
    %2048 = vmatpush1.msra.mxu0 0.0
    %2049 = vmatprep.subr.mxu0 0.0
    %2050 = vmatpush1.msra.mxu0 0.0
    %2051 = vmatprep.subr.mxu0 0.0
    %2052 = vmatpush1.msra.mxu0 0.0
    %2053 = vmatprep.subr.mxu0 0.0
    %2054 = vmatpush1.msra.mxu0 0.0
    %2055 = vmatprep.subr.mxu0 0.0
    %2056 = vmatpush1.msra.mxu0 0.0
    %2057 = vmatprep.subr.mxu0 0.0
    %2058 = vmatpush1.msra.mxu0 0.0
    %2059 = vmatprep.subr.mxu0 0.0
    %2060 = vmatpush1.msra.mxu0 0.0
    %2061 = vmatprep.subr.mxu0 0.0
    %2062 = vmatpush1.msra.mxu0 0.0
    %2063 = vmatprep.subr.mxu0 0.0
    %2064 = vmatpush1.msra.mxu0 0.0
    %2065 = vmatprep.subr.mxu0 0.0
    %2066 = vmatpush1.msra.mxu0 0.0
    %2067 = vmatprep.subr.mxu0 0.0
    %2068 = vmatpush1.msra.mxu0 0.0
    %2069 = vmatprep.subr.mxu0 0.0
    %2070 = vmatpush1.msra.mxu0 0.0
    %2071 = vmatprep.mubr.f32.mxu0 0.0
    %2072 = vmatmul.mubr.f32.gmra.mrb[0].mxu0 %v2005
    %v2073 = vpop.f32.mrb[0].mxu0
    %v2074 = vadd.f32 0.0, %v2073
    %v2075 = vpop.f32.mrb[0].mxu0
    %2076 = vdwg.mxu0
    %v2078 = vsel %vm308, %v1710, 0
    %2080 = vmatprep.subr.mxu0 0.0
    %2081 = vmatpush1.msra.mxu0 %v233
    %2082 = vmatprep.subr.mxu0 0.0
    %2083 = vmatpush1.msra.mxu0 0.0
    %2084 = vmatprep.subr.mxu0 0.0
    %2085 = vmatpush1.msra.mxu0 0.0
    %2086 = vmatprep.subr.mxu0 0.0
    %2087 = vmatpush1.msra.mxu0 0.0
    %2088 = vmatprep.subr.mxu0 0.0
    %2089 = vmatpush1.msra.mxu0 0.0
    %2090 = vmatprep.subr.mxu0 0.0
    %2091 = vmatpush1.msra.mxu0 0.0
    %2092 = vmatprep.subr.mxu0 0.0
    %2093 = vmatpush1.msra.mxu0 0.0
    %2094 = vmatprep.subr.mxu0 0.0
    %2095 = vmatpush1.msra.mxu0 0.0
    %2096 = vmatprep.subr.mxu0 0.0
    %2097 = vmatpush1.msra.mxu0 0.0
    %2098 = vmatprep.subr.mxu0 0.0
    %2099 = vmatpush1.msra.mxu0 0.0
    %2100 = vmatprep.subr.mxu0 0.0
    %2101 = vmatpush1.msra.mxu0 0.0
    %2102 = vmatprep.subr.mxu0 0.0
    %2103 = vmatpush1.msra.mxu0 0.0
    %2104 = vmatprep.subr.mxu0 0.0
    %2105 = vmatpush1.msra.mxu0 0.0
    %2106 = vmatprep.subr.mxu0 0.0
    %2107 = vmatpush1.msra.mxu0 0.0
    %2108 = vmatprep.subr.mxu0 0.0
    %2109 = vmatpush1.msra.mxu0 0.0
    %2110 = vmatprep.subr.mxu0 0.0
    %2111 = vmatpush1.msra.mxu0 0.0
    %2112 = vmatprep.subr.mxu0 0.0
    %2113 = vmatpush1.msra.mxu0 0.0
    %2114 = vmatprep.subr.mxu0 0.0
    %2115 = vmatpush1.msra.mxu0 0.0
    %2116 = vmatprep.subr.mxu0 0.0
    %2117 = vmatpush1.msra.mxu0 0.0
    %2118 = vmatprep.subr.mxu0 0.0
    %2119 = vmatpush1.msra.mxu0 0.0
    %2120 = vmatprep.subr.mxu0 0.0
    %2121 = vmatpush1.msra.mxu0 0.0
    %2122 = vmatprep.subr.mxu0 0.0
    %2123 = vmatpush1.msra.mxu0 0.0
    %2124 = vmatprep.subr.mxu0 0.0
    %2125 = vmatpush1.msra.mxu0 0.0
    %2126 = vmatprep.subr.mxu0 0.0
    %2127 = vmatpush1.msra.mxu0 0.0
    %2128 = vmatprep.subr.mxu0 0.0
    %2129 = vmatpush1.msra.mxu0 0.0
    %2130 = vmatprep.subr.mxu0 0.0
    %2131 = vmatpush1.msra.mxu0 0.0
    %2132 = vmatprep.subr.mxu0 0.0
    %2133 = vmatpush1.msra.mxu0 0.0
    %2134 = vmatprep.subr.mxu0 0.0
    %2135 = vmatpush1.msra.mxu0 0.0
    %2136 = vmatprep.subr.mxu0 0.0
    %2137 = vmatpush1.msra.mxu0 0.0
    %2138 = vmatprep.subr.mxu0 0.0
    %2139 = vmatpush1.msra.mxu0 0.0
    %2140 = vmatprep.subr.mxu0 0.0
    %2141 = vmatpush1.msra.mxu0 0.0
    %2142 = vmatprep.subr.mxu0 0.0
    %2143 = vmatpush1.msra.mxu0 0.0
    %2144 = vmatprep.mubr.f32.mxu0 0.0
    %2145 = vmatmul.mubr.f32.gmra.mrb[0].mxu0 %v2078
    %v2146 = vpop.f32.mrb[0].mxu0
    %v2147 = vadd.f32 0.0, %v2146
    %v2148 = vpop.f32.mrb[0].mxu0
    %2149 = vdwg.mxu0
    %v2151 = vsel %vm308, %v1707, 0
    %2153 = vmatprep.subr.mxu0 0.0
    %2154 = vmatpush1.msra.mxu0 %v234
    %2155 = vmatprep.subr.mxu0 0.0
    %2156 = vmatpush1.msra.mxu0 0.0
    %2157 = vmatprep.subr.mxu0 0.0
    %2158 = vmatpush1.msra.mxu0 0.0
    %2159 = vmatprep.subr.mxu0 0.0
    %2160 = vmatpush1.msra.mxu0 0.0
    %2161 = vmatprep.subr.mxu0 0.0
    %2162 = vmatpush1.msra.mxu0 0.0
    %2163 = vmatprep.subr.mxu0 0.0
    %2164 = vmatpush1.msra.mxu0 0.0
    %2165 = vmatprep.subr.mxu0 0.0
    %2166 = vmatpush1.msra.mxu0 0.0
    %2167 = vmatprep.subr.mxu0 0.0
    %2168 = vmatpush1.msra.mxu0 0.0
    %2169 = vmatprep.subr.mxu0 0.0
    %2170 = vmatpush1.msra.mxu0 0.0
    %2171 = vmatprep.subr.mxu0 0.0
    %2172 = vmatpush1.msra.mxu0 0.0
    %2173 = vmatprep.subr.mxu0 0.0
    %2174 = vmatpush1.msra.mxu0 0.0
    %2175 = vmatprep.subr.mxu0 0.0
    %2176 = vmatpush1.msra.mxu0 0.0
    %2177 = vmatprep.subr.mxu0 0.0
    %2178 = vmatpush1.msra.mxu0 0.0
    %2179 = vmatprep.subr.mxu0 0.0
    %2180 = vmatpush1.msra.mxu0 0.0
    %2181 = vmatprep.subr.mxu0 0.0
    %2182 = vmatpush1.msra.mxu0 0.0
    %2183 = vmatprep.subr.mxu0 0.0
    %2184 = vmatpush1.msra.mxu0 0.0
    %2185 = vmatprep.subr.mxu0 0.0
    %2186 = vmatpush1.msra.mxu0 0.0
    %2187 = vmatprep.subr.mxu0 0.0
    %2188 = vmatpush1.msra.mxu0 0.0
    %2189 = vmatprep.subr.mxu0 0.0
    %2190 = vmatpush1.msra.mxu0 0.0
    %2191 = vmatprep.subr.mxu0 0.0
    %2192 = vmatpush1.msra.mxu0 0.0
    %2193 = vmatprep.subr.mxu0 0.0
    %2194 = vmatpush1.msra.mxu0 0.0
    %2195 = vmatprep.subr.mxu0 0.0
    %2196 = vmatpush1.msra.mxu0 0.0
    %2197 = vmatprep.subr.mxu0 0.0
    %2198 = vmatpush1.msra.mxu0 0.0
    %2199 = vmatprep.subr.mxu0 0.0
    %2200 = vmatpush1.msra.mxu0 0.0
    %2201 = vmatprep.subr.mxu0 0.0
    %2202 = vmatpush1.msra.mxu0 0.0
    %2203 = vmatprep.subr.mxu0 0.0
    %2204 = vmatpush1.msra.mxu0 0.0
    %2205 = vmatprep.subr.mxu0 0.0
    %2206 = vmatpush1.msra.mxu0 0.0
    %2207 = vmatprep.subr.mxu0 0.0
    %2208 = vmatpush1.msra.mxu0 0.0
    %2209 = vmatprep.subr.mxu0 0.0
    %2210 = vmatpush1.msra.mxu0 0.0
    %2211 = vmatprep.subr.mxu0 0.0
    %2212 = vmatpush1.msra.mxu0 0.0
    %2213 = vmatprep.subr.mxu0 0.0
    %2214 = vmatpush1.msra.mxu0 0.0
    %2215 = vmatprep.subr.mxu0 0.0
    %2216 = vmatpush1.msra.mxu0 0.0
    %2217 = vmatprep.mubr.f32.mxu0 0.0
    %2218 = vmatmul.mubr.f32.gmra.mrb[0].mxu0 %v2151
    %v2219 = vpop.f32.mrb[0].mxu0
    %v2220 = vadd.f32 0.0, %v2219
    %v2221 = vpop.f32.mrb[0].mxu0
    %2222 = vdwg.mxu0
    %v2224 = vsel %vm308, %v1711, 0
    %2226 = vmatprep.subr.mxu0 0.0
    %2227 = vmatpush1.msra.mxu0 %v235
    %2228 = vmatprep.subr.mxu0 0.0
    %2229 = vmatpush1.msra.mxu0 0.0
    %2230 = vmatprep.subr.mxu0 0.0
    %2231 = vmatpush1.msra.mxu0 0.0
    %2232 = vmatprep.subr.mxu0 0.0
    %2233 = vmatpush1.msra.mxu0 0.0
    %2234 = vmatprep.subr.mxu0 0.0
    %2235 = vmatpush1.msra.mxu0 0.0
    %2236 = vmatprep.subr.mxu0 0.0
    %2237 = vmatpush1.msra.mxu0 0.0
    %2238 = vmatprep.subr.mxu0 0.0
    %2239 = vmatpush1.msra.mxu0 0.0
    %2240 = vmatprep.subr.mxu0 0.0
    %2241 = vmatpush1.msra.mxu0 0.0
    %2242 = vmatprep.subr.mxu0 0.0
    %2243 = vmatpush1.msra.mxu0 0.0
    %2244 = vmatprep.subr.mxu0 0.0
    %2245 = vmatpush1.msra.mxu0 0.0
    %2246 = vmatprep.subr.mxu0 0.0
    %2247 = vmatpush1.msra.mxu0 0.0
    %2248 = vmatprep.subr.mxu0 0.0
    %2249 = vmatpush1.msra.mxu0 0.0
    %2250 = vmatprep.subr.mxu0 0.0
    %2251 = vmatpush1.msra.mxu0 0.0
    %2252 = vmatprep.subr.mxu0 0.0
    %2253 = vmatpush1.msra.mxu0 0.0
    %2254 = vmatprep.subr.mxu0 0.0
    %2255 = vmatpush1.msra.mxu0 0.0
    %2256 = vmatprep.subr.mxu0 0.0
    %2257 = vmatpush1.msra.mxu0 0.0
    %2258 = vmatprep.subr.mxu0 0.0
    %2259 = vmatpush1.msra.mxu0 0.0
    %2260 = vmatprep.subr.mxu0 0.0
    %2261 = vmatpush1.msra.mxu0 0.0
    %2262 = vmatprep.subr.mxu0 0.0
    %2263 = vmatpush1.msra.mxu0 0.0
    %2264 = vmatprep.subr.mxu0 0.0
    %2265 = vmatpush1.msra.mxu0 0.0
    %2266 = vmatprep.subr.mxu0 0.0
    %2267 = vmatpush1.msra.mxu0 0.0
    %2268 = vmatprep.subr.mxu0 0.0
    %2269 = vmatpush1.msra.mxu0 0.0
    %2270 = vmatprep.subr.mxu0 0.0
    %2271 = vmatpush1.msra.mxu0 0.0
    %2272 = vmatprep.subr.mxu0 0.0
    %2273 = vmatpush1.msra.mxu0 0.0
    %2274 = vmatprep.subr.mxu0 0.0
    %2275 = vmatpush1.msra.mxu0 0.0
    %2276 = vmatprep.subr.mxu0 0.0
    %2277 = vmatpush1.msra.mxu0 0.0
    %2278 = vmatprep.subr.mxu0 0.0
    %2279 = vmatpush1.msra.mxu0 0.0
    %2280 = vmatprep.subr.mxu0 0.0
    %2281 = vmatpush1.msra.mxu0 0.0
    %2282 = vmatprep.subr.mxu0 0.0
    %2283 = vmatpush1.msra.mxu0 0.0
    %2284 = vmatprep.subr.mxu0 0.0
    %2285 = vmatpush1.msra.mxu0 0.0
    %2286 = vmatprep.subr.mxu0 0.0
    %2287 = vmatpush1.msra.mxu0 0.0
    %2288 = vmatprep.subr.mxu0 0.0
    %2289 = vmatpush1.msra.mxu0 0.0
    %2290 = vmatprep.mubr.f32.mxu0 0.0
    %2291 = vmatmul.mubr.f32.gmra.mrb[0].mxu0 %v2224
    %v2292 = vpop.f32.mrb[0].mxu0
    %v2293 = vadd.f32 0.0, %v2292
    %v2294 = vpop.f32.mrb[0].mxu0
    %2295 = vdwg.mxu0
    %v2296 = vcombine.low %v1782, %v1928
    %v2298 = vunpack.c.l.s4 1983009808
    %v2299 = vunpack.c.0.s8 %v2298
    %v2300 = vlaneseq
    %v2301 = vshrl.u32 %v2300, 7
    %v2302 = vsub.s32 %v2299, %v2301
    %v2303 = vrot.slane %v2296, %v2302
    %v2304 = vcombine.low %v1855, %v2001
    %v2306 = vunpack.c.l.s4 1983009808
    %v2307 = vunpack.c.0.s8 %v2306
    %v2308 = vlaneseq
    %v2309 = vshrl.u32 %v2308, 7
    %v2310 = vsub.s32 %v2307, %v2309
    %v2311 = vrot.slane %v2304, %v2310
    %v2312 = vcombine.low %v2074, %v2220
    %v2314 = vunpack.c.l.s4 1983009808
    %v2315 = vunpack.c.0.s8 %v2314
    %v2316 = vlaneseq
    %v2317 = vshrl.u32 %v2316, 7
    %v2318 = vsub.s32 %v2315, %v2317
    %v2319 = vrot.slane %v2312, %v2318
    %v2320 = vcombine.low %v2147, %v2293
    %v2322 = vunpack.c.l.s4 1983009808
    %v2323 = vunpack.c.0.s8 %v2322
    %v2324 = vlaneseq
    %v2325 = vshrl.u32 %v2324, 7
    %v2326 = vsub.s32 %v2323, %v2325
    %v2327 = vrot.slane %v2320, %v2326
    %v2328 = vcombine.low %v2303, %v2311
    %v2329 = vcombine.high %v2303, %v2311
    %v2331 = vunpack.c.l.s4 1934713408
    %v2332 = vunpack.c.0.s8 %v2331
    %v2333 = vlaneseq
    %v2334 = vshrl.u32 %v2333, 7
    %v2335 = vsub.s32 %v2332, %v2334
    %v2336 = vrot.slane %v2328, %v2335
    %v2338 = vunpack.c.l.s4 1934713408
    %v2339 = vunpack.c.0.s8 %v2338
    %v2340 = vlaneseq
    %v2341 = vshrl.u32 %v2340, 7
    %v2342 = vsub.s32 %v2339, %v2341
    %v2343 = vrot.slane %v2329, %v2342
    %v2344 = vcombine.low %v2319, %v2327
    %v2345 = vcombine.high %v2319, %v2327
    %v2347 = vunpack.c.l.s4 1934713408
    %v2348 = vunpack.c.0.s8 %v2347
    %v2349 = vlaneseq
    %v2350 = vshrl.u32 %v2349, 7
    %v2351 = vsub.s32 %v2348, %v2350
    %v2352 = vrot.slane %v2344, %v2351
    %v2354 = vunpack.c.l.s4 1934713408
    %v2355 = vunpack.c.0.s8 %v2354
    %v2356 = vlaneseq
    %v2357 = vshrl.u32 %v2356, 7
    %v2358 = vsub.s32 %v2355, %v2357
    %v2359 = vrot.slane %v2345, %v2358
    %v2360 = vcombine.low %v2336, %v2352
    %v2361 = vcombine.high %v2336, %v2352
    %v2362 = vcombine.low %v2343, %v2359
    %v2363 = vcombine.high %v2343, %v2359
    %2364 = vrot.lane.b32.xlu0 %v205, 96
    %v2365 = vpop.permute.xlu0 %2364
    %v2366 = vsel %vm308, %v205, 0
    %v2368 = vsel %vm308, %v2365, 0
    %2370 = vmatprep.subr.mxu0 0.0
    %2371 = vmatpush1.xpose.msra.mxu0 %v2368
    %2372 = vmatprep.subr.mxu0 0.0
    %2373 = vmatpush1.xpose.msra.mxu0 0.0
    %2374 = vmatprep.subr.mxu0 0.0
    %2375 = vmatpush1.xpose.msra.mxu0 0.0
    %2376 = vmatprep.subr.mxu0 0.0
    %2377 = vmatpush1.xpose.msra.mxu0 0.0
    %2378 = vmatprep.subr.mxu0 0.0
    %2379 = vmatpush1.xpose.msra.mxu0 0.0
    %2380 = vmatprep.subr.mxu0 0.0
    %2381 = vmatpush1.xpose.msra.mxu0 0.0
    %2382 = vmatprep.subr.mxu0 0.0
    %2383 = vmatpush1.xpose.msra.mxu0 0.0
    %2384 = vmatprep.subr.mxu0 0.0
    %2385 = vmatpush1.xpose.msra.mxu0 0.0
    %2386 = vmatprep.subr.mxu0 0.0
    %2387 = vmatpush1.xpose.msra.mxu0 0.0
    %2388 = vmatprep.subr.mxu0 0.0
    %2389 = vmatpush1.xpose.msra.mxu0 0.0
    %2390 = vmatprep.subr.mxu0 0.0
    %2391 = vmatpush1.xpose.msra.mxu0 0.0
    %2392 = vmatprep.subr.mxu0 0.0
    %2393 = vmatpush1.xpose.msra.mxu0 0.0
    %2394 = vmatprep.subr.mxu0 0.0
    %2395 = vmatpush1.xpose.msra.mxu0 0.0
    %2396 = vmatprep.subr.mxu0 0.0
    %2397 = vmatpush1.xpose.msra.mxu0 0.0
    %2398 = vmatprep.subr.mxu0 0.0
    %2399 = vmatpush1.xpose.msra.mxu0 0.0
    %2400 = vmatprep.subr.mxu0 0.0
    %2401 = vmatpush1.xpose.msra.mxu0 0.0
    %2402 = vmatprep.subr.mxu0 0.0
    %2403 = vmatpush1.xpose.msra.mxu0 0.0
    %2404 = vmatprep.subr.mxu0 0.0
    %2405 = vmatpush1.xpose.msra.mxu0 0.0
    %2406 = vmatprep.subr.mxu0 0.0
    %2407 = vmatpush1.xpose.msra.mxu0 0.0
    %2408 = vmatprep.subr.mxu0 0.0
    %2409 = vmatpush1.xpose.msra.mxu0 0.0
    %2410 = vmatprep.subr.mxu0 0.0
    %2411 = vmatpush1.xpose.msra.mxu0 0.0
    %2412 = vmatprep.subr.mxu0 0.0
    %2413 = vmatpush1.xpose.msra.mxu0 0.0
    %2414 = vmatprep.subr.mxu0 0.0
    %2415 = vmatpush1.xpose.msra.mxu0 0.0
    %2416 = vmatprep.subr.mxu0 0.0
    %2417 = vmatpush1.xpose.msra.mxu0 0.0
    %2418 = vmatprep.subr.mxu0 0.0
    %2419 = vmatpush1.xpose.msra.mxu0 0.0
    %2420 = vmatprep.subr.mxu0 0.0
    %2421 = vmatpush1.xpose.msra.mxu0 0.0
    %2422 = vmatprep.subr.mxu0 0.0
    %2423 = vmatpush1.xpose.msra.mxu0 0.0
    %2424 = vmatprep.subr.mxu0 0.0
    %2425 = vmatpush1.xpose.msra.mxu0 0.0
    %2426 = vmatprep.subr.mxu0 0.0
    %2427 = vmatpush1.xpose.msra.mxu0 0.0
    %2428 = vmatprep.subr.mxu0 0.0
    %2429 = vmatpush1.xpose.msra.mxu0 0.0
    %2430 = vmatprep.subr.mxu0 0.0
    %2431 = vmatpush1.xpose.msra.mxu0 0.0
    %2432 = vmatprep.subr.mxu0 0.0
    %2433 = vmatpush1.xpose.msra.mxu0 0.0
    %2434 = vmatprep.mubr.f32.mxu0 0.0
    %2435 = vmatmul.mubr.f32.gmra.mrb[0].mxu0 %v2366
    %v2436 = vpop.f32.mrb[0].mxu0
    %v2437 = vadd.f32 %v2360, %v2436
    %v2438 = vpop.f32.mrb[0].mxu0
    %2439 = vdwg.mxu0
    %2440 = vrot.lane.b32.xlu0 %v213, 96
    %v2441 = vpop.permute.xlu0 %2440
    %v2442 = vsel %vm308, %v213, 0
    %v2444 = vsel %vm308, %v2441, 0
    %2446 = vmatprep.subr.mxu0 0.0
    %2447 = vmatpush1.xpose.msra.mxu0 %v2444
    %2448 = vmatprep.subr.mxu0 0.0
    %2449 = vmatpush1.xpose.msra.mxu0 0.0
    %2450 = vmatprep.subr.mxu0 0.0
    %2451 = vmatpush1.xpose.msra.mxu0 0.0
    %2452 = vmatprep.subr.mxu0 0.0
    %2453 = vmatpush1.xpose.msra.mxu0 0.0
    %2454 = vmatprep.subr.mxu0 0.0
    %2455 = vmatpush1.xpose.msra.mxu0 0.0
    %2456 = vmatprep.subr.mxu0 0.0
    %2457 = vmatpush1.xpose.msra.mxu0 0.0
    %2458 = vmatprep.subr.mxu0 0.0
    %2459 = vmatpush1.xpose.msra.mxu0 0.0
    %2460 = vmatprep.subr.mxu0 0.0
    %2461 = vmatpush1.xpose.msra.mxu0 0.0
    %2462 = vmatprep.subr.mxu0 0.0
    %2463 = vmatpush1.xpose.msra.mxu0 0.0
    %2464 = vmatprep.subr.mxu0 0.0
    %2465 = vmatpush1.xpose.msra.mxu0 0.0
    %2466 = vmatprep.subr.mxu0 0.0
    %2467 = vmatpush1.xpose.msra.mxu0 0.0
    %2468 = vmatprep.subr.mxu0 0.0
    %2469 = vmatpush1.xpose.msra.mxu0 0.0
    %2470 = vmatprep.subr.mxu0 0.0
    %2471 = vmatpush1.xpose.msra.mxu0 0.0
    %2472 = vmatprep.subr.mxu0 0.0
    %2473 = vmatpush1.xpose.msra.mxu0 0.0
    %2474 = vmatprep.subr.mxu0 0.0
    %2475 = vmatpush1.xpose.msra.mxu0 0.0
    %2476 = vmatprep.subr.mxu0 0.0
    %2477 = vmatpush1.xpose.msra.mxu0 0.0
    %2478 = vmatprep.subr.mxu0 0.0
    %2479 = vmatpush1.xpose.msra.mxu0 0.0
    %2480 = vmatprep.subr.mxu0 0.0
    %2481 = vmatpush1.xpose.msra.mxu0 0.0
    %2482 = vmatprep.subr.mxu0 0.0
    %2483 = vmatpush1.xpose.msra.mxu0 0.0
    %2484 = vmatprep.subr.mxu0 0.0
    %2485 = vmatpush1.xpose.msra.mxu0 0.0
    %2486 = vmatprep.subr.mxu0 0.0
    %2487 = vmatpush1.xpose.msra.mxu0 0.0
    %2488 = vmatprep.subr.mxu0 0.0
    %2489 = vmatpush1.xpose.msra.mxu0 0.0
    %2490 = vmatprep.subr.mxu0 0.0
    %2491 = vmatpush1.xpose.msra.mxu0 0.0
    %2492 = vmatprep.subr.mxu0 0.0
    %2493 = vmatpush1.xpose.msra.mxu0 0.0
    %2494 = vmatprep.subr.mxu0 0.0
    %2495 = vmatpush1.xpose.msra.mxu0 0.0
    %2496 = vmatprep.subr.mxu0 0.0
    %2497 = vmatpush1.xpose.msra.mxu0 0.0
    %2498 = vmatprep.subr.mxu0 0.0
    %2499 = vmatpush1.xpose.msra.mxu0 0.0
    %2500 = vmatprep.subr.mxu0 0.0
    %2501 = vmatpush1.xpose.msra.mxu0 0.0
    %2502 = vmatprep.subr.mxu0 0.0
    %2503 = vmatpush1.xpose.msra.mxu0 0.0
    %2504 = vmatprep.subr.mxu0 0.0
    %2505 = vmatpush1.xpose.msra.mxu0 0.0
    %2506 = vmatprep.subr.mxu0 0.0
    %2507 = vmatpush1.xpose.msra.mxu0 0.0
    %2508 = vmatprep.subr.mxu0 0.0
    %2509 = vmatpush1.xpose.msra.mxu0 0.0
    %2510 = vmatprep.mubr.f32.mxu0 0.0
    %2511 = vmatmul.mubr.f32.gmra.mrb[0].mxu0 %v2442
    %v2512 = vpop.f32.mrb[0].mxu0
    %v2513 = vadd.f32 %v2361, %v2512
    %v2514 = vpop.f32.mrb[0].mxu0
    %2515 = vdwg.mxu0
    %2516 = vrot.lane.b32.xlu0 %v219, 96
    %v2517 = vpop.permute.xlu0 %2516
    %v2518 = vsel %vm308, %v219, 0
    %v2520 = vsel %vm308, %v2517, 0
    %2522 = vmatprep.subr.mxu0 0.0
    %2523 = vmatpush1.xpose.msra.mxu0 %v2520
    %2524 = vmatprep.subr.mxu0 0.0
    %2525 = vmatpush1.xpose.msra.mxu0 0.0
    %2526 = vmatprep.subr.mxu0 0.0
    %2527 = vmatpush1.xpose.msra.mxu0 0.0
    %2528 = vmatprep.subr.mxu0 0.0
    %2529 = vmatpush1.xpose.msra.mxu0 0.0
    %2530 = vmatprep.subr.mxu0 0.0
    %2531 = vmatpush1.xpose.msra.mxu0 0.0
    %2532 = vmatprep.subr.mxu0 0.0
    %2533 = vmatpush1.xpose.msra.mxu0 0.0
    %2534 = vmatprep.subr.mxu0 0.0
    %2535 = vmatpush1.xpose.msra.mxu0 0.0
    %2536 = vmatprep.subr.mxu0 0.0
    %2537 = vmatpush1.xpose.msra.mxu0 0.0
    %2538 = vmatprep.subr.mxu0 0.0
    %2539 = vmatpush1.xpose.msra.mxu0 0.0
    %2540 = vmatprep.subr.mxu0 0.0
    %2541 = vmatpush1.xpose.msra.mxu0 0.0
    %2542 = vmatprep.subr.mxu0 0.0
    %2543 = vmatpush1.xpose.msra.mxu0 0.0
    %2544 = vmatprep.subr.mxu0 0.0
    %2545 = vmatpush1.xpose.msra.mxu0 0.0
    %2546 = vmatprep.subr.mxu0 0.0
    %2547 = vmatpush1.xpose.msra.mxu0 0.0
    %2548 = vmatprep.subr.mxu0 0.0
    %2549 = vmatpush1.xpose.msra.mxu0 0.0
    %2550 = vmatprep.subr.mxu0 0.0
    %2551 = vmatpush1.xpose.msra.mxu0 0.0
    %2552 = vmatprep.subr.mxu0 0.0
    %2553 = vmatpush1.xpose.msra.mxu0 0.0
    %2554 = vmatprep.subr.mxu0 0.0
    %2555 = vmatpush1.xpose.msra.mxu0 0.0
    %2556 = vmatprep.subr.mxu0 0.0
    %2557 = vmatpush1.xpose.msra.mxu0 0.0
    %2558 = vmatprep.subr.mxu0 0.0
    %2559 = vmatpush1.xpose.msra.mxu0 0.0
    %2560 = vmatprep.subr.mxu0 0.0
    %2561 = vmatpush1.xpose.msra.mxu0 0.0
    %2562 = vmatprep.subr.mxu0 0.0
    %2563 = vmatpush1.xpose.msra.mxu0 0.0
    %2564 = vmatprep.subr.mxu0 0.0
    %2565 = vmatpush1.xpose.msra.mxu0 0.0
    %2566 = vmatprep.subr.mxu0 0.0
    %2567 = vmatpush1.xpose.msra.mxu0 0.0
    %2568 = vmatprep.subr.mxu0 0.0
    %2569 = vmatpush1.xpose.msra.mxu0 0.0
    %2570 = vmatprep.subr.mxu0 0.0
    %2571 = vmatpush1.xpose.msra.mxu0 0.0
    %2572 = vmatprep.subr.mxu0 0.0
    %2573 = vmatpush1.xpose.msra.mxu0 0.0
    %2574 = vmatprep.subr.mxu0 0.0
    %2575 = vmatpush1.xpose.msra.mxu0 0.0
    %2576 = vmatprep.subr.mxu0 0.0
    %2577 = vmatpush1.xpose.msra.mxu0 0.0
    %2578 = vmatprep.subr.mxu0 0.0
    %2579 = vmatpush1.xpose.msra.mxu0 0.0
    %2580 = vmatprep.subr.mxu0 0.0
    %2581 = vmatpush1.xpose.msra.mxu0 0.0
    %2582 = vmatprep.subr.mxu0 0.0
    %2583 = vmatpush1.xpose.msra.mxu0 0.0
    %2584 = vmatprep.subr.mxu0 0.0
    %2585 = vmatpush1.xpose.msra.mxu0 0.0
    %2586 = vmatprep.mubr.f32.mxu0 0.0
    %2587 = vmatmul.mubr.f32.gmra.mrb[0].mxu0 %v2518
    %v2588 = vpop.f32.mrb[0].mxu0
    %v2589 = vadd.f32 %v2362, %v2588
    %v2590 = vpop.f32.mrb[0].mxu0
    %2591 = vdwg.mxu0
    %2592 = vrot.lane.b32.xlu0 %v225, 96
    %v2593 = vpop.permute.xlu0 %2592
    %v2594 = vsel %vm308, %v225, 0
    %v2596 = vsel %vm308, %v2593, 0
    %2598 = vmatprep.subr.mxu0 0.0
    %2599 = vmatpush1.xpose.msra.mxu0 %v2596
    %2600 = vmatprep.subr.mxu0 0.0
    %2601 = vmatpush1.xpose.msra.mxu0 0.0
    %2602 = vmatprep.subr.mxu0 0.0
    %2603 = vmatpush1.xpose.msra.mxu0 0.0
    %2604 = vmatprep.subr.mxu0 0.0
    %2605 = vmatpush1.xpose.msra.mxu0 0.0
    %2606 = vmatprep.subr.mxu0 0.0
    %2607 = vmatpush1.xpose.msra.mxu0 0.0
    %2608 = vmatprep.subr.mxu0 0.0
    %2609 = vmatpush1.xpose.msra.mxu0 0.0
    %2610 = vmatprep.subr.mxu0 0.0
    %2611 = vmatpush1.xpose.msra.mxu0 0.0
    %2612 = vmatprep.subr.mxu0 0.0
    %2613 = vmatpush1.xpose.msra.mxu0 0.0
    %2614 = vmatprep.subr.mxu0 0.0
    %2615 = vmatpush1.xpose.msra.mxu0 0.0
    %2616 = vmatprep.subr.mxu0 0.0
    %2617 = vmatpush1.xpose.msra.mxu0 0.0
    %2618 = vmatprep.subr.mxu0 0.0
    %2619 = vmatpush1.xpose.msra.mxu0 0.0
    %2620 = vmatprep.subr.mxu0 0.0
    %2621 = vmatpush1.xpose.msra.mxu0 0.0
    %2622 = vmatprep.subr.mxu0 0.0
    %2623 = vmatpush1.xpose.msra.mxu0 0.0
    %2624 = vmatprep.subr.mxu0 0.0
    %2625 = vmatpush1.xpose.msra.mxu0 0.0
    %2626 = vmatprep.subr.mxu0 0.0
    %2627 = vmatpush1.xpose.msra.mxu0 0.0
    %2628 = vmatprep.subr.mxu0 0.0
    %2629 = vmatpush1.xpose.msra.mxu0 0.0
    %2630 = vmatprep.subr.mxu0 0.0
    %2631 = vmatpush1.xpose.msra.mxu0 0.0
    %2632 = vmatprep.subr.mxu0 0.0
    %2633 = vmatpush1.xpose.msra.mxu0 0.0
    %2634 = vmatprep.subr.mxu0 0.0
    %2635 = vmatpush1.xpose.msra.mxu0 0.0
    %2636 = vmatprep.subr.mxu0 0.0
    %2637 = vmatpush1.xpose.msra.mxu0 0.0
    %2638 = vmatprep.subr.mxu0 0.0
    %2639 = vmatpush1.xpose.msra.mxu0 0.0
    %2640 = vmatprep.subr.mxu0 0.0
    %2641 = vmatpush1.xpose.msra.mxu0 0.0
    %2642 = vmatprep.subr.mxu0 0.0
    %2643 = vmatpush1.xpose.msra.mxu0 0.0
    %2644 = vmatprep.subr.mxu0 0.0
    %2645 = vmatpush1.xpose.msra.mxu0 0.0
    %2646 = vmatprep.subr.mxu0 0.0
    %2647 = vmatpush1.xpose.msra.mxu0 0.0
    %2648 = vmatprep.subr.mxu0 0.0
    %2649 = vmatpush1.xpose.msra.mxu0 0.0
    %2650 = vmatprep.subr.mxu0 0.0
    %2651 = vmatpush1.xpose.msra.mxu0 0.0
    %2652 = vmatprep.subr.mxu0 0.0
    %2653 = vmatpush1.xpose.msra.mxu0 0.0
    %2654 = vmatprep.subr.mxu0 0.0
    %2655 = vmatpush1.xpose.msra.mxu0 0.0
    %2656 = vmatprep.subr.mxu0 0.0
    %2657 = vmatpush1.xpose.msra.mxu0 0.0
    %2658 = vmatprep.subr.mxu0 0.0
    %2659 = vmatpush1.xpose.msra.mxu0 0.0
    %2660 = vmatprep.subr.mxu0 0.0
    %2661 = vmatpush1.xpose.msra.mxu0 0.0
    %2662 = vmatprep.mubr.f32.mxu0 0.0
    %2663 = vmatmul.mubr.f32.gmra.mrb[0].mxu0 %v2594
    %v2664 = vpop.f32.mrb[0].mxu0
    %v2665 = vadd.f32 %v2363, %v2664
    %v2666 = vpop.f32.mrb[0].mxu0
    %2667 = vdwg.mxu0
    %v2668 = vmul.f32 %v2437, 0.35355338
    %v2669 = vmul.f32 %v2513, 0.35355338
    %v2670 = vmul.f32 %v2589, 0.35355338
    %v2671 = vmul.f32 %v2665, 0.35355338
    %v2672 = vsel %vm239, 1, 0
    %vm2673 = vcmp.eq.s32.totalorder %v2672, 1
    %v2674 = vsel %vm2673, -1e+30, %v2668
    %v2675 = vsel %vm2673, -1e+30, %v2669
    %v2676 = vsel %vm2673, -1e+30, %v2670
    %v2677 = vsel %vm2673, -1e+30, %v2671
    %v2678 = vsel %vm308, %v2674, -inf
    %2679 = vmax.xlane.f32.xlu0 %v2678
    %v2680 = vpop.xlane.xlu0 %2679
    %v2681 = vsel %vm308, %v2675, -inf
    %2682 = vmax.xlane.f32.xlu0 %v2681
    %v2683 = vpop.xlane.xlu0 %2682
    %v2684 = vsel %vm308, %v2676, -inf
    %2685 = vmax.xlane.f32.xlu0 %v2684
    %v2686 = vpop.xlane.xlu0 %2685
    %v2687 = vsel %vm308, %v2677, -inf
    %2688 = vmax.xlane.f32.xlu0 %v2687
    %v2689 = vpop.xlane.xlu0 %2688
    %v2690 = vsub.f32 %v2674, %v2680
    %v2691 = vsub.f32 %v2675, %v2683
    %v2692 = vsub.f32 %v2676, %v2686
    %v2693 = vsub.f32 %v2677, %v2689
    %v2694 = vmul.f32 %v2690, 1.442695
    %v2695 = vpow.pop %v2694
    %v2696 = vmul.f32 %v2691, 1.442695
    %v2697 = vpow.pop %v2696
    %v2698 = vmul.f32 %v2692, 1.442695
    %v2699 = vpow.pop %v2698
    %v2700 = vmul.f32 %v2693, 1.442695
    %v2701 = vpow.pop %v2700
    %v2702 = vsel %vm308, %v2695, 0.0
    %2703 = vadd.xlane.f32.xlu0 %v2702
    %v2704 = vpop.xlane.xlu0 %2703
    %v2705 = vsel %vm308, %v2697, 0.0
    %2706 = vadd.xlane.f32.xlu0 %v2705
    %v2707 = vpop.xlane.xlu0 %2706
    %v2708 = vsel %vm308, %v2699, 0.0
    %2709 = vadd.xlane.f32.xlu0 %v2708
    %v2710 = vpop.xlane.xlu0 %2709
    %v2711 = vsel %vm308, %v2701, 0.0
    %2712 = vadd.xlane.f32.xlu0 %v2711
    %v2713 = vpop.xlane.xlu0 %2712
    %v2714 = vrcp.pop %v2704
    %v2715 = vrcp.pop %v2707
    %v2716 = vrcp.pop %v2710
    %v2717 = vrcp.pop %v2713
    %v2718 = vmul.f32 %v2695, %v2714
    %v2719 = vmul.f32 %v2697, %v2715
    %v2720 = vmul.f32 %v2699, %v2716
    %v2721 = vmul.f32 %v2701, %v2717
    %v2722 = vsel %vm2673, 0.0, %v2718
    %v2723 = vsel %vm2673, 0.0, %v2719
    %v2724 = vsel %vm2673, 0.0, %v2720
    %v2725 = vsel %vm2673, 0.0, %v2721
    %2726 = vrot.lane.b32.xlu0 %v205, 64
    %v2727 = vpop.permute.xlu0 %2726
    %v2730 = vsel %vm308, %v2722, 0
    %2732 = vmatprep.subr.mxu0 0.0
    %2733 = vmatpush1.msra.mxu0 %v2727
    %2734 = vmatprep.subr.mxu0 0.0
    %2735 = vmatpush1.msra.mxu0 0.0
    %2736 = vmatprep.subr.mxu0 0.0
    %2737 = vmatpush1.msra.mxu0 0.0
    %2738 = vmatprep.subr.mxu0 0.0
    %2739 = vmatpush1.msra.mxu0 0.0
    %2740 = vmatprep.subr.mxu0 0.0
    %2741 = vmatpush1.msra.mxu0 0.0
    %2742 = vmatprep.subr.mxu0 0.0
    %2743 = vmatpush1.msra.mxu0 0.0
    %2744 = vmatprep.subr.mxu0 0.0
    %2745 = vmatpush1.msra.mxu0 0.0
    %2746 = vmatprep.subr.mxu0 0.0
    %2747 = vmatpush1.msra.mxu0 0.0
    %2748 = vmatprep.subr.mxu0 0.0
    %2749 = vmatpush1.msra.mxu0 0.0
    %2750 = vmatprep.subr.mxu0 0.0
    %2751 = vmatpush1.msra.mxu0 0.0
    %2752 = vmatprep.subr.mxu0 0.0
    %2753 = vmatpush1.msra.mxu0 0.0
    %2754 = vmatprep.subr.mxu0 0.0
    %2755 = vmatpush1.msra.mxu0 0.0
    %2756 = vmatprep.subr.mxu0 0.0
    %2757 = vmatpush1.msra.mxu0 0.0
    %2758 = vmatprep.subr.mxu0 0.0
    %2759 = vmatpush1.msra.mxu0 0.0
    %2760 = vmatprep.subr.mxu0 0.0
    %2761 = vmatpush1.msra.mxu0 0.0
    %2762 = vmatprep.subr.mxu0 0.0
    %2763 = vmatpush1.msra.mxu0 0.0
    %2764 = vmatprep.subr.mxu0 0.0
    %2765 = vmatpush1.msra.mxu0 0.0
    %2766 = vmatprep.subr.mxu0 0.0
    %2767 = vmatpush1.msra.mxu0 0.0
    %2768 = vmatprep.subr.mxu0 0.0
    %2769 = vmatpush1.msra.mxu0 0.0
    %2770 = vmatprep.subr.mxu0 0.0
    %2771 = vmatpush1.msra.mxu0 0.0
    %2772 = vmatprep.subr.mxu0 0.0
    %2773 = vmatpush1.msra.mxu0 0.0
    %2774 = vmatprep.subr.mxu0 0.0
    %2775 = vmatpush1.msra.mxu0 0.0
    %2776 = vmatprep.subr.mxu0 0.0
    %2777 = vmatpush1.msra.mxu0 0.0
    %2778 = vmatprep.subr.mxu0 0.0
    %2779 = vmatpush1.msra.mxu0 0.0
    %2780 = vmatprep.subr.mxu0 0.0
    %2781 = vmatpush1.msra.mxu0 0.0
    %2782 = vmatprep.subr.mxu0 0.0
    %2783 = vmatpush1.msra.mxu0 0.0
    %2784 = vmatprep.subr.mxu0 0.0
    %2785 = vmatpush1.msra.mxu0 0.0
    %2786 = vmatprep.subr.mxu0 0.0
    %2787 = vmatpush1.msra.mxu0 0.0
    %2788 = vmatprep.subr.mxu0 0.0
    %2789 = vmatpush1.msra.mxu0 0.0
    %2790 = vmatprep.subr.mxu0 0.0
    %2791 = vmatpush1.msra.mxu0 0.0
    %2792 = vmatprep.subr.mxu0 0.0
    %2793 = vmatpush1.msra.mxu0 0.0
    %2794 = vmatprep.subr.mxu0 0.0
    %2795 = vmatpush1.msra.mxu0 0.0
    %2796 = vmatprep.mubr.f32.mxu0 0.0
    %2797 = vmatmul.mubr.f32.gmra.mrb[0].mxu0 %v2730
    %v2798 = vpop.f32.mrb[0].mxu0
    %v2799 = vadd.f32 0.0, %v2798
    %v2800 = vpop.f32.mrb[0].mxu0
    %2801 = vdwg.mxu0
    %2802 = vrot.lane.b32.xlu0 %v213, 64
    %v2803 = vpop.permute.xlu0 %2802
    %v2806 = vsel %vm308, %v2723, 0
    %2808 = vmatprep.subr.mxu0 0.0
    %2809 = vmatpush1.msra.mxu0 %v2803
    %2810 = vmatprep.subr.mxu0 0.0
    %2811 = vmatpush1.msra.mxu0 0.0
    %2812 = vmatprep.subr.mxu0 0.0
    %2813 = vmatpush1.msra.mxu0 0.0
    %2814 = vmatprep.subr.mxu0 0.0
    %2815 = vmatpush1.msra.mxu0 0.0
    %2816 = vmatprep.subr.mxu0 0.0
    %2817 = vmatpush1.msra.mxu0 0.0
    %2818 = vmatprep.subr.mxu0 0.0
    %2819 = vmatpush1.msra.mxu0 0.0
    %2820 = vmatprep.subr.mxu0 0.0
    %2821 = vmatpush1.msra.mxu0 0.0
    %2822 = vmatprep.subr.mxu0 0.0
    %2823 = vmatpush1.msra.mxu0 0.0
    %2824 = vmatprep.subr.mxu0 0.0
    %2825 = vmatpush1.msra.mxu0 0.0
    %2826 = vmatprep.subr.mxu0 0.0
    %2827 = vmatpush1.msra.mxu0 0.0
    %2828 = vmatprep.subr.mxu0 0.0
    %2829 = vmatpush1.msra.mxu0 0.0
    %2830 = vmatprep.subr.mxu0 0.0
    %2831 = vmatpush1.msra.mxu0 0.0
    %2832 = vmatprep.subr.mxu0 0.0
    %2833 = vmatpush1.msra.mxu0 0.0
    %2834 = vmatprep.subr.mxu0 0.0
    %2835 = vmatpush1.msra.mxu0 0.0
    %2836 = vmatprep.subr.mxu0 0.0
    %2837 = vmatpush1.msra.mxu0 0.0
    %2838 = vmatprep.subr.mxu0 0.0
    %2839 = vmatpush1.msra.mxu0 0.0
    %2840 = vmatprep.subr.mxu0 0.0
    %2841 = vmatpush1.msra.mxu0 0.0
    %2842 = vmatprep.subr.mxu0 0.0
    %2843 = vmatpush1.msra.mxu0 0.0
    %2844 = vmatprep.subr.mxu0 0.0
    %2845 = vmatpush1.msra.mxu0 0.0
    %2846 = vmatprep.subr.mxu0 0.0
    %2847 = vmatpush1.msra.mxu0 0.0
    %2848 = vmatprep.subr.mxu0 0.0
    %2849 = vmatpush1.msra.mxu0 0.0
    %2850 = vmatprep.subr.mxu0 0.0
    %2851 = vmatpush1.msra.mxu0 0.0
    %2852 = vmatprep.subr.mxu0 0.0
    %2853 = vmatpush1.msra.mxu0 0.0
    %2854 = vmatprep.subr.mxu0 0.0
    %2855 = vmatpush1.msra.mxu0 0.0
    %2856 = vmatprep.subr.mxu0 0.0
    %2857 = vmatpush1.msra.mxu0 0.0
    %2858 = vmatprep.subr.mxu0 0.0
    %2859 = vmatpush1.msra.mxu0 0.0
    %2860 = vmatprep.subr.mxu0 0.0
    %2861 = vmatpush1.msra.mxu0 0.0
    %2862 = vmatprep.subr.mxu0 0.0
    %2863 = vmatpush1.msra.mxu0 0.0
    %2864 = vmatprep.subr.mxu0 0.0
    %2865 = vmatpush1.msra.mxu0 0.0
    %2866 = vmatprep.subr.mxu0 0.0
    %2867 = vmatpush1.msra.mxu0 0.0
    %2868 = vmatprep.subr.mxu0 0.0
    %2869 = vmatpush1.msra.mxu0 0.0
    %2870 = vmatprep.subr.mxu0 0.0
    %2871 = vmatpush1.msra.mxu0 0.0
    %2872 = vmatprep.mubr.f32.mxu0 0.0
    %2873 = vmatmul.mubr.f32.gmra.mrb[0].mxu0 %v2806
    %v2874 = vpop.f32.mrb[0].mxu0
    %v2875 = vadd.f32 0.0, %v2874
    %v2876 = vpop.f32.mrb[0].mxu0
    %2877 = vdwg.mxu0
    %2878 = vrot.lane.b32.xlu0 %v219, 64
    %v2879 = vpop.permute.xlu0 %2878
    %v2882 = vsel %vm308, %v2724, 0
    %2884 = vmatprep.subr.mxu0 0.0
    %2885 = vmatpush1.msra.mxu0 %v2879
    %2886 = vmatprep.subr.mxu0 0.0
    %2887 = vmatpush1.msra.mxu0 0.0
    %2888 = vmatprep.subr.mxu0 0.0
    %2889 = vmatpush1.msra.mxu0 0.0
    %2890 = vmatprep.subr.mxu0 0.0
    %2891 = vmatpush1.msra.mxu0 0.0
    %2892 = vmatprep.subr.mxu0 0.0
    %2893 = vmatpush1.msra.mxu0 0.0
    %2894 = vmatprep.subr.mxu0 0.0
    %2895 = vmatpush1.msra.mxu0 0.0
    %2896 = vmatprep.subr.mxu0 0.0
    %2897 = vmatpush1.msra.mxu0 0.0
    %2898 = vmatprep.subr.mxu0 0.0
    %2899 = vmatpush1.msra.mxu0 0.0
    %2900 = vmatprep.subr.mxu0 0.0
    %2901 = vmatpush1.msra.mxu0 0.0
    %2902 = vmatprep.subr.mxu0 0.0
    %2903 = vmatpush1.msra.mxu0 0.0
    %2904 = vmatprep.subr.mxu0 0.0
    %2905 = vmatpush1.msra.mxu0 0.0
    %2906 = vmatprep.subr.mxu0 0.0
    %2907 = vmatpush1.msra.mxu0 0.0
    %2908 = vmatprep.subr.mxu0 0.0
    %2909 = vmatpush1.msra.mxu0 0.0
    %2910 = vmatprep.subr.mxu0 0.0
    %2911 = vmatpush1.msra.mxu0 0.0
    %2912 = vmatprep.subr.mxu0 0.0
    %2913 = vmatpush1.msra.mxu0 0.0
    %2914 = vmatprep.subr.mxu0 0.0
    %2915 = vmatpush1.msra.mxu0 0.0
    %2916 = vmatprep.subr.mxu0 0.0
    %2917 = vmatpush1.msra.mxu0 0.0
    %2918 = vmatprep.subr.mxu0 0.0
    %2919 = vmatpush1.msra.mxu0 0.0
    %2920 = vmatprep.subr.mxu0 0.0
    %2921 = vmatpush1.msra.mxu0 0.0
    %2922 = vmatprep.subr.mxu0 0.0
    %2923 = vmatpush1.msra.mxu0 0.0
    %2924 = vmatprep.subr.mxu0 0.0
    %2925 = vmatpush1.msra.mxu0 0.0
    %2926 = vmatprep.subr.mxu0 0.0
    %2927 = vmatpush1.msra.mxu0 0.0
    %2928 = vmatprep.subr.mxu0 0.0
    %2929 = vmatpush1.msra.mxu0 0.0
    %2930 = vmatprep.subr.mxu0 0.0
    %2931 = vmatpush1.msra.mxu0 0.0
    %2932 = vmatprep.subr.mxu0 0.0
    %2933 = vmatpush1.msra.mxu0 0.0
    %2934 = vmatprep.subr.mxu0 0.0
    %2935 = vmatpush1.msra.mxu0 0.0
    %2936 = vmatprep.subr.mxu0 0.0
    %2937 = vmatpush1.msra.mxu0 0.0
    %2938 = vmatprep.subr.mxu0 0.0
    %2939 = vmatpush1.msra.mxu0 0.0
    %2940 = vmatprep.subr.mxu0 0.0
    %2941 = vmatpush1.msra.mxu0 0.0
    %2942 = vmatprep.subr.mxu0 0.0
    %2943 = vmatpush1.msra.mxu0 0.0
    %2944 = vmatprep.subr.mxu0 0.0
    %2945 = vmatpush1.msra.mxu0 0.0
    %2946 = vmatprep.subr.mxu0 0.0
    %2947 = vmatpush1.msra.mxu0 0.0
    %2948 = vmatprep.mubr.f32.mxu0 0.0
    %2949 = vmatmul.mubr.f32.gmra.mrb[0].mxu0 %v2882
    %v2950 = vpop.f32.mrb[0].mxu0
    %v2951 = vadd.f32 0.0, %v2950
    %v2952 = vpop.f32.mrb[0].mxu0
    %2953 = vdwg.mxu0
    %2954 = vrot.lane.b32.xlu0 %v225, 64
    %v2955 = vpop.permute.xlu0 %2954
    %v2958 = vsel %vm308, %v2725, 0
    %2960 = vmatprep.subr.mxu0 0.0
    %2961 = vmatpush1.msra.mxu0 %v2955
    %2962 = vmatprep.subr.mxu0 0.0
    %2963 = vmatpush1.msra.mxu0 0.0
    %2964 = vmatprep.subr.mxu0 0.0
    %2965 = vmatpush1.msra.mxu0 0.0
    %2966 = vmatprep.subr.mxu0 0.0
    %2967 = vmatpush1.msra.mxu0 0.0
    %2968 = vmatprep.subr.mxu0 0.0
    %2969 = vmatpush1.msra.mxu0 0.0
    %2970 = vmatprep.subr.mxu0 0.0
    %2971 = vmatpush1.msra.mxu0 0.0
    %2972 = vmatprep.subr.mxu0 0.0
    %2973 = vmatpush1.msra.mxu0 0.0
    %2974 = vmatprep.subr.mxu0 0.0
    %2975 = vmatpush1.msra.mxu0 0.0
    %2976 = vmatprep.subr.mxu0 0.0
    %2977 = vmatpush1.msra.mxu0 0.0
    %2978 = vmatprep.subr.mxu0 0.0
    %2979 = vmatpush1.msra.mxu0 0.0
    %2980 = vmatprep.subr.mxu0 0.0
    %2981 = vmatpush1.msra.mxu0 0.0
    %2982 = vmatprep.subr.mxu0 0.0
    %2983 = vmatpush1.msra.mxu0 0.0
    %2984 = vmatprep.subr.mxu0 0.0
    %2985 = vmatpush1.msra.mxu0 0.0
    %2986 = vmatprep.subr.mxu0 0.0
    %2987 = vmatpush1.msra.mxu0 0.0
    %2988 = vmatprep.subr.mxu0 0.0
    %2989 = vmatpush1.msra.mxu0 0.0
    %2990 = vmatprep.subr.mxu0 0.0
    %2991 = vmatpush1.msra.mxu0 0.0
    %2992 = vmatprep.subr.mxu0 0.0
    %2993 = vmatpush1.msra.mxu0 0.0
    %2994 = vmatprep.subr.mxu0 0.0
    %2995 = vmatpush1.msra.mxu0 0.0
    %2996 = vmatprep.subr.mxu0 0.0
    %2997 = vmatpush1.msra.mxu0 0.0
    %2998 = vmatprep.subr.mxu0 0.0
    %2999 = vmatpush1.msra.mxu0 0.0
    %3000 = vmatprep.subr.mxu0 0.0
    %3001 = vmatpush1.msra.mxu0 0.0
    %3002 = vmatprep.subr.mxu0 0.0
    %3003 = vmatpush1.msra.mxu0 0.0
    %3004 = vmatprep.subr.mxu0 0.0
    %3005 = vmatpush1.msra.mxu0 0.0
    %3006 = vmatprep.subr.mxu0 0.0
    %3007 = vmatpush1.msra.mxu0 0.0
    %3008 = vmatprep.subr.mxu0 0.0
    %3009 = vmatpush1.msra.mxu0 0.0
    %3010 = vmatprep.subr.mxu0 0.0
    %3011 = vmatpush1.msra.mxu0 0.0
    %3012 = vmatprep.subr.mxu0 0.0
    %3013 = vmatpush1.msra.mxu0 0.0
    %3014 = vmatprep.subr.mxu0 0.0
    %3015 = vmatpush1.msra.mxu0 0.0
    %3016 = vmatprep.subr.mxu0 0.0
    %3017 = vmatpush1.msra.mxu0 0.0
    %3018 = vmatprep.subr.mxu0 0.0
    %3019 = vmatpush1.msra.mxu0 0.0
    %3020 = vmatprep.subr.mxu0 0.0
    %3021 = vmatpush1.msra.mxu0 0.0
    %3022 = vmatprep.subr.mxu0 0.0
    %3023 = vmatpush1.msra.mxu0 0.0
    %3024 = vmatprep.mubr.f32.mxu0 0.0
    %3025 = vmatmul.mubr.f32.gmra.mrb[0].mxu0 %v2958
    %v3026 = vpop.f32.mrb[0].mxu0
    %v3027 = vadd.f32 0.0, %v3026
    %v3028 = vpop.f32.mrb[0].mxu0
    %3029 = vdwg.mxu0
    %3031 = vrot.lane.b32.xlu0 %v2875, 8
    %v3032 = vpop.permute.xlu0 %3031
    %3035 = vrot.lane.b32.xlu0 %v2951, 16
    %v3036 = vpop.permute.xlu0 %3035
    %3039 = vrot.lane.b32.xlu0 %v3027, 24
    %v3040 = vpop.permute.xlu0 %3039
    %v3042 = vsel %vm308, %v2799, %v3032
    %v3043 = vsel %vm1640, %v3042, %v3036
    %v3044 = vsel %vm1642, %v3043, %v3040
    %v3045 = vlaneseq
    %v3046 = vshrl.u32 %v3045, 7
    %v3047 = vsub.s32 2, %v3046
    %v3048 = vrot.slane %v82, %v3047
    %3053 = vrot.lane.b32.xlu0 %v78, 32
    %v3054 = vpop.permute.xlu0 %3053
    %3055 = vrot.lane.b32.xlu0 %v79, 32
    %v3056 = vpop.permute.xlu0 %3055
    %3057 = vrot.lane.b32.xlu0 %v80, 32
    %v3058 = vpop.permute.xlu0 %3057
    %3059 = vrot.lane.b32.xlu0 %v81, 32
    %v3060 = vpop.permute.xlu0 %3059
    %v3066 = vsel %vm83, %v1643, 0
    %v3069 = vsel %vm83, %v3044, 0
    %3071 = vmatprep.subr.mxu0 0.0
    %3072 = vmatpush1.msra.mxu0 %v3054
    %3073 = vmatprep.subr.mxu0 0.0
    %3074 = vmatpush1.msra.mxu0 %v3056
    %3075 = vmatprep.subr.mxu0 0.0
    %3076 = vmatpush1.msra.mxu0 %v3058
    %3077 = vmatprep.subr.mxu0 0.0
    %3078 = vmatpush1.msra.mxu0 %v3060
    %3079 = vmatprep.subr.mxu0 0.0
    %3080 = vmatpush1.msra.mxu0 0.0
    %3081 = vmatprep.subr.mxu0 0.0
    %3082 = vmatpush1.msra.mxu0 0.0
    %3083 = vmatprep.subr.mxu0 0.0
    %3084 = vmatpush1.msra.mxu0 0.0
    %3085 = vmatprep.subr.mxu0 0.0
    %3086 = vmatpush1.msra.mxu0 0.0
    %3087 = vmatprep.subr.mxu0 0.0
    %3088 = vmatpush1.msra.mxu0 0.0
    %3089 = vmatprep.subr.mxu0 0.0
    %3090 = vmatpush1.msra.mxu0 0.0
    %3091 = vmatprep.subr.mxu0 0.0
    %3092 = vmatpush1.msra.mxu0 0.0
    %3093 = vmatprep.subr.mxu0 0.0
    %3094 = vmatpush1.msra.mxu0 0.0
    %3095 = vmatprep.subr.mxu0 0.0
    %3096 = vmatpush1.msra.mxu0 0.0
    %3097 = vmatprep.subr.mxu0 0.0
    %3098 = vmatpush1.msra.mxu0 0.0
    %3099 = vmatprep.subr.mxu0 0.0
    %3100 = vmatpush1.msra.mxu0 0.0
    %3101 = vmatprep.subr.mxu0 0.0
    %3102 = vmatpush1.msra.mxu0 0.0
    %3103 = vmatprep.subr.mxu0 0.0
    %3104 = vmatpush1.msra.mxu0 0.0
    %3105 = vmatprep.subr.mxu0 0.0
    %3106 = vmatpush1.msra.mxu0 0.0
    %3107 = vmatprep.subr.mxu0 0.0
    %3108 = vmatpush1.msra.mxu0 0.0
    %3109 = vmatprep.subr.mxu0 0.0
    %3110 = vmatpush1.msra.mxu0 0.0
    %3111 = vmatprep.subr.mxu0 0.0
    %3112 = vmatpush1.msra.mxu0 0.0
    %3113 = vmatprep.subr.mxu0 0.0
    %3114 = vmatpush1.msra.mxu0 0.0
    %3115 = vmatprep.subr.mxu0 0.0
    %3116 = vmatpush1.msra.mxu0 0.0
    %3117 = vmatprep.subr.mxu0 0.0
    %3118 = vmatpush1.msra.mxu0 0.0
    %3119 = vmatprep.subr.mxu0 0.0
    %3120 = vmatpush1.msra.mxu0 0.0
    %3121 = vmatprep.subr.mxu0 0.0
    %3122 = vmatpush1.msra.mxu0 0.0
    %3123 = vmatprep.subr.mxu0 0.0
    %3124 = vmatpush1.msra.mxu0 0.0
    %3125 = vmatprep.subr.mxu0 0.0
    %3126 = vmatpush1.msra.mxu0 0.0
    %3127 = vmatprep.subr.mxu0 0.0
    %3128 = vmatpush1.msra.mxu0 0.0
    %3129 = vmatprep.subr.mxu0 0.0
    %3130 = vmatpush1.msra.mxu0 0.0
    %3131 = vmatprep.subr.mxu0 0.0
    %3132 = vmatpush1.msra.mxu0 0.0
    %3133 = vmatprep.subr.mxu0 0.0
    %3134 = vmatpush1.msra.mxu0 0.0
    %3135 = vmatprep.mubr.f32.mxu0 0.0
    %3136 = vmatmul.mubr.f32.gmra.mrb[0].mxu0 %v3066
    %v3137 = vpop.f32.mrb[0].mxu0
    %v3138 = vadd.f32 %v3048, %v3137
    %v3139 = vpop.f32.mrb[0].mxu0
    %3140 = vmatprep.mubr.f32.mxu0 0.0
    %3141 = vmatmul.mubr.f32.gmra.mrb[0].mxu0 %v3069
    %v3142 = vpop.f32.mrb[0].mxu0
    %v3143 = vadd.f32 %v3048, %v3142
    %v3144 = vpop.f32.mrb[0].mxu0
    %3145 = vdwg.mxu0
    %3146 = vst.msk [vmem:[#allocation10] sm:$0xff] %vm83, %v3138
    %3147 = vst.msk [vmem:[#allocation10 + $0x8] sm:$0xff] %vm83, %v3143
    // Predicated region
    $region38: #{tpu_custom_call.1} parent=1 // pred_check
      _
    $region39: #{tpu_custom_call.1} parent=1 // pred_check_branch
      %3149 = sbr.rel (0) target = $region41
    $region40: #{tpu_custom_call.1} parent=1 // pred_region
      %s3151 = ssub.s32 256, 256
      %3152 = vsyncadd [#allocation4], %s3151
      %s3153 = sshll.u32 [#allocation10], 4
      %s3154 = int_to_ptr.vmem [resolvable:$true] %s3153
      %3159 = dma.vmem_to_hbm [thread:$0]  %s3154, 256, %s5, [#allocation4], 128, 128, 8
    $region41: #{tpu_custom_call.1} parent=1 // pred_fallthru
      _
    // Predicated region
    $region42: #{tpu_custom_call.1} parent=1 // pred_check
      _
    $region43: #{tpu_custom_call.1} parent=1 // pred_check_branch
      %3161 = sbr.rel (0) target = $region45
    $region44: #{tpu_custom_call.1} parent=1 // pred_region
      %3162 = dma.done [#allocation4], 256
    $region45: #{tpu_custom_call.1} parent=1 // pred_fallthru
      _
    %3163 = vsyncpa [#allocation3], 1
    %3164 = vsyncpa [#allocation6], 1
    %3165 = vsyncpa [#allocation9], 1
    %3166 = vsyncpa [#allocation4], 1

</llo_original>
